<compile_context>
chip_gen: v7x
topology: tpu7x:2x2x1
jax: 0.10.0
libtpu: 0.0.40
codegen_flags: <defaults>
</compile_context>

<pallas_src>
import functools
import math

import jax
import jax.numpy as jnp
from jax.experimental import pallas as pl
from jax.experimental.pallas import tpu as pltpu

NEG_MASK_FILL = -1e9   # stands in for torch.finfo(dtype).min in get_extended_attention_mask
LN_EPS = 1e-12         # BERT LayerNorm eps
INF = 1e4              # fill for the dummy stance/disco logit (index 0)


# ---------------------------------------------------------------------------
# in-kernel helpers (stats kept in f32)
# ---------------------------------------------------------------------------
def _layer_norm(x, gamma, beta, eps=LN_EPS):
    mu = jnp.mean(x, axis=-1, keepdims=True)
    var = jnp.mean((x - mu) ** 2, axis=-1, keepdims=True)
    return (x - mu) * jax.lax.rsqrt(var + eps) * gamma + beta


def _softmax(x):
    m = jnp.max(x, axis=-1, keepdims=True)
    e = jnp.exp(x - m)
    s = jnp.sum(e, axis=-1, keepdims=True)
    return e * pl.reciprocal(s, approx=True)      # divide -> EUP slot


def _gelu_tanh(x):
    c = math.sqrt(2.0 / math.pi)
    return 0.5 * x * (1.0 + jnp.tanh(c * (x + 0.044715 * x * x * x)))


# ---------------------------------------------------------------------------
# fused encoder kernel: grid axis = layer index, hidden resident in VMEM scratch
# ---------------------------------------------------------------------------
def _encoder_kernel(num_heads,
                    emb_ref, st_logit_ref, di_logit_ref, st_w2_ref, di_w2_ref,
                    w1bias_ref, eln_g_ref, eln_b_ref, maskf_ref, mask_add_ref,
                    wqkv_ref, bqkv_ref, wo_ref, bo_ref, ln1_g_ref, ln1_b_ref,
                    wff1_ref, bff1_ref, wff2_ref, bff2_ref, ln2_g_ref, ln2_b_ref,
                    mems_ref, out_ref, hid_ref):
    l = pl.program_id(0)
    B, S, H = hid_ref.shape
    M = B * S
    dh = H // num_heads
    scale = 1.0 / math.sqrt(dh)
    NS = st_w2_ref.shape[0]
    ND = di_w2_ref.shape[0]

    maskf = maskf_ref[...].reshape(M, 1)                       # (B*S, 1) f32

    # -- layer 0 only: embeddings LN + stance/disco softmax mixing + input mask --------
    @pl.when(l == 0)
    def _():
        emb = emb_ref[...].reshape(M, H)                       # word + pos + type sum
        word_emb = _layer_norm(emb, eln_g_ref[...], eln_b_ref[...])
        st_w = _softmax(st_logit_ref[...].reshape(M, NS))      # logits pre-scaled by 1/tau
        di_w = _softmax(di_logit_ref[...].reshape(M, ND))
        st_emb2 = jnp.dot(st_w, st_w2_ref[...], preferred_element_type=jnp.float32)
        di_emb2 = jnp.dot(di_w, di_w2_ref[...], preferred_element_type=jnp.float32)
        # refine_emb default path: refined emb == dummy emb == w1[0] rows (pre-summed).
        hidden0 = (word_emb + w1bias_ref[...] + st_emb2 + di_emb2) * maskf
        hid_ref[...] = hidden0.reshape(B, S, H)

    # -- cache_mem: mems[l] = hidden entering layer l (already masked) ------------------
    mems_ref[0] = hid_ref[...]

    # -- BERT encoder layer l ------------------------------------------------------------
    h2d = hid_ref[...].reshape(M, H)                           # f32 residual stream
    h_bf = h2d.astype(jnp.bfloat16)

    # fused QKV projection: one (M, H) @ (H, 3H) MXU push
    qkv = (jnp.dot(h_bf, wqkv_ref[0], preferred_element_type=jnp.float32)
           + bqkv_ref[0])                                      # (M, 3H) f32
    q = (qkv[:, 0 * H:1 * H] * scale).reshape(B, S, H).astype(jnp.bfloat16)
    k = qkv[:, 1 * H:2 * H].reshape(B, S, H).astype(jnp.bfloat16)
    v = qkv[:, 2 * H:3 * H].reshape(B, S, H).astype(jnp.bfloat16)

    # hoisted additive attention-mask broadcast (reused by every head)
    mask_bc = jnp.broadcast_to(mask_add_ref[...], (B, S, S))   # (B, S, S) f32

    ctx_heads = []
    for hd in range(num_heads):                                # static, small
        sl = slice(hd * dh, (hd + 1) * dh)
        s_h = jnp.einsum('bqd,bkd->bqk', q[..., sl], k[..., sl],
                         preferred_element_type=jnp.float32) + mask_bc
        p_h = _softmax(s_h)                                    # (B, S, S) f32
        ctx_heads.append(jnp.einsum('bqk,bkd->bqd', p_h.astype(jnp.bfloat16),
                                    v[..., sl], preferred_element_type=jnp.float32))
    ctx = jnp.concatenate(ctx_heads, axis=-1).reshape(M, H)    # (M, H) f32

    attn = (jnp.dot(ctx.astype(jnp.bfloat16), wo_ref[0],
                    preferred_element_type=jnp.float32) + bo_ref[0])
    h1 = _layer_norm(attn + h2d, ln1_g_ref[0], ln1_b_ref[0])

    inter = (jnp.dot(h1.astype(jnp.bfloat16), wff1_ref[0],
                     preferred_element_type=jnp.float32) + bff1_ref[0])
    inter = _gelu_tanh(inter)
    ffn = (jnp.dot(inter.astype(jnp.bfloat16), wff2_ref[0],
                   preferred_element_type=jnp.float32) + bff2_ref[0])
    h2 = _layer_norm(ffn + h1, ln2_g_ref[0], ln2_b_ref[0]) * maskf   # post-layer mask

    hid_ref[...] = h2.reshape(B, S, H)

    @pl.when(l == pl.num_programs(0) - 1)
    def _():
        out_ref[...] = h2.reshape(B, S, H)


def _run_encoder(emb_sum, st_scaled, di_scaled, st_w2, di_w2, w1_bias,
                 eln_g, eln_b, maskf, mask_add, stk, num_heads):
    B, S, H = emb_sum.shape
    L = stk["wqkv"].shape[0]
    NS = st_w2.shape[0]
    ND = di_w2.shape[0]

    def const_spec(shape):
        n = len(shape)
        return pl.BlockSpec(shape, lambda l, _n=n: (0,) * _n)

    def layer_spec(shape):
        n = len(shape)
        return pl.BlockSpec((1,) + tuple(shape[1:]),
                            lambda l, _n=n: (l,) + (0,) * (_n - 1))

    grid_spec = pltpu.PrefetchScalarGridSpec(
        num_scalar_prefetch=0,
        grid=(L,),
        in_specs=[
            const_spec((B, S, H)),      # emb_sum
            const_spec((B, S, NS)),     # stance logits / tau
            const_spec((B, S, ND)),     # disco logits / tau
            const_spec((NS, H)),        # stance_w2
            const_spec((ND, H)),        # disco_w2
            const_spec((1, H)),         # stance_w1[0] + disco_w1[0]
            const_spec((1, H)),         # emb LN gamma
            const_spec((1, H)),         # emb LN beta
            const_spec((B, S, 1)),      # multiplicative zero mask
            const_spec((B, 1, S)),      # additive attention mask
            layer_spec(stk["wqkv"].shape), layer_spec(stk["bqkv"].shape),
            layer_spec(stk["wo"].shape),   layer_spec(stk["bo"].shape),
            layer_spec(stk["ln1_g"].shape), layer_spec(stk["ln1_b"].shape),
            layer_spec(stk["wff1"].shape), layer_spec(stk["bff1"].shape),
            layer_spec(stk["wff2"].shape), layer_spec(stk["bff2"].shape),
            layer_spec(stk["ln2_g"].shape), layer_spec(stk["ln2_b"].shape),
        ],
        out_specs=[
            pl.BlockSpec((1, B, S, H), lambda l: (l, 0, 0, 0)),   # stacked mems
            pl.BlockSpec((B, S, H), lambda l: (0, 0, 0)),         # final hidden (resident)
        ],
        scratch_shapes=[pltpu.VMEM((B, S, H), jnp.float32)],      # hidden, lives across layers
    )
    mems, out = pl.pallas_call(
        functools.partial(_encoder_kernel, num_heads),
        out_shape=(jax.ShapeDtypeStruct((L, B, S, H), jnp.float32),
                   jax.ShapeDtypeStruct((B, S, H), jnp.float32)),
        grid_spec=grid_spec,
        compiler_params=pltpu.CompilerParams(
            dimension_semantics=("arbitrary",),          # layer axis carries the scratch
            vmem_limit_bytes=32 * 1024 * 1024),
    )(emb_sum, st_scaled, di_scaled, st_w2, di_w2, w1_bias, eln_g, eln_b,
      maskf, mask_add,
      stk["wqkv"], stk["bqkv"], stk["wo"], stk["bo"], stk["ln1_g"], stk["ln1_b"],
      stk["wff1"], stk["bff1"], stk["wff2"], stk["bff2"], stk["ln2_g"], stk["ln2_b"])
    return out, mems


# ---------------------------------------------------------------------------
# weight stacking (per-layer dicts -> (L, ...) arrays; matmul operands in bf16)
# ---------------------------------------------------------------------------
def _stack_layers(layers, mm_dtype=jnp.bfloat16):
    H = layers[0]["wq"].shape[0]
    F = layers[0]["w_ff1"].shape[1]

    def stk(fn, dtype):
        return jnp.stack([fn(lw) for lw in layers], axis=0).astype(dtype)

    return dict(
        wqkv=stk(lambda lw: jnp.concatenate([lw["wq"], lw["wk"], lw["wv"]], axis=1), mm_dtype),
        bqkv=stk(lambda lw: jnp.concatenate([lw["bq"], lw["bk"], lw["bv"]]).reshape(1, 3 * H),
                 jnp.float32),
        wo=stk(lambda lw: lw["wo"], mm_dtype),
        bo=stk(lambda lw: lw["bo"].reshape(1, H), jnp.float32),
        ln1_g=stk(lambda lw: lw["ln1_g"].reshape(1, H), jnp.float32),
        ln1_b=stk(lambda lw: lw["ln1_b"].reshape(1, H), jnp.float32),
        wff1=stk(lambda lw: lw["w_ff1"], mm_dtype),
        bff1=stk(lambda lw: lw["b_ff1"].reshape(1, F), jnp.float32),
        wff2=stk(lambda lw: lw["w_ff2"], mm_dtype),
        bff2=stk(lambda lw: lw["b_ff2"].reshape(1, H), jnp.float32),
        ln2_g=stk(lambda lw: lw["ln2_g"].reshape(1, H), jnp.float32),
        ln2_b=stk(lambda lw: lw["ln2_b"].reshape(1, H), jnp.float32),
    )


# ---------------------------------------------------------------------------
# forward (mirrors TransformerEncoder.forward with mems=None, sent_ids=None)
# ---------------------------------------------------------------------------
def transformer_encoder_forward(params, x, mask=None, stance_logit=None,
                                disco_logit=None, type_ids=None, pos_ids=None,
                                mem_len=1024):
    B, S = x.shape
    H = params["word_emb"].shape[-1]
    NS = params["stance_w1"].shape[0]
    ND = params["disco_w1"].shape[0]
    L = len(params["layers"])

    if mask is None:
        mask = jnp.ones_like(x)
    if type_ids is None:
        type_ids = jnp.zeros_like(x)
    if pos_ids is None:
        pos_ids = jnp.broadcast_to(jnp.arange(S, dtype=jnp.int32), (B, S))
    if stance_logit is None:  # dummy logit: INF at index 0 -> one-hot softmax
        stance_logit = jnp.zeros((B, S, NS), jnp.float32).at[..., 0].set(INF)
    if disco_logit is None:
        disco_logit = jnp.zeros((B, S, ND), jnp.float32).at[..., 0].set(INF)

    # glue: embedding-table gathers, tau scaling, mask prep, weight stacking
    emb_sum = (params["word_emb"][x]
               + params["pos_emb"][pos_ids]
               + params["type_emb"][type_ids]).astype(jnp.float32)
    maskb = (mask != 0).astype(jnp.float32)
    maskf = maskb[..., None]                                    # (B, S, 1)
    mask_add = ((1.0 - maskb) * NEG_MASK_FILL)[:, None, :]      # (B, 1, S)
    st_scaled = (stance_logit / params["stance_t"]).astype(jnp.float32)
    di_scaled = (disco_logit / params["disco_t"]).astype(jnp.float32)
    w1_bias = (params["stance_w1"][0:1] + params["disco_w1"][0:1]).astype(jnp.float32)
    stk = _stack_layers(params["layers"])

    out, mems = _run_encoder(
        emb_sum, st_scaled, di_scaled,
        params["stance_w2"].astype(jnp.float32), params["disco_w2"].astype(jnp.float32),
        w1_bias,
        params["emb_ln_g"].reshape(1, H), params["emb_ln_b"].reshape(1, H),
        maskf, mask_add, stk, params["num_heads"])

    new_mems = tuple(mems[i][:, -mem_len:] for i in range(L))   # cache_mem (prev_mem is None)
    return out, new_mems


# ---------------------------------------------------------------------------
# pure-JAX f32 reference (for validation only)
# ---------------------------------------------------------------------------
def _forward_reference(params, x, mask, stance_logit, disco_logit, type_ids, pos_ids):
    B, S = x.shape
    H = params["word_emb"].shape[-1]
    nh = params["num_heads"]
    dh = H // nh

    emb = (params["word_emb"][x] + params["pos_emb"][pos_ids]
           + params["type_emb"][type_ids]).astype(jnp.float32)
    maskb = (mask != 0).astype(jnp.float32)
    maskf = maskb[..., None]
    mask_add = ((1.0 - maskb) * NEG_MASK_FILL)[:, None, None, :]

    word = _layer_norm(emb, params["emb_ln_g"], params["emb_ln_b"])
    st_w = jax.nn.softmax(stance_logit / params["stance_t"], axis=-1)
    di_w = jax.nn.softmax(disco_logit / params["disco_t"], axis=-1)
    ds = (params["stance_w1"][0] + params["disco_w1"][0]
          + st_w @ params["stance_w2"] + di_w @ params["disco_w2"])
    hidden = (word + ds) * maskf

    for lw in params["layers"]:
        h = hidden
        q = h @ lw["wq"] + lw["bq"]
        k = h @ lw["wk"] + lw["bk"]
        v = h @ lw["wv"] + lw["bv"]
        qh = q.reshape(B, S, nh, dh).transpose(0, 2, 1, 3)
        kh = k.reshape(B, S, nh, dh).transpose(0, 2, 1, 3)
        vh = v.reshape(B, S, nh, dh).transpose(0, 2, 1, 3)
        scores = qh @ kh.transpose(0, 1, 3, 2) / math.sqrt(dh) + mask_add
        probs = jax.nn.softmax(scores, axis=-1)
        ctx = (probs @ vh).transpose(0, 2, 1, 3).reshape(B, S, H)
        attn = ctx @ lw["wo"] + lw["bo"]
        h1 = _layer_norm(attn + h, lw["ln1_g"], lw["ln1_b"])
        inter = _gelu_tanh(h1 @ lw["w_ff1"] + lw["b_ff1"])
        ffn = inter @ lw["w_ff2"] + lw["b_ff2"]
        hidden = _layer_norm(ffn + h1, lw["ln2_g"], lw["ln2_b"]) * maskf
    return hidden


# ---------------------------------------------------------------------------
# deterministic parameter construction
# ---------------------------------------------------------------------------
def init_params(key, vocab=50, max_pos=64, n_types=2, H=128, F=512, n_layers=2,
                n_heads=2, n_stances=4, n_discos=5, init_tau=1.0):
    keys = iter(jax.random.split(key, 128))

    def normal(shape, std=0.02):
        return (std * jax.random.normal(next(keys), shape)).astype(jnp.float32)

    params = dict(
        num_heads=n_heads,
        word_emb=normal((vocab, H)),
        pos_emb=normal((max_pos, H)),
        type_emb=normal((n_types, H)),
        emb_ln_g=jnp.ones((H,), jnp.float32),
        emb_ln_b=jnp.zeros((H,), jnp.float32),
        stance_t=jnp.full((1,), init_tau, jnp.float32),
        disco_t=jnp.full((1,), init_tau, jnp.float32),
        stance_w1=normal((n_stances, H), 0.01).at[0].set(0.0),
        stance_w2=normal((n_stances, H), 0.01).at[0].set(0.0),
        disco_w1=normal((n_discos, H), 0.01).at[0].set(0.0),
        disco_w2=normal((n_discos, H), 0.01).at[0].set(0.0),
        layers=[],
    )
    for _ in range(n_layers):
        params["layers"].append(dict(
            wq=normal((H, H)), bq=jnp.zeros((H,), jnp.float32),
            wk=normal((H, H)), bk=jnp.zeros((H,), jnp.float32),
            wv=normal((H, H)), bv=jnp.zeros((H,), jnp.float32),
            wo=normal((H, H)), bo=jnp.zeros((H,), jnp.float32),
            ln1_g=jnp.ones((H,), jnp.float32), ln1_b=jnp.zeros((H,), jnp.float32),
            w_ff1=normal((H, F)), b_ff1=jnp.zeros((F,), jnp.float32),
            w_ff2=normal((F, H)), b_ff2=jnp.zeros((H,), jnp.float32),
            ln2_g=jnp.ones((H,), jnp.float32), ln2_b=jnp.zeros((H,), jnp.float32),
        ))
    return params


if __name__ == "__main__":
    B, S, H = 2, 8, 128
    NS, ND = 4, 5
    L = 2

    key = jax.random.PRNGKey(0)
    k_param, k_x, k_st, k_di = jax.random.split(key, 4)

    params = init_params(k_param, H=H, F=4 * H, n_layers=L, n_heads=2,
                         n_stances=NS, n_discos=ND)

    x = jax.random.randint(k_x, (B, S), 0, 50, dtype=jnp.int32)
    mask = jnp.ones((B, S), jnp.int32).at[1, S - 1].set(0)     # one padded token
    stance_logit = jax.random.normal(k_st, (B, S, NS), jnp.float32)
    disco_logit = jax.random.normal(k_di, (B, S, ND), jnp.float32)
    type_ids = jnp.zeros((B, S), jnp.int32)
    pos_ids = jnp.broadcast_to(jnp.arange(S, dtype=jnp.int32), (B, S))

    out, new_mems = transformer_encoder_forward(
        params, x, mask=mask, stance_logit=stance_logit, disco_logit=disco_logit,
        type_ids=type_ids, pos_ids=pos_ids)
    out = jax.block_until_ready(out)

    assert out.shape == (B, S, H) and out.dtype == jnp.float32
    assert len(new_mems) == L
    assert all(m.shape == (B, S, H) for m in new_mems)
    assert bool(jnp.all(jnp.isfinite(out)))

    # loose check against a pure-JAX f32 reference (kernel uses bf16 matmul operands
    # and approx reciprocal, so tolerances are generous)
    ref = _forward_reference(params, x, mask, stance_logit, disco_logit, type_ids, pos_ids)
    assert bool(jnp.allclose(out, ref, atol=5e-2, rtol=5e-2))

    print("KERNEL_OK")
</pallas_src>

<mosaic_0001>
module attributes {stable_mosaic.version = 11 : i64} {
  func.func @_encoder_kernel(%arg0: i32, %arg1: memref<2x8x128xf32, #tpu.memory_space<vmem>>, %arg2: memref<2x8x4xf32, #tpu.memory_space<vmem>>, %arg3: memref<2x8x5xf32, #tpu.memory_space<vmem>>, %arg4: memref<4x128xf32, #tpu.memory_space<vmem>>, %arg5: memref<5x128xf32, #tpu.memory_space<vmem>>, %arg6: memref<1x128xf32, #tpu.memory_space<vmem>>, %arg7: memref<1x128xf32, #tpu.memory_space<vmem>>, %arg8: memref<1x128xf32, #tpu.memory_space<vmem>>, %arg9: memref<2x8x1xf32, #tpu.memory_space<vmem>>, %arg10: memref<2x1x8xf32, #tpu.memory_space<vmem>>, %arg11: memref<1x128x384xbf16, #tpu.memory_space<vmem>>, %arg12: memref<1x1x384xf32, #tpu.memory_space<vmem>>, %arg13: memref<1x128x128xbf16, #tpu.memory_space<vmem>>, %arg14: memref<1x1x128xf32, #tpu.memory_space<vmem>>, %arg15: memref<1x1x128xf32, #tpu.memory_space<vmem>>, %arg16: memref<1x1x128xf32, #tpu.memory_space<vmem>>, %arg17: memref<1x128x512xbf16, #tpu.memory_space<vmem>>, %arg18: memref<1x1x512xf32, #tpu.memory_space<vmem>>, %arg19: memref<1x512x128xbf16, #tpu.memory_space<vmem>>, %arg20: memref<1x1x128xf32, #tpu.memory_space<vmem>>, %arg21: memref<1x1x128xf32, #tpu.memory_space<vmem>>, %arg22: memref<1x1x128xf32, #tpu.memory_space<vmem>>, %arg23: memref<1x2x8x128xf32, #tpu.memory_space<vmem>>, %arg24: memref<2x8x128xf32, #tpu.memory_space<vmem>>, %arg25: memref<2x8x128xf32, #tpu.memory_space<vmem>>) attributes {dimension_semantics = [#tpu.dimension_semantics<arbitrary>], iteration_bounds = array<i64: 2>, scalar_prefetch = 0 : i64, scratch_operands = 1 : i64, tpu.core_type = #tpu.core_type<tc>, window_params = [{pipeline_mode = #tpu.pipeline_mode<synchronous>, transform_indices = @transform_0, window_bounds = array<i64: 2, 8, 128>}, {pipeline_mode = #tpu.pipeline_mode<synchronous>, transform_indices = @transform_1, window_bounds = array<i64: 2, 8, 4>}, {pipeline_mode = #tpu.pipeline_mode<synchronous>, transform_indices = @transform_2, window_bounds = array<i64: 2, 8, 5>}, {pipeline_mode = #tpu.pipeline_mode<synchronous>, transform_indices = @transform_3, window_bounds = array<i64: 4, 128>}, {pipeline_mode = #tpu.pipeline_mode<synchronous>, transform_indices = @transform_4, window_bounds = array<i64: 5, 128>}, {pipeline_mode = #tpu.pipeline_mode<synchronous>, transform_indices = @transform_5, window_bounds = array<i64: 1, 128>}, {pipeline_mode = #tpu.pipeline_mode<synchronous>, transform_indices = @transform_6, window_bounds = array<i64: 1, 128>}, {pipeline_mode = #tpu.pipeline_mode<synchronous>, transform_indices = @transform_7, window_bounds = array<i64: 1, 128>}, {pipeline_mode = #tpu.pipeline_mode<synchronous>, transform_indices = @transform_8, window_bounds = array<i64: 2, 8, 1>}, {pipeline_mode = #tpu.pipeline_mode<synchronous>, transform_indices = @transform_9, window_bounds = array<i64: 2, 1, 8>}, {transform_indices = @transform_10, window_bounds = array<i64: 1, 128, 384>}, {transform_indices = @transform_11, window_bounds = array<i64: 1, 1, 384>}, {transform_indices = @transform_12, window_bounds = array<i64: 1, 128, 128>}, {transform_indices = @transform_13, window_bounds = array<i64: 1, 1, 128>}, {transform_indices = @transform_14, window_bounds = array<i64: 1, 1, 128>}, {transform_indices = @transform_15, window_bounds = array<i64: 1, 1, 128>}, {transform_indices = @transform_16, window_bounds = array<i64: 1, 128, 512>}, {transform_indices = @transform_17, window_bounds = array<i64: 1, 1, 512>}, {transform_indices = @transform_18, window_bounds = array<i64: 1, 512, 128>}, {transform_indices = @transform_19, window_bounds = array<i64: 1, 1, 128>}, {transform_indices = @transform_20, window_bounds = array<i64: 1, 1, 128>}, {transform_indices = @transform_21, window_bounds = array<i64: 1, 1, 128>}, {transform_indices = @transform_22, window_bounds = array<i64: 1, 2, 8, 128>}, {pipeline_mode = #tpu.pipeline_mode<synchronous>, transform_indices = @transform_23, window_bounds = array<i64: 2, 8, 128>}]} {
    %c0 = arith.constant 0 : index
    %c0_0 = arith.constant 0 : index
    %c0_1 = arith.constant 0 : index
    %0 = vector.load %arg9[%c0, %c0_0, %c0_1] : memref<2x8x1xf32, #tpu.memory_space<vmem>>, vector<2x8x1xf32>
    %1 = vector.shape_cast %0 : vector<2x8x1xf32> to vector<16x1xf32>
    %c0_i32 = arith.constant 0 : i32
    %2 = arith.cmpi eq, %arg0, %c0_i32 : i32
    %3 = arith.extui %2 : i1 to i32
    %c0_i32_2 = arith.constant 0 : i32
    %4 = arith.cmpi ne, %3, %c0_i32_2 : i32
    scf.if %4 {
      %c0_82 = arith.constant 0 : index
      %c0_83 = arith.constant 0 : index
      %c0_84 = arith.constant 0 : index
      %167 = vector.load %arg1[%c0_82, %c0_83, %c0_84] : memref<2x8x128xf32, #tpu.memory_space<vmem>>, vector<2x8x128xf32>
      %168 = vector.shape_cast %167 : vector<2x8x128xf32> to vector<16x128xf32>
      %c0_85 = arith.constant 0 : index
      %c0_86 = arith.constant 0 : index
      %169 = vector.load %arg7[%c0_85, %c0_86] : memref<1x128xf32, #tpu.memory_space<vmem>>, vector<1x128xf32>
      %c0_87 = arith.constant 0 : index
      %c0_88 = arith.constant 0 : index
      %170 = vector.load %arg8[%c0_87, %c0_88] : memref<1x128xf32, #tpu.memory_space<vmem>>, vector<1x128xf32>
      %cst_89 = arith.constant dense<0.000000e+00> : vector<16xf32>
      %171 = vector.multi_reduction <add>, %168, %cst_89 [1] : vector<16x128xf32> to vector<16xf32>
      %172 = vector.shape_cast %171 : vector<16xf32> to vector<16x1xf32>
      %cst_90 = arith.constant 1.280000e+02 : f32
      %173 = vector.broadcast %cst_90 : f32 to vector<16x1xf32>
      %174 = arith.divf %172, %173 : vector<16x1xf32>
      %175 = vector.broadcast %174 : vector<16x1xf32> to vector<16x128xf32>
      %176 = arith.subf %168, %175 : vector<16x128xf32>
      %177 = arith.mulf %176, %176 : vector<16x128xf32>
      %cst_91 = arith.constant dense<0.000000e+00> : vector<16xf32>
      %178 = vector.multi_reduction <add>, %177, %cst_91 [1] : vector<16x128xf32> to vector<16xf32>
      %179 = vector.shape_cast %178 : vector<16xf32> to vector<16x1xf32>
      %cst_92 = arith.constant 1.280000e+02 : f32
      %180 = vector.broadcast %cst_92 : f32 to vector<16x1xf32>
      %181 = arith.divf %179, %180 : vector<16x1xf32>
      %182 = vector.broadcast %174 : vector<16x1xf32> to vector<16x128xf32>
      %183 = arith.subf %168, %182 : vector<16x128xf32>
      %cst_93 = arith.constant 9.99999996E-13 : f32
      %184 = vector.broadcast %cst_93 : f32 to vector<16x1xf32>
      %185 = arith.addf %181, %184 : vector<16x1xf32>
      %186 = math.rsqrt %185 : vector<16x1xf32>
      %187 = vector.broadcast %186 : vector<16x1xf32> to vector<16x128xf32>
      %188 = arith.mulf %183, %187 : vector<16x128xf32>
      %189 = vector.broadcast %169 : vector<1x128xf32> to vector<16x128xf32>
      %190 = arith.mulf %188, %189 : vector<16x128xf32>
      %191 = vector.broadcast %170 : vector<1x128xf32> to vector<16x128xf32>
      %192 = arith.addf %190, %191 : vector<16x128xf32>
      %c0_94 = arith.constant 0 : index
      %c0_95 = arith.constant 0 : index
      %c0_96 = arith.constant 0 : index
      %193 = vector.load %arg2[%c0_94, %c0_95, %c0_96] : memref<2x8x4xf32, #tpu.memory_space<vmem>>, vector<2x8x4xf32>
      %194 = vector.shape_cast %193 : vector<2x8x4xf32> to vector<16x4xf32>
      %cst_97 = arith.constant dense<0xFF800000> : vector<16xf32>
      %195 = vector.multi_reduction <maximumf>, %194, %cst_97 [1] : vector<16x4xf32> to vector<16xf32>
      %196 = vector.shape_cast %195 : vector<16xf32> to vector<16x1xf32>
      %197 = vector.broadcast %196 : vector<16x1xf32> to vector<16x4xf32>
      %198 = arith.subf %194, %197 : vector<16x4xf32>
      %199 = math.exp %198 : vector<16x4xf32>
      %cst_98 = arith.constant dense<0.000000e+00> : vector<16xf32>
      %200 = vector.multi_reduction <add>, %199, %cst_98 [1] : vector<16x4xf32> to vector<16xf32>
      %201 = vector.shape_cast %200 : vector<16xf32> to vector<16x1xf32>
      %202 = tpu.reciprocal %201 {approx = true} : vector<16x1xf32> -> vector<16x1xf32>
      %203 = vector.broadcast %202 : vector<16x1xf32> to vector<16x4xf32>
      %204 = arith.mulf %199, %203 : vector<16x4xf32>
      %c0_99 = arith.constant 0 : index
      %c0_100 = arith.constant 0 : index
      %c0_101 = arith.constant 0 : index
      %205 = vector.load %arg3[%c0_99, %c0_100, %c0_101] : memref<2x8x5xf32, #tpu.memory_space<vmem>>, vector<2x8x5xf32>
      %206 = vector.shape_cast %205 : vector<2x8x5xf32> to vector<16x5xf32>
      %cst_102 = arith.constant dense<0xFF800000> : vector<16xf32>
      %207 = vector.multi_reduction <maximumf>, %206, %cst_102 [1] : vector<16x5xf32> to vector<16xf32>
      %208 = vector.shape_cast %207 : vector<16xf32> to vector<16x1xf32>
      %209 = vector.broadcast %208 : vector<16x1xf32> to vector<16x5xf32>
      %210 = arith.subf %206, %209 : vector<16x5xf32>
      %211 = math.exp %210 : vector<16x5xf32>
      %cst_103 = arith.constant dense<0.000000e+00> : vector<16xf32>
      %212 = vector.multi_reduction <add>, %211, %cst_103 [1] : vector<16x5xf32> to vector<16xf32>
      %213 = vector.shape_cast %212 : vector<16xf32> to vector<16x1xf32>
      %214 = tpu.reciprocal %213 {approx = true} : vector<16x1xf32> -> vector<16x1xf32>
      %215 = vector.broadcast %214 : vector<16x1xf32> to vector<16x5xf32>
      %216 = arith.mulf %211, %215 : vector<16x5xf32>
      %c0_104 = arith.constant 0 : index
      %c0_105 = arith.constant 0 : index
      %217 = vector.load %arg4[%c0_104, %c0_105] : memref<4x128xf32, #tpu.memory_space<vmem>>, vector<4x128xf32>
      %cst_106 = arith.constant dense<0.000000e+00> : vector<16x128xf32>
      %218 = tpu.matmul %204, %217, %cst_106 {dimension_numbers = #tpu.dot_dimension_numbers<[1], [0], [0], [1], [0, 0, 1, 1], [], []>} : vector<16x4xf32>, vector<4x128xf32>, vector<16x128xf32> -> vector<16x128xf32>
      %c0_107 = arith.constant 0 : index
      %c0_108 = arith.constant 0 : index
      %219 = vector.load %arg5[%c0_107, %c0_108] : memref<5x128xf32, #tpu.memory_space<vmem>>, vector<5x128xf32>
      %cst_109 = arith.constant dense<0.000000e+00> : vector<16x128xf32>
      %220 = tpu.matmul %216, %219, %cst_109 {dimension_numbers = #tpu.dot_dimension_numbers<[1], [0], [0], [1], [0, 0, 1, 1], [], []>} : vector<16x5xf32>, vector<5x128xf32>, vector<16x128xf32> -> vector<16x128xf32>
      %c0_110 = arith.constant 0 : index
      %c0_111 = arith.constant 0 : index
      %221 = vector.load %arg6[%c0_110, %c0_111] : memref<1x128xf32, #tpu.memory_space<vmem>>, vector<1x128xf32>
      %222 = vector.broadcast %221 : vector<1x128xf32> to vector<16x128xf32>
      %223 = arith.addf %192, %222 : vector<16x128xf32>
      %224 = arith.addf %223, %218 : vector<16x128xf32>
      %225 = arith.addf %224, %220 : vector<16x128xf32>
      %226 = vector.broadcast %1 : vector<16x1xf32> to vector<16x128xf32>
      %227 = arith.mulf %225, %226 : vector<16x128xf32>
      %228 = vector.shape_cast %227 : vector<16x128xf32> to vector<2x8x128xf32>
      %c0_112 = arith.constant 0 : index
      %c0_113 = arith.constant 0 : index
      %c0_114 = arith.constant 0 : index
      %229 = vector.load %arg25[%c0_112, %c0_113, %c0_114] : memref<2x8x128xf32, #tpu.memory_space<vmem>>, vector<2x8x128xf32>
      tpu.vector_store %arg25[%c0_112, %c0_113, %c0_114], %228 {strides = array<i32>} : memref<2x8x128xf32, #tpu.memory_space<vmem>>, vector<2x8x128xf32>,
    } else {
    }
    %c0_3 = arith.constant 0 : index
    %c0_4 = arith.constant 0 : index
    %c0_5 = arith.constant 0 : index
    %5 = vector.load %arg25[%c0_3, %c0_4, %c0_5] : memref<2x8x128xf32, #tpu.memory_space<vmem>>, vector<2x8x128xf32>
    %c0_6 = arith.constant 0 : index
    %c0_7 = arith.constant 0 : index
    %c0_8 = arith.constant 0 : index
    %c0_9 = arith.constant 0 : index
    %6 = vector.load %arg23[%c0_6, %c0_7, %c0_8, %c0_9] : memref<1x2x8x128xf32, #tpu.memory_space<vmem>>, vector<1x2x8x128xf32>
    %7 = vector.shape_cast %6 : vector<1x2x8x128xf32> to vector<2x8x128xf32>
    %8 = vector.shape_cast %5 : vector<2x8x128xf32> to vector<1x2x8x128xf32>
    tpu.vector_store %arg23[%c0_6, %c0_7, %c0_8, %c0_9], %8 {strides = array<i32>} : memref<1x2x8x128xf32, #tpu.memory_space<vmem>>, vector<1x2x8x128xf32>,
    %c0_10 = arith.constant 0 : index
    %c0_11 = arith.constant 0 : index
    %c0_12 = arith.constant 0 : index
    %9 = vector.load %arg25[%c0_10, %c0_11, %c0_12] : memref<2x8x128xf32, #tpu.memory_space<vmem>>, vector<2x8x128xf32>
    %10 = vector.shape_cast %9 : vector<2x8x128xf32> to vector<16x128xf32>
    %11 = arith.truncf %10 : vector<16x128xf32> to vector<16x128xbf16>
    %c0_13 = arith.constant 0 : index
    %c0_14 = arith.constant 0 : index
    %c0_15 = arith.constant 0 : index
    %12 = vector.load %arg11[%c0_13, %c0_14, %c0_15] : memref<1x128x384xbf16, #tpu.memory_space<vmem>>, vector<1x128x384xbf16>
    %13 = vector.shape_cast %12 : vector<1x128x384xbf16> to vector<128x384xbf16>
    %cst = arith.constant dense<0.000000e+00> : vector<16x384xf32>
    %14 = tpu.matmul %11, %13, %cst {dimension_numbers = #tpu.dot_dimension_numbers<[1], [0], [0], [1], [0, 0, 1, 1], [], []>} : vector<16x128xbf16>, vector<128x384xbf16>, vector<16x384xf32> -> vector<16x384xf32>
    %c0_16 = arith.constant 0 : index
    %c0_17 = arith.constant 0 : index
    %c0_18 = arith.constant 0 : index
    %15 = vector.load %arg12[%c0_16, %c0_17, %c0_18] : memref<1x1x384xf32, #tpu.memory_space<vmem>>, vector<1x1x384xf32>
    %16 = vector.shape_cast %15 : vector<1x1x384xf32> to vector<1x384xf32>
    %17 = vector.broadcast %16 : vector<1x384xf32> to vector<16x384xf32>
    %18 = arith.addf %14, %17 : vector<16x384xf32>
    %19 = vector.extract_strided_slice %18 {offsets = [0, 0], sizes = [16, 128], strides = [1, 1]} : vector<16x384xf32> to vector<16x128xf32>
    %cst_19 = arith.constant 1.250000e-01 : f32
    %20 = vector.broadcast %cst_19 : f32 to vector<16x128xf32>
    %21 = arith.mulf %19, %20 : vector<16x128xf32>
    %22 = vector.shape_cast %21 : vector<16x128xf32> to vector<2x8x128xf32>
    %23 = arith.truncf %22 : vector<2x8x128xf32> to vector<2x8x128xbf16>
    %24 = vector.extract_strided_slice %18 {offsets = [0, 128], sizes = [16, 128], strides = [1, 1]} : vector<16x384xf32> to vector<16x128xf32>
    %25 = vector.shape_cast %24 : vector<16x128xf32> to vector<2x8x128xf32>
    %26 = arith.truncf %25 : vector<2x8x128xf32> to vector<2x8x128xbf16>
    %27 = vector.extract_strided_slice %18 {offsets = [0, 256], sizes = [16, 128], strides = [1, 1]} : vector<16x384xf32> to vector<16x128xf32>
    %28 = vector.shape_cast %27 : vector<16x128xf32> to vector<2x8x128xf32>
    %29 = arith.truncf %28 : vector<2x8x128xf32> to vector<2x8x128xbf16>
    %c0_20 = arith.constant 0 : index
    %c0_21 = arith.constant 0 : index
    %c0_22 = arith.constant 0 : index
    %30 = vector.load %arg10[%c0_20, %c0_21, %c0_22] : memref<2x1x8xf32, #tpu.memory_space<vmem>>, vector<2x1x8xf32>
    %31 = vector.shape_cast %30 : vector<2x1x8xf32> to vector<2x1x8xf32>
    %32 = vector.broadcast %31 : vector<2x1x8xf32> to vector<2x8x8xf32>
    %33 = vector.extract_strided_slice %23 {offsets = [0, 0, 0], sizes = [2, 8, 64], strides = [1, 1, 1]} : vector<2x8x128xbf16> to vector<2x8x64xbf16>
    %34 = vector.extract_strided_slice %26 {offsets = [0, 0, 0], sizes = [2, 8, 64], strides = [1, 1, 1]} : vector<2x8x128xbf16> to vector<2x8x64xbf16>
    "tpu.trace_start"() <{level = 10 : i32, message = "bqd,bkd->bqk"}> : () -> ()
    %cst_23 = arith.constant dense<0.000000e+00> : vector<2x8x8xf32>
    %35 = tpu.matmul %33, %34, %cst_23 {dimension_numbers = #tpu.dot_dimension_numbers<[2], [2], [1], [1], [0, 0, 0, 1, 1, 1], [0], [0]>} : vector<2x8x64xbf16>, vector<2x8x64xbf16>, vector<2x8x8xf32> -> vector<2x8x8xf32>
    "tpu.trace_stop"() : () -> ()
    %36 = arith.addf %35, %32 : vector<2x8x8xf32>
    %cst_24 = arith.constant dense<0xFF800000> : vector<2x8xf32>
    %37 = vector.multi_reduction <maximumf>, %36, %cst_24 [2] : vector<2x8x8xf32> to vector<2x8xf32>
    %38 = vector.shape_cast %37 : vector<2x8xf32> to vector<2x8x1xf32>
    %39 = vector.broadcast %38 : vector<2x8x1xf32> to vector<2x8x8xf32>
    %40 = arith.subf %36, %39 : vector<2x8x8xf32>
    %41 = math.exp %40 : vector<2x8x8xf32>
    %cst_25 = arith.constant dense<0.000000e+00> : vector<2x8xf32>
    %42 = vector.multi_reduction <add>, %41, %cst_25 [2] : vector<2x8x8xf32> to vector<2x8xf32>
    %43 = vector.shape_cast %42 : vector<2x8xf32> to vector<2x8x1xf32>
    %44 = tpu.reciprocal %43 {approx = true} : vector<2x8x1xf32> -> vector<2x8x1xf32>
    %45 = vector.broadcast %44 : vector<2x8x1xf32> to vector<2x8x8xf32>
    %46 = arith.mulf %41, %45 : vector<2x8x8xf32>
    %47 = arith.truncf %46 : vector<2x8x8xf32> to vector<2x8x8xbf16>
    %48 = vector.extract_strided_slice %29 {offsets = [0, 0, 0], sizes = [2, 8, 64], strides = [1, 1, 1]} : vector<2x8x128xbf16> to vector<2x8x64xbf16>
    "tpu.trace_start"() <{level = 10 : i32, message = "bqk,bkd->bqd"}> : () -> ()
    %cst_26 = arith.constant dense<0.000000e+00> : vector<2x8x64xf32>
    %49 = tpu.matmul %47, %48, %cst_26 {dimension_numbers = #tpu.dot_dimension_numbers<[2], [1], [1], [2], [0, 0, 0, 1, 1, 2], [0], [0]>} : vector<2x8x8xbf16>, vector<2x8x64xbf16>, vector<2x8x64xf32> -> vector<2x8x64xf32>
    "tpu.trace_stop"() : () -> ()
    %50 = vector.extract_strided_slice %23 {offsets = [0, 0, 64], sizes = [2, 8, 64], strides = [1, 1, 1]} : vector<2x8x128xbf16> to vector<2x8x64xbf16>
    %51 = vector.extract_strided_slice %26 {offsets = [0, 0, 64], sizes = [2, 8, 64], strides = [1, 1, 1]} : vector<2x8x128xbf16> to vector<2x8x64xbf16>
    "tpu.trace_start"() <{level = 10 : i32, message = "bqd,bkd->bqk"}> : () -> ()
    %cst_27 = arith.constant dense<0.000000e+00> : vector<2x8x8xf32>
    %52 = tpu.matmul %50, %51, %cst_27 {dimension_numbers = #tpu.dot_dimension_numbers<[2], [2], [1], [1], [0, 0, 0, 1, 1, 1], [0], [0]>} : vector<2x8x64xbf16>, vector<2x8x64xbf16>, vector<2x8x8xf32> -> vector<2x8x8xf32>
    "tpu.trace_stop"() : () -> ()
    %53 = arith.addf %52, %32 : vector<2x8x8xf32>
    %cst_28 = arith.constant dense<0xFF800000> : vector<2x8xf32>
    %54 = vector.multi_reduction <maximumf>, %53, %cst_28 [2] : vector<2x8x8xf32> to vector<2x8xf32>
    %55 = vector.shape_cast %54 : vector<2x8xf32> to vector<2x8x1xf32>
    %56 = vector.broadcast %55 : vector<2x8x1xf32> to vector<2x8x8xf32>
    %57 = arith.subf %53, %56 : vector<2x8x8xf32>
    %58 = math.exp %57 : vector<2x8x8xf32>
    %cst_29 = arith.constant dense<0.000000e+00> : vector<2x8xf32>
    %59 = vector.multi_reduction <add>, %58, %cst_29 [2] : vector<2x8x8xf32> to vector<2x8xf32>
    %60 = vector.shape_cast %59 : vector<2x8xf32> to vector<2x8x1xf32>
    %61 = tpu.reciprocal %60 {approx = true} : vector<2x8x1xf32> -> vector<2x8x1xf32>
    %62 = vector.broadcast %61 : vector<2x8x1xf32> to vector<2x8x8xf32>
    %63 = arith.mulf %58, %62 : vector<2x8x8xf32>
    %64 = arith.truncf %63 : vector<2x8x8xf32> to vector<2x8x8xbf16>
    %65 = vector.extract_strided_slice %29 {offsets = [0, 0, 64], sizes = [2, 8, 64], strides = [1, 1, 1]} : vector<2x8x128xbf16> to vector<2x8x64xbf16>
    "tpu.trace_start"() <{level = 10 : i32, message = "bqk,bkd->bqd"}> : () -> ()
    %cst_30 = arith.constant dense<0.000000e+00> : vector<2x8x64xf32>
    %66 = tpu.matmul %64, %65, %cst_30 {dimension_numbers = #tpu.dot_dimension_numbers<[2], [1], [1], [2], [0, 0, 0, 1, 1, 2], [0], [0]>} : vector<2x8x8xbf16>, vector<2x8x64xbf16>, vector<2x8x64xf32> -> vector<2x8x64xf32>
    "tpu.trace_stop"() : () -> ()
    %67 = tpu.concatenate %49, %66 in 2 : vector<2x8x64xf32>, vector<2x8x64xf32> -> vector<2x8x128xf32>
    %68 = vector.shape_cast %67 : vector<2x8x128xf32> to vector<16x128xf32>
    %69 = arith.truncf %68 : vector<16x128xf32> to vector<16x128xbf16>
    %c0_31 = arith.constant 0 : index
    %c0_32 = arith.constant 0 : index
    %c0_33 = arith.constant 0 : index
    %70 = vector.load %arg13[%c0_31, %c0_32, %c0_33] : memref<1x128x128xbf16, #tpu.memory_space<vmem>>, vector<1x128x128xbf16>
    %71 = vector.shape_cast %70 : vector<1x128x128xbf16> to vector<128x128xbf16>
    %cst_34 = arith.constant dense<0.000000e+00> : vector<16x128xf32>
    %72 = tpu.matmul %69, %71, %cst_34 {dimension_numbers = #tpu.dot_dimension_numbers<[1], [0], [0], [1], [0, 0, 1, 1], [], []>} : vector<16x128xbf16>, vector<128x128xbf16>, vector<16x128xf32> -> vector<16x128xf32>
    %c0_35 = arith.constant 0 : index
    %c0_36 = arith.constant 0 : index
    %c0_37 = arith.constant 0 : index
    %73 = vector.load %arg14[%c0_35, %c0_36, %c0_37] : memref<1x1x128xf32, #tpu.memory_space<vmem>>, vector<1x1x128xf32>
    %74 = vector.shape_cast %73 : vector<1x1x128xf32> to vector<1x128xf32>
    %75 = vector.broadcast %74 : vector<1x128xf32> to vector<16x128xf32>
    %76 = arith.addf %72, %75 : vector<16x128xf32>
    %77 = arith.addf %76, %10 : vector<16x128xf32>
    %c0_38 = arith.constant 0 : index
    %c0_39 = arith.constant 0 : index
    %c0_40 = arith.constant 0 : index
    %78 = vector.load %arg15[%c0_38, %c0_39, %c0_40] : memref<1x1x128xf32, #tpu.memory_space<vmem>>, vector<1x1x128xf32>
    %79 = vector.shape_cast %78 : vector<1x1x128xf32> to vector<1x128xf32>
    %c0_41 = arith.constant 0 : index
    %c0_42 = arith.constant 0 : index
    %c0_43 = arith.constant 0 : index
    %80 = vector.load %arg16[%c0_41, %c0_42, %c0_43] : memref<1x1x128xf32, #tpu.memory_space<vmem>>, vector<1x1x128xf32>
    %81 = vector.shape_cast %80 : vector<1x1x128xf32> to vector<1x128xf32>
    %cst_44 = arith.constant dense<0.000000e+00> : vector<16xf32>
    %82 = vector.multi_reduction <add>, %77, %cst_44 [1] : vector<16x128xf32> to vector<16xf32>
    %83 = vector.shape_cast %82 : vector<16xf32> to vector<16x1xf32>
    %cst_45 = arith.constant 1.280000e+02 : f32
    %84 = vector.broadcast %cst_45 : f32 to vector<16x1xf32>
    %85 = arith.divf %83, %84 : vector<16x1xf32>
    %86 = vector.broadcast %85 : vector<16x1xf32> to vector<16x128xf32>
    %87 = arith.subf %77, %86 : vector<16x128xf32>
    %88 = arith.mulf %87, %87 : vector<16x128xf32>
    %cst_46 = arith.constant dense<0.000000e+00> : vector<16xf32>
    %89 = vector.multi_reduction <add>, %88, %cst_46 [1] : vector<16x128xf32> to vector<16xf32>
    %90 = vector.shape_cast %89 : vector<16xf32> to vector<16x1xf32>
    %cst_47 = arith.constant 1.280000e+02 : f32
    %91 = vector.broadcast %cst_47 : f32 to vector<16x1xf32>
    %92 = arith.divf %90, %91 : vector<16x1xf32>
    %93 = vector.broadcast %85 : vector<16x1xf32> to vector<16x128xf32>
    %94 = arith.subf %77, %93 : vector<16x128xf32>
    %cst_48 = arith.constant 9.99999996E-13 : f32
    %95 = vector.broadcast %cst_48 : f32 to vector<16x1xf32>
    %96 = arith.addf %92, %95 : vector<16x1xf32>
    %97 = math.rsqrt %96 : vector<16x1xf32>
    %98 = vector.broadcast %97 : vector<16x1xf32> to vector<16x128xf32>
    %99 = arith.mulf %94, %98 : vector<16x128xf32>
    %100 = vector.broadcast %79 : vector<1x128xf32> to vector<16x128xf32>
    %101 = arith.mulf %99, %100 : vector<16x128xf32>
    %102 = vector.broadcast %81 : vector<1x128xf32> to vector<16x128xf32>
    %103 = arith.addf %101, %102 : vector<16x128xf32>
    %104 = arith.truncf %103 : vector<16x128xf32> to vector<16x128xbf16>
    %c0_49 = arith.constant 0 : index
    %c0_50 = arith.constant 0 : index
    %c0_51 = arith.constant 0 : index
    %105 = vector.load %arg17[%c0_49, %c0_50, %c0_51] : memref<1x128x512xbf16, #tpu.memory_space<vmem>>, vector<1x128x512xbf16>
    %106 = vector.shape_cast %105 : vector<1x128x512xbf16> to vector<128x512xbf16>
    %cst_52 = arith.constant dense<0.000000e+00> : vector<16x512xf32>
    %107 = tpu.matmul %104, %106, %cst_52 {dimension_numbers = #tpu.dot_dimension_numbers<[1], [0], [0], [1], [0, 0, 1, 1], [], []>} : vector<16x128xbf16>, vector<128x512xbf16>, vector<16x512xf32> -> vector<16x512xf32>
    %c0_53 = arith.constant 0 : index
    %c0_54 = arith.constant 0 : index
    %c0_55 = arith.constant 0 : index
    %108 = vector.load %arg18[%c0_53, %c0_54, %c0_55] : memref<1x1x512xf32, #tpu.memory_space<vmem>>, vector<1x1x512xf32>
    %109 = vector.shape_cast %108 : vector<1x1x512xf32> to vector<1x512xf32>
    %110 = vector.broadcast %109 : vector<1x512xf32> to vector<16x512xf32>
    %111 = arith.addf %107, %110 : vector<16x512xf32>
    %cst_56 = arith.constant 5.000000e-01 : f32
    %112 = vector.broadcast %cst_56 : f32 to vector<16x512xf32>
    %113 = arith.mulf %112, %111 : vector<16x512xf32>
    %cst_57 = arith.constant 4.471500e-02 : f32
    %114 = vector.broadcast %cst_57 : f32 to vector<16x512xf32>
    %115 = arith.mulf %114, %111 : vector<16x512xf32>
    %116 = arith.mulf %115, %111 : vector<16x512xf32>
    %117 = arith.mulf %116, %111 : vector<16x512xf32>
    %118 = arith.addf %111, %117 : vector<16x512xf32>
    %cst_58 = arith.constant 0.797884583 : f32
    %119 = vector.broadcast %cst_58 : f32 to vector<16x512xf32>
    %120 = arith.mulf %119, %118 : vector<16x512xf32>
    %121 = math.tanh %120 : vector<16x512xf32>
    %cst_59 = arith.constant 1.000000e+00 : f32
    %122 = vector.broadcast %cst_59 : f32 to vector<16x512xf32>
    %123 = arith.addf %122, %121 : vector<16x512xf32>
    %124 = arith.mulf %113, %123 : vector<16x512xf32>
    %125 = arith.truncf %124 : vector<16x512xf32> to vector<16x512xbf16>
    %c0_60 = arith.constant 0 : index
    %c0_61 = arith.constant 0 : index
    %c0_62 = arith.constant 0 : index
    %126 = vector.load %arg19[%c0_60, %c0_61, %c0_62] : memref<1x512x128xbf16, #tpu.memory_space<vmem>>, vector<1x512x128xbf16>
    %127 = vector.shape_cast %126 : vector<1x512x128xbf16> to vector<512x128xbf16>
    %cst_63 = arith.constant dense<0.000000e+00> : vector<16x128xf32>
    %128 = tpu.matmul %125, %127, %cst_63 {dimension_numbers = #tpu.dot_dimension_numbers<[1], [0], [0], [1], [0, 0, 1, 1], [], []>} : vector<16x512xbf16>, vector<512x128xbf16>, vector<16x128xf32> -> vector<16x128xf32>
    %c0_64 = arith.constant 0 : index
    %c0_65 = arith.constant 0 : index
    %c0_66 = arith.constant 0 : index
    %129 = vector.load %arg20[%c0_64, %c0_65, %c0_66] : memref<1x1x128xf32, #tpu.memory_space<vmem>>, vector<1x1x128xf32>
    %130 = vector.shape_cast %129 : vector<1x1x128xf32> to vector<1x128xf32>
    %131 = vector.broadcast %130 : vector<1x128xf32> to vector<16x128xf32>
    %132 = arith.addf %128, %131 : vector<16x128xf32>
    %133 = arith.addf %132, %103 : vector<16x128xf32>
    %c0_67 = arith.constant 0 : index
    %c0_68 = arith.constant 0 : index
    %c0_69 = arith.constant 0 : index
    %134 = vector.load %arg21[%c0_67, %c0_68, %c0_69] : memref<1x1x128xf32, #tpu.memory_space<vmem>>, vector<1x1x128xf32>
    %135 = vector.shape_cast %134 : vector<1x1x128xf32> to vector<1x128xf32>
    %c0_70 = arith.constant 0 : index
    %c0_71 = arith.constant 0 : index
    %c0_72 = arith.constant 0 : index
    %136 = vector.load %arg22[%c0_70, %c0_71, %c0_72] : memref<1x1x128xf32, #tpu.memory_space<vmem>>, vector<1x1x128xf32>
    %137 = vector.shape_cast %136 : vector<1x1x128xf32> to vector<1x128xf32>
    %cst_73 = arith.constant dense<0.000000e+00> : vector<16xf32>
    %138 = vector.multi_reduction <add>, %133, %cst_73 [1] : vector<16x128xf32> to vector<16xf32>
    %139 = vector.shape_cast %138 : vector<16xf32> to vector<16x1xf32>
    %cst_74 = arith.constant 1.280000e+02 : f32
    %140 = vector.broadcast %cst_74 : f32 to vector<16x1xf32>
    %141 = arith.divf %139, %140 : vector<16x1xf32>
    %142 = vector.broadcast %141 : vector<16x1xf32> to vector<16x128xf32>
    %143 = arith.subf %133, %142 : vector<16x128xf32>
    %144 = arith.mulf %143, %143 : vector<16x128xf32>
    %cst_75 = arith.constant dense<0.000000e+00> : vector<16xf32>
    %145 = vector.multi_reduction <add>, %144, %cst_75 [1] : vector<16x128xf32> to vector<16xf32>
    %146 = vector.shape_cast %145 : vector<16xf32> to vector<16x1xf32>
    %cst_76 = arith.constant 1.280000e+02 : f32
    %147 = vector.broadcast %cst_76 : f32 to vector<16x1xf32>
    %148 = arith.divf %146, %147 : vector<16x1xf32>
    %149 = vector.broadcast %141 : vector<16x1xf32> to vector<16x128xf32>
    %150 = arith.subf %133, %149 : vector<16x128xf32>
    %cst_77 = arith.constant 9.99999996E-13 : f32
    %151 = vector.broadcast %cst_77 : f32 to vector<16x1xf32>
    %152 = arith.addf %148, %151 : vector<16x1xf32>
    %153 = math.rsqrt %152 : vector<16x1xf32>
    %154 = vector.broadcast %153 : vector<16x1xf32> to vector<16x128xf32>
    %155 = arith.mulf %150, %154 : vector<16x128xf32>
    %156 = vector.broadcast %135 : vector<1x128xf32> to vector<16x128xf32>
    %157 = arith.mulf %155, %156 : vector<16x128xf32>
    %158 = vector.broadcast %137 : vector<1x128xf32> to vector<16x128xf32>
    %159 = arith.addf %157, %158 : vector<16x128xf32>
    %160 = vector.broadcast %1 : vector<16x1xf32> to vector<16x128xf32>
    %161 = arith.mulf %159, %160 : vector<16x128xf32>
    %162 = vector.shape_cast %161 : vector<16x128xf32> to vector<2x8x128xf32>
    %c0_78 = arith.constant 0 : index
    %c0_79 = arith.constant 0 : index
    %c0_80 = arith.constant 0 : index
    %163 = vector.load %arg25[%c0_78, %c0_79, %c0_80] : memref<2x8x128xf32, #tpu.memory_space<vmem>>, vector<2x8x128xf32>
    tpu.vector_store %arg25[%c0_78, %c0_79, %c0_80], %162 {strides = array<i32>} : memref<2x8x128xf32, #tpu.memory_space<vmem>>, vector<2x8x128xf32>,
    %c1_i32 = arith.constant 1 : i32
    %164 = arith.cmpi eq, %arg0, %c1_i32 : i32
    %165 = arith.extui %164 : i1 to i32
    %c0_i32_81 = arith.constant 0 : i32
    %166 = arith.cmpi ne, %165, %c0_i32_81 : i32
    scf.if %166 {
      %167 = vector.shape_cast %161 : vector<16x128xf32> to vector<2x8x128xf32>
      %c0_82 = arith.constant 0 : index
      %c0_83 = arith.constant 0 : index
      %c0_84 = arith.constant 0 : index
      %168 = vector.load %arg24[%c0_82, %c0_83, %c0_84] : memref<2x8x128xf32, #tpu.memory_space<vmem>>, vector<2x8x128xf32>
      tpu.vector_store %arg24[%c0_82, %c0_83, %c0_84], %167 {strides = array<i32>} : memref<2x8x128xf32, #tpu.memory_space<vmem>>, vector<2x8x128xf32>,
    } else {
    }
    return
  }
  func.func @transform_0(%arg0: i32) -> (i32, i32, i32) {
    %c0_i32 = arith.constant 0 : i32
    %c0_i32_0 = arith.constant 0 : i32
    %c0_i32_1 = arith.constant 0 : i32
    %c0_i32_2 = arith.constant 0 : i32
    return %c0_i32, %c0_i32_0, %c0_i32_1 : i32, i32, i32
  }
  func.func @transform_1(%arg0: i32) -> (i32, i32, i32) {
    %c0_i32 = arith.constant 0 : i32
    %c0_i32_0 = arith.constant 0 : i32
    %c0_i32_1 = arith.constant 0 : i32
    %c0_i32_2 = arith.constant 0 : i32
    return %c0_i32, %c0_i32_0, %c0_i32_1 : i32, i32, i32
  }
  func.func @transform_2(%arg0: i32) -> (i32, i32, i32) {
    %c0_i32 = arith.constant 0 : i32
    %c0_i32_0 = arith.constant 0 : i32
    %c0_i32_1 = arith.constant 0 : i32
    %c0_i32_2 = arith.constant 0 : i32
    return %c0_i32, %c0_i32_0, %c0_i32_1 : i32, i32, i32
  }
  func.func @transform_3(%arg0: i32) -> (i32, i32) {
    %c0_i32 = arith.constant 0 : i32
    %c0_i32_0 = arith.constant 0 : i32
    %c0_i32_1 = arith.constant 0 : i32
    return %c0_i32, %c0_i32_0 : i32, i32
  }
  func.func @transform_4(%arg0: i32) -> (i32, i32) {
    %c0_i32 = arith.constant 0 : i32
    %c0_i32_0 = arith.constant 0 : i32
    %c0_i32_1 = arith.constant 0 : i32
    return %c0_i32, %c0_i32_0 : i32, i32
  }
  func.func @transform_5(%arg0: i32) -> (i32, i32) {
    %c0_i32 = arith.constant 0 : i32
    %c0_i32_0 = arith.constant 0 : i32
    %c0_i32_1 = arith.constant 0 : i32
    return %c0_i32, %c0_i32_0 : i32, i32
  }
  func.func @transform_6(%arg0: i32) -> (i32, i32) {
    %c0_i32 = arith.constant 0 : i32
    %c0_i32_0 = arith.constant 0 : i32
    %c0_i32_1 = arith.constant 0 : i32
    return %c0_i32, %c0_i32_0 : i32, i32
  }
  func.func @transform_7(%arg0: i32) -> (i32, i32) {
    %c0_i32 = arith.constant 0 : i32
    %c0_i32_0 = arith.constant 0 : i32
    %c0_i32_1 = arith.constant 0 : i32
    return %c0_i32, %c0_i32_0 : i32, i32
  }
  func.func @transform_8(%arg0: i32) -> (i32, i32, i32) {
    %c0_i32 = arith.constant 0 : i32
    %c0_i32_0 = arith.constant 0 : i32
    %c0_i32_1 = arith.constant 0 : i32
    %c0_i32_2 = arith.constant 0 : i32
    return %c0_i32, %c0_i32_0, %c0_i32_1 : i32, i32, i32
  }
  func.func @transform_9(%arg0: i32) -> (i32, i32, i32) {
    %c0_i32 = arith.constant 0 : i32
    %c0_i32_0 = arith.constant 0 : i32
    %c0_i32_1 = arith.constant 0 : i32
    %c0_i32_2 = arith.constant 0 : i32
    return %c0_i32, %c0_i32_0, %c0_i32_1 : i32, i32, i32
  }
  func.func @transform_10(%arg0: i32) -> (i32, i32, i32) {
    %c0_i32 = arith.constant 0 : i32
    %c0_i32_0 = arith.constant 0 : i32
    %c0_i32_1 = arith.constant 0 : i32
    return %arg0, %c0_i32, %c0_i32_0 : i32, i32, i32
  }
  func.func @transform_11(%arg0: i32) -> (i32, i32, i32) {
    %c0_i32 = arith.constant 0 : i32
    %c0_i32_0 = arith.constant 0 : i32
    %c0_i32_1 = arith.constant 0 : i32
    return %arg0, %c0_i32, %c0_i32_0 : i32, i32, i32
  }
  func.func @transform_12(%arg0: i32) -> (i32, i32, i32) {
    %c0_i32 = arith.constant 0 : i32
    %c0_i32_0 = arith.constant 0 : i32
    %c0_i32_1 = arith.constant 0 : i32
    return %arg0, %c0_i32, %c0_i32_0 : i32, i32, i32
  }
  func.func @transform_13(%arg0: i32) -> (i32, i32, i32) {
    %c0_i32 = arith.constant 0 : i32
    %c0_i32_0 = arith.constant 0 : i32
    %c0_i32_1 = arith.constant 0 : i32
    return %arg0, %c0_i32, %c0_i32_0 : i32, i32, i32
  }
  func.func @transform_14(%arg0: i32) -> (i32, i32, i32) {
    %c0_i32 = arith.constant 0 : i32
    %c0_i32_0 = arith.constant 0 : i32
    %c0_i32_1 = arith.constant 0 : i32
    return %arg0, %c0_i32, %c0_i32_0 : i32, i32, i32
  }
  func.func @transform_15(%arg0: i32) -> (i32, i32, i32) {
    %c0_i32 = arith.constant 0 : i32
    %c0_i32_0 = arith.constant 0 : i32
    %c0_i32_1 = arith.constant 0 : i32
    return %arg0, %c0_i32, %c0_i32_0 : i32, i32, i32
  }
  func.func @transform_16(%arg0: i32) -> (i32, i32, i32) {
    %c0_i32 = arith.constant 0 : i32
    %c0_i32_0 = arith.constant 0 : i32
    %c0_i32_1 = arith.constant 0 : i32
    return %arg0, %c0_i32, %c0_i32_0 : i32, i32, i32
  }
  func.func @transform_17(%arg0: i32) -> (i32, i32, i32) {
    %c0_i32 = arith.constant 0 : i32
    %c0_i32_0 = arith.constant 0 : i32
    %c0_i32_1 = arith.constant 0 : i32
    return %arg0, %c0_i32, %c0_i32_0 : i32, i32, i32
  }
  func.func @transform_18(%arg0: i32) -> (i32, i32, i32) {
    %c0_i32 = arith.constant 0 : i32
    %c0_i32_0 = arith.constant 0 : i32
    %c0_i32_1 = arith.constant 0 : i32
    return %arg0, %c0_i32, %c0_i32_0 : i32, i32, i32
  }
  func.func @transform_19(%arg0: i32) -> (i32, i32, i32) {
    %c0_i32 = arith.constant 0 : i32
    %c0_i32_0 = arith.constant 0 : i32
    %c0_i32_1 = arith.constant 0 : i32
    return %arg0, %c0_i32, %c0_i32_0 : i32, i32, i32
  }
  func.func @transform_20(%arg0: i32) -> (i32, i32, i32) {
    %c0_i32 = arith.constant 0 : i32
    %c0_i32_0 = arith.constant 0 : i32
    %c0_i32_1 = arith.constant 0 : i32
    return %arg0, %c0_i32, %c0_i32_0 : i32, i32, i32
  }
  func.func @transform_21(%arg0: i32) -> (i32, i32, i32) {
    %c0_i32 = arith.constant 0 : i32
    %c0_i32_0 = arith.constant 0 : i32
    %c0_i32_1 = arith.constant 0 : i32
    return %arg0, %c0_i32, %c0_i32_0 : i32, i32, i32
  }
  func.func @transform_22(%arg0: i32) -> (i32, i32, i32, i32) {
    %c0_i32 = arith.constant 0 : i32
    %c0_i32_0 = arith.constant 0 : i32
    %c0_i32_1 = arith.constant 0 : i32
    %c0_i32_2 = arith.constant 0 : i32
    return %arg0, %c0_i32, %c0_i32_0, %c0_i32_1 : i32, i32, i32, i32
  }
  func.func @transform_23(%arg0: i32) -> (i32, i32, i32) {
    %c0_i32 = arith.constant 0 : i32
    %c0_i32_0 = arith.constant 0 : i32
    %c0_i32_1 = arith.constant 0 : i32
    %c0_i32_2 = arith.constant 0 : i32
    return %c0_i32, %c0_i32_0, %c0_i32_1 : i32, i32, i32
  }
}

</mosaic_0001>

<llo_original>
// kernel: tpu_custom_call.1
$region0: #{tpu_custom_call.1}
  #allocation0 [shape = 'u32[]', space=smem, size = 0x4, offset = 0x4, fixed_abs, tag = 'smem constant byte address 0x4 - core index']
  #allocation1 [shape = 'u32[144,128]{1,0:T(1,128)}', space=vmem, size = 0x12000, scoped, tag = 'internal scratch']
  #allocation2 [shape = 'f32[2,8,128]{2,1,0:T(8,128)}', space=vmem, size = 0x2000, scoped, tag = 'scratch operand']
  %s0 = inlined_call_operand.vmem [shape: f32[2,8,128], index: 0, kind: input, shape index: {}]
  %s1 = inlined_call_operand.vmem [shape: f32[2,8,4], index: 1, kind: input, shape index: {}]
  %s2 = inlined_call_operand.vmem [shape: f32[2,8,5], index: 2, kind: input, shape index: {}]
  %s3 = inlined_call_operand.vmem [shape: f32[4,128], index: 3, kind: input, shape index: {}]
  %s4 = inlined_call_operand.vmem [shape: f32[5,128], index: 4, kind: input, shape index: {}]
  %s5 = inlined_call_operand.vmem [shape: f32[1,128], index: 5, kind: input, shape index: {}]
  %s6 = inlined_call_operand.vmem [shape: f32[1,128], index: 6, kind: input, shape index: {}]
  %s7 = inlined_call_operand.vmem [shape: f32[1,128], index: 7, kind: input, shape index: {}]
  %s8 = inlined_call_operand.vmem [shape: f32[2,8,1], index: 8, kind: input, shape index: {}]
  %s9 = inlined_call_operand.vmem [shape: f32[2,1,8], index: 9, kind: input, shape index: {}]
  %s10 = inlined_call_operand.hbm [shape: bf16[2,128,384], index: 10, kind: input, shape index: {}]
  %s11 = inlined_call_operand.vmem [shape: f32[2,1,384], index: 11, kind: input, shape index: {}]
  %s12 = inlined_call_operand.hbm [shape: bf16[2,128,128], index: 12, kind: input, shape index: {}]
  %s13 = inlined_call_operand.vmem [shape: f32[2,1,128], index: 13, kind: input, shape index: {}]
  %s14 = inlined_call_operand.vmem [shape: f32[2,1,128], index: 14, kind: input, shape index: {}]
  %s15 = inlined_call_operand.vmem [shape: f32[2,1,128], index: 15, kind: input, shape index: {}]
  %s16 = inlined_call_operand.hbm [shape: bf16[2,128,512], index: 16, kind: input, shape index: {}]
  %s17 = inlined_call_operand.vmem [shape: f32[2,1,512], index: 17, kind: input, shape index: {}]
  %s18 = inlined_call_operand.hbm [shape: bf16[2,512,128], index: 18, kind: input, shape index: {}]
  %s19 = inlined_call_operand.vmem [shape: f32[2,1,128], index: 19, kind: input, shape index: {}]
  %s20 = inlined_call_operand.vmem [shape: f32[2,1,128], index: 20, kind: input, shape index: {}]
  %s21 = inlined_call_operand.vmem [shape: f32[2,1,128], index: 21, kind: input, shape index: {}]
  %s22 = inlined_call_operand.hbm [shape: f32[2,2,8,128], index: 22, kind: output, shape index: {0}]
  %s23 = inlined_call_operand.hbm [shape: f32[2,8,128], index: 23, kind: output, shape index: {1}]
  %24 = xla_tuple %s22, %s23
  %s25 = sld [smem:[#allocation0]]
  $region153: #{tpu_custom_call.1} parent=0
    _
  %s27 = ssub.s32 1, %s25
  %s28 = scalar_select 0, %s27, %s25
  $region1: #{tpu_custom_call.1} parent=0
    #allocation3 [shape = 'u8[196608]{0}', space=vmem, size = 0x30000, scoped, tag = 'input window, operand 10']
    #allocation4 [shape = 's32[2]{0}', space=sflag, size = 0x8, scoped, tag = 'scoped memory for tpu_custom_call.1']
    #allocation5 [shape = 's32[2]{0}', space=sflag, size = 0x8, scoped, tag = 'scoped memory for tpu_custom_call.1']
    #allocation6 [shape = 'u8[65536]{0}', space=vmem, size = 0x10000, scoped, tag = 'input window, operand 12']
    #allocation7 [shape = 's32[2]{0}', space=sflag, size = 0x8, scoped, tag = 'scoped memory for tpu_custom_call.1']
    #allocation8 [shape = 'u8[262144]{0}', space=vmem, size = 0x40000, scoped, tag = 'input window, operand 16']
    #allocation9 [shape = 'u8[262144]{0}', space=vmem, size = 0x40000, scoped, tag = 'input window, operand 18']
    #allocation10 [shape = 's32[2]{0}', space=sflag, size = 0x8, scoped, tag = 'scoped memory for tpu_custom_call.1']
    #allocation11 [shape = 'u8[16384]{0}', space=vmem, size = 0x4000, scoped, tag = 'output window, operand 0']
    #allocation12 [shape = 'u8[8192]{0}', space=vmem, size = 0x2000, scoped, tag = 'output window, operand 1, single buffered']
    #allocation13 [shape = 's32[1]{0}', space=sflag, size = 0x4, scoped, tag = 'scoped memory for tpu_custom_call.1']
    %29 = vsyncpa [#allocation4], 0
    %s30 = scalar_lea.sflag [#allocation4], 1
    %31 = vsyncpa %s30, 0
    %32 = vsyncpa [#allocation7], 0
    %s33 = scalar_lea.sflag [#allocation7], 1
    %34 = vsyncpa %s33, 0
    %35 = vsyncpa [#allocation10], 0
    %s36 = scalar_lea.sflag [#allocation10], 1
    %37 = vsyncpa %s36, 0
    %38 = vsyncpa [#allocation5], 0
    %s39 = scalar_lea.sflag [#allocation5], 1
    %40 = vsyncpa %s39, 0
    %41 = vsyncpa [#allocation13], 0
    loop: start=0, step=1, limit=4
    $region2: #{tpu_custom_call.1} parent=1 // loop_pre_header
      _
    $region3: #{tpu_custom_call.1} parent=1 // loop_header
      %s43 = sphi 0, %s47
      %p44 = scmp.ge.s32.totalorder %s43, 4
      %s51 = sphi 0, %s51
      %s53 = sphi 0, %s51
      %s54 = sphi 0, %s53
      %s68 = sphi 0, %s54
      %s72 = sphi 0, %s72
      %s74 = sphi 0, %s72
      %s75 = sphi 0, %s74
      %s89 = sphi 0, %s75
      %s93 = sphi 0, %s93
      %s95 = sphi 0, %s93
      %s96 = sphi 0, %s95
      %s110 = sphi 0, %s96
      %s114 = sphi 0, %s114
      %s116 = sphi 0, %s114
      %s117 = sphi 0, %s116
      %s131 = sphi 0, %s117
      %s135 = sphi 0, %s135
      %s137 = sphi 0, %s135
      %s138 = sphi 0, %s137
      %s152 = sphi 0, %s138
      %s156 = sphi 0, %s156
      %s158 = sphi 0, %s156
      %s159 = sphi 0, %s158
      %s173 = sphi 0, %s159
      %s177 = sphi 0, %s177
      %s179 = sphi 0, %s177
      %s180 = sphi 0, %s179
      %s194 = sphi 0, %s180
      %s198 = sphi 0, %s198
      %s200 = sphi 0, %s198
      %s201 = sphi 0, %s200
      %s215 = sphi 0, %s201
      %s219 = sphi 0, %s219
      %s221 = sphi 0, %s219
      %s222 = sphi 0, %s221
      %s236 = sphi 0, %s222
      %s240 = sphi 0, %s240
      %s242 = sphi 0, %s240
      %s243 = sphi 0, %s242
      %s257 = sphi 0, %s243
      %s263 = sphi 0, %s265
      %s266 = sphi 0, %s263
      %s267 = sphi 0, %s266
      %s283 = sphi 0, %s267
      %s289 = sphi 0, %s291
      %s292 = sphi 0, %s289
      %s293 = sphi 0, %s292
      %s309 = sphi 0, %s293
      %s315 = sphi 0, %s317
      %s318 = sphi 0, %s315
      %s319 = sphi 0, %s318
      %s335 = sphi 0, %s319
      %s341 = sphi 0, %s343
      %s344 = sphi 0, %s341
      %s345 = sphi 0, %s344
      %s361 = sphi 0, %s345
      %s367 = sphi 0, %s369
      %s370 = sphi 0, %s367
      %s371 = sphi 0, %s370
      %s387 = sphi 0, %s371
      %s393 = sphi 0, %s395
      %s396 = sphi 0, %s393
      %s397 = sphi 0, %s396
      %s413 = sphi 0, %s397
      %s419 = sphi 0, %s421
      %s422 = sphi 0, %s419
      %s423 = sphi 0, %s422
      %s439 = sphi 0, %s423
      %s445 = sphi 0, %s447
      %s448 = sphi 0, %s445
      %s449 = sphi 0, %s448
      %s465 = sphi 0, %s449
      %s471 = sphi 0, %s473
      %s474 = sphi 0, %s471
      %s475 = sphi 0, %s474
      %s491 = sphi 0, %s475
      %s497 = sphi 0, %s499
      %s500 = sphi 0, %s497
      %s501 = sphi 0, %s500
      %s517 = sphi 0, %s501
      %s523 = sphi 0, %s525
      %s526 = sphi 0, %s523
      %s527 = sphi 0, %s526
      %s543 = sphi 0, %s527
      %s549 = sphi 0, %s551
      %s552 = sphi 0, %s549
      %s553 = sphi 0, %s552
      %s569 = sphi 0, %s553
      %s575 = sphi 0, %s577
      %s578 = sphi 0, %s575
      %s579 = sphi 0, %s578
      %s595 = sphi 0, %s579
      %s599 = sphi 0, %s599
      %s601 = sphi 0, %s599
      %s602 = sphi 0, %s601
      %s616 = sphi 0, %s602
    $region4: #{tpu_custom_call.1} parent=1 // loop_header_branch
      %46 = sbr.rel (%p44) target = $region8
    $region5: #{tpu_custom_call.1} parent=1 // loop_body
      %s48 = ssub.s32 %s43, 1
      %s49 = ssub.s32 %s43, 2
      %s50 = sadd.s32 %s43, 1
      %s52 = sadd.s32 %s51, 1
      %p55 = scmp.eq.s32.totalorder %s43, 1
      %p56 = scmp.ne.s32.totalorder %s51, %s53
      %p57 = scmp.eq.s32.totalorder %s43, 0
      %p58 = por %p56, %p57
      %p59 = scmp.ne.s32.totalorder %s51, %s53
      %p60 = scmp.eq.s32.totalorder %s48, 1
      %p61 = por %p59, %p60
      %p62 = scmp.ne.s32.totalorder %s53, %s54
      %p63 = scmp.eq.s32.totalorder %s48, 0
      %p64 = por %p62, %p63
      %p65 = scmp.ne.s32.totalorder %s53, %s54
      %p66 = scmp.eq.s32.totalorder %s49, 1
      %p67 = por %p65, %p66
      %p69 = scmp.ne.s32.totalorder %s54, %s68
      %p70 = scmp.eq.s32.totalorder %s49, 0
      %p71 = por %p69, %p70
      %s73 = sadd.s32 %s72, 1
      %p76 = scmp.eq.s32.totalorder %s43, 1
      %p77 = scmp.ne.s32.totalorder %s72, %s74
      %p78 = scmp.eq.s32.totalorder %s43, 0
      %p79 = por %p77, %p78
      %p80 = scmp.ne.s32.totalorder %s72, %s74
      %p81 = scmp.eq.s32.totalorder %s48, 1
      %p82 = por %p80, %p81
      %p83 = scmp.ne.s32.totalorder %s74, %s75
      %p84 = scmp.eq.s32.totalorder %s48, 0
      %p85 = por %p83, %p84
      %p86 = scmp.ne.s32.totalorder %s74, %s75
      %p87 = scmp.eq.s32.totalorder %s49, 1
      %p88 = por %p86, %p87
      %p90 = scmp.ne.s32.totalorder %s75, %s89
      %p91 = scmp.eq.s32.totalorder %s49, 0
      %p92 = por %p90, %p91
      %s94 = sadd.s32 %s93, 1
      %p97 = scmp.eq.s32.totalorder %s43, 1
      %p98 = scmp.ne.s32.totalorder %s93, %s95
      %p99 = scmp.eq.s32.totalorder %s43, 0
      %p100 = por %p98, %p99
      %p101 = scmp.ne.s32.totalorder %s93, %s95
      %p102 = scmp.eq.s32.totalorder %s48, 1
      %p103 = por %p101, %p102
      %p104 = scmp.ne.s32.totalorder %s95, %s96
      %p105 = scmp.eq.s32.totalorder %s48, 0
      %p106 = por %p104, %p105
      %p107 = scmp.ne.s32.totalorder %s95, %s96
      %p108 = scmp.eq.s32.totalorder %s49, 1
      %p109 = por %p107, %p108
      %p111 = scmp.ne.s32.totalorder %s96, %s110
      %p112 = scmp.eq.s32.totalorder %s49, 0
      %p113 = por %p111, %p112
      %s115 = sadd.s32 %s114, 1
      %p118 = scmp.eq.s32.totalorder %s43, 1
      %p119 = scmp.ne.s32.totalorder %s114, %s116
      %p120 = scmp.eq.s32.totalorder %s43, 0
      %p121 = por %p119, %p120
      %p122 = scmp.ne.s32.totalorder %s114, %s116
      %p123 = scmp.eq.s32.totalorder %s48, 1
      %p124 = por %p122, %p123
      %p125 = scmp.ne.s32.totalorder %s116, %s117
      %p126 = scmp.eq.s32.totalorder %s48, 0
      %p127 = por %p125, %p126
      %p128 = scmp.ne.s32.totalorder %s116, %s117
      %p129 = scmp.eq.s32.totalorder %s49, 1
      %p130 = por %p128, %p129
      %p132 = scmp.ne.s32.totalorder %s117, %s131
      %p133 = scmp.eq.s32.totalorder %s49, 0
      %p134 = por %p132, %p133
      %s136 = sadd.s32 %s135, 1
      %p139 = scmp.eq.s32.totalorder %s43, 1
      %p140 = scmp.ne.s32.totalorder %s135, %s137
      %p141 = scmp.eq.s32.totalorder %s43, 0
      %p142 = por %p140, %p141
      %p143 = scmp.ne.s32.totalorder %s135, %s137
      %p144 = scmp.eq.s32.totalorder %s48, 1
      %p145 = por %p143, %p144
      %p146 = scmp.ne.s32.totalorder %s137, %s138
      %p147 = scmp.eq.s32.totalorder %s48, 0
      %p148 = por %p146, %p147
      %p149 = scmp.ne.s32.totalorder %s137, %s138
      %p150 = scmp.eq.s32.totalorder %s49, 1
      %p151 = por %p149, %p150
      %p153 = scmp.ne.s32.totalorder %s138, %s152
      %p154 = scmp.eq.s32.totalorder %s49, 0
      %p155 = por %p153, %p154
      %s157 = sadd.s32 %s156, 1
      %p160 = scmp.eq.s32.totalorder %s43, 1
      %p161 = scmp.ne.s32.totalorder %s156, %s158
      %p162 = scmp.eq.s32.totalorder %s43, 0
      %p163 = por %p161, %p162
      %p164 = scmp.ne.s32.totalorder %s156, %s158
      %p165 = scmp.eq.s32.totalorder %s48, 1
      %p166 = por %p164, %p165
      %p167 = scmp.ne.s32.totalorder %s158, %s159
      %p168 = scmp.eq.s32.totalorder %s48, 0
      %p169 = por %p167, %p168
      %p170 = scmp.ne.s32.totalorder %s158, %s159
      %p171 = scmp.eq.s32.totalorder %s49, 1
      %p172 = por %p170, %p171
      %p174 = scmp.ne.s32.totalorder %s159, %s173
      %p175 = scmp.eq.s32.totalorder %s49, 0
      %p176 = por %p174, %p175
      %s178 = sadd.s32 %s177, 1
      %p181 = scmp.eq.s32.totalorder %s43, 1
      %p182 = scmp.ne.s32.totalorder %s177, %s179
      %p183 = scmp.eq.s32.totalorder %s43, 0
      %p184 = por %p182, %p183
      %p185 = scmp.ne.s32.totalorder %s177, %s179
      %p186 = scmp.eq.s32.totalorder %s48, 1
      %p187 = por %p185, %p186
      %p188 = scmp.ne.s32.totalorder %s179, %s180
      %p189 = scmp.eq.s32.totalorder %s48, 0
      %p190 = por %p188, %p189
      %p191 = scmp.ne.s32.totalorder %s179, %s180
      %p192 = scmp.eq.s32.totalorder %s49, 1
      %p193 = por %p191, %p192
      %p195 = scmp.ne.s32.totalorder %s180, %s194
      %p196 = scmp.eq.s32.totalorder %s49, 0
      %p197 = por %p195, %p196
      %s199 = sadd.s32 %s198, 1
      %p202 = scmp.eq.s32.totalorder %s43, 1
      %p203 = scmp.ne.s32.totalorder %s198, %s200
      %p204 = scmp.eq.s32.totalorder %s43, 0
      %p205 = por %p203, %p204
      %p206 = scmp.ne.s32.totalorder %s198, %s200
      %p207 = scmp.eq.s32.totalorder %s48, 1
      %p208 = por %p206, %p207
      %p209 = scmp.ne.s32.totalorder %s200, %s201
      %p210 = scmp.eq.s32.totalorder %s48, 0
      %p211 = por %p209, %p210
      %p212 = scmp.ne.s32.totalorder %s200, %s201
      %p213 = scmp.eq.s32.totalorder %s49, 1
      %p214 = por %p212, %p213
      %p216 = scmp.ne.s32.totalorder %s201, %s215
      %p217 = scmp.eq.s32.totalorder %s49, 0
      %p218 = por %p216, %p217
      %s220 = sadd.s32 %s219, 1
      %p223 = scmp.eq.s32.totalorder %s43, 1
      %p224 = scmp.ne.s32.totalorder %s219, %s221
      %p225 = scmp.eq.s32.totalorder %s43, 0
      %p226 = por %p224, %p225
      %p227 = scmp.ne.s32.totalorder %s219, %s221
      %p228 = scmp.eq.s32.totalorder %s48, 1
      %p229 = por %p227, %p228
      %p230 = scmp.ne.s32.totalorder %s221, %s222
      %p231 = scmp.eq.s32.totalorder %s48, 0
      %p232 = por %p230, %p231
      %p233 = scmp.ne.s32.totalorder %s221, %s222
      %p234 = scmp.eq.s32.totalorder %s49, 1
      %p235 = por %p233, %p234
      %p237 = scmp.ne.s32.totalorder %s222, %s236
      %p238 = scmp.eq.s32.totalorder %s49, 0
      %p239 = por %p237, %p238
      %s241 = sadd.s32 %s240, 1
      %p244 = scmp.eq.s32.totalorder %s43, 1
      %p245 = scmp.ne.s32.totalorder %s240, %s242
      %p246 = scmp.eq.s32.totalorder %s43, 0
      %p247 = por %p245, %p246
      %p248 = scmp.ne.s32.totalorder %s240, %s242
      %p249 = scmp.eq.s32.totalorder %s48, 1
      %p250 = por %p248, %p249
      %p251 = scmp.ne.s32.totalorder %s242, %s243
      %p252 = scmp.eq.s32.totalorder %s48, 0
      %p253 = por %p251, %p252
      %p254 = scmp.ne.s32.totalorder %s242, %s243
      %p255 = scmp.eq.s32.totalorder %s49, 1
      %p256 = por %p254, %p255
      %p258 = scmp.ne.s32.totalorder %s243, %s257
      %p259 = scmp.eq.s32.totalorder %s49, 0
      %p260 = por %p258, %p259
      %s261 = ssub.s32 %s43, %s50
      %p262 = scmp.eq.s32.totalorder %s261, 0
      %s264 = sadd.s32 %s263, 1
      %s265 = scalar_select %p262, %s263, %s264
      %p268 = pneg %p262
      %p269 = scmp.eq.s32.totalorder %s43, 1
      %p270 = por %p268, %p269
      %p271 = scmp.ne.s32.totalorder %s263, %s266
      %p272 = scmp.eq.s32.totalorder %s43, 0
      %p273 = por %p271, %p272
      %p274 = scmp.ne.s32.totalorder %s263, %s266
      %p275 = scmp.eq.s32.totalorder %s48, 1
      %p276 = por %p274, %p275
      %p277 = scmp.ne.s32.totalorder %s266, %s267
      %p278 = scmp.eq.s32.totalorder %s48, 0
      %p279 = por %p277, %p278
      %p280 = scmp.ne.s32.totalorder %s266, %s267
      %p281 = scmp.eq.s32.totalorder %s49, 1
      %p282 = por %p280, %p281
      %p284 = scmp.ne.s32.totalorder %s267, %s283
      %p285 = scmp.eq.s32.totalorder %s49, 0
      %p286 = por %p284, %p285
      %s287 = ssub.s32 %s43, %s50
      %p288 = scmp.eq.s32.totalorder %s287, 0
      %s290 = sadd.s32 %s289, 1
      %s291 = scalar_select %p288, %s289, %s290
      %p294 = pneg %p288
      %p295 = scmp.eq.s32.totalorder %s43, 1
      %p296 = por %p294, %p295
      %p297 = scmp.ne.s32.totalorder %s289, %s292
      %p298 = scmp.eq.s32.totalorder %s43, 0
      %p299 = por %p297, %p298
      %p300 = scmp.ne.s32.totalorder %s289, %s292
      %p301 = scmp.eq.s32.totalorder %s48, 1
      %p302 = por %p300, %p301
      %p303 = scmp.ne.s32.totalorder %s292, %s293
      %p304 = scmp.eq.s32.totalorder %s48, 0
      %p305 = por %p303, %p304
      %p306 = scmp.ne.s32.totalorder %s292, %s293
      %p307 = scmp.eq.s32.totalorder %s49, 1
      %p308 = por %p306, %p307
      %p310 = scmp.ne.s32.totalorder %s293, %s309
      %p311 = scmp.eq.s32.totalorder %s49, 0
      %p312 = por %p310, %p311
      %s313 = ssub.s32 %s43, %s50
      %p314 = scmp.eq.s32.totalorder %s313, 0
      %s316 = sadd.s32 %s315, 1
      %s317 = scalar_select %p314, %s315, %s316
      %p320 = pneg %p314
      %p321 = scmp.eq.s32.totalorder %s43, 1
      %p322 = por %p320, %p321
      %p323 = scmp.ne.s32.totalorder %s315, %s318
      %p324 = scmp.eq.s32.totalorder %s43, 0
      %p325 = por %p323, %p324
      %p326 = scmp.ne.s32.totalorder %s315, %s318
      %p327 = scmp.eq.s32.totalorder %s48, 1
      %p328 = por %p326, %p327
      %p329 = scmp.ne.s32.totalorder %s318, %s319
      %p330 = scmp.eq.s32.totalorder %s48, 0
      %p331 = por %p329, %p330
      %p332 = scmp.ne.s32.totalorder %s318, %s319
      %p333 = scmp.eq.s32.totalorder %s49, 1
      %p334 = por %p332, %p333
      %p336 = scmp.ne.s32.totalorder %s319, %s335
      %p337 = scmp.eq.s32.totalorder %s49, 0
      %p338 = por %p336, %p337
      %s339 = ssub.s32 %s43, %s50
      %p340 = scmp.eq.s32.totalorder %s339, 0
      %s342 = sadd.s32 %s341, 1
      %s343 = scalar_select %p340, %s341, %s342
      %p346 = pneg %p340
      %p347 = scmp.eq.s32.totalorder %s43, 1
      %p348 = por %p346, %p347
      %p349 = scmp.ne.s32.totalorder %s341, %s344
      %p350 = scmp.eq.s32.totalorder %s43, 0
      %p351 = por %p349, %p350
      %p352 = scmp.ne.s32.totalorder %s341, %s344
      %p353 = scmp.eq.s32.totalorder %s48, 1
      %p354 = por %p352, %p353
      %p355 = scmp.ne.s32.totalorder %s344, %s345
      %p356 = scmp.eq.s32.totalorder %s48, 0
      %p357 = por %p355, %p356
      %p358 = scmp.ne.s32.totalorder %s344, %s345
      %p359 = scmp.eq.s32.totalorder %s49, 1
      %p360 = por %p358, %p359
      %p362 = scmp.ne.s32.totalorder %s345, %s361
      %p363 = scmp.eq.s32.totalorder %s49, 0
      %p364 = por %p362, %p363
      %s365 = ssub.s32 %s43, %s50
      %p366 = scmp.eq.s32.totalorder %s365, 0
      %s368 = sadd.s32 %s367, 1
      %s369 = scalar_select %p366, %s367, %s368
      %p372 = pneg %p366
      %p373 = scmp.eq.s32.totalorder %s43, 1
      %p374 = por %p372, %p373
      %p375 = scmp.ne.s32.totalorder %s367, %s370
      %p376 = scmp.eq.s32.totalorder %s43, 0
      %p377 = por %p375, %p376
      %p378 = scmp.ne.s32.totalorder %s367, %s370
      %p379 = scmp.eq.s32.totalorder %s48, 1
      %p380 = por %p378, %p379
      %p381 = scmp.ne.s32.totalorder %s370, %s371
      %p382 = scmp.eq.s32.totalorder %s48, 0
      %p383 = por %p381, %p382
      %p384 = scmp.ne.s32.totalorder %s370, %s371
      %p385 = scmp.eq.s32.totalorder %s49, 1
      %p386 = por %p384, %p385
      %p388 = scmp.ne.s32.totalorder %s371, %s387
      %p389 = scmp.eq.s32.totalorder %s49, 0
      %p390 = por %p388, %p389
      %s391 = ssub.s32 %s43, %s50
      %p392 = scmp.eq.s32.totalorder %s391, 0
      %s394 = sadd.s32 %s393, 1
      %s395 = scalar_select %p392, %s393, %s394
      %p398 = pneg %p392
      %p399 = scmp.eq.s32.totalorder %s43, 1
      %p400 = por %p398, %p399
      %p401 = scmp.ne.s32.totalorder %s393, %s396
      %p402 = scmp.eq.s32.totalorder %s43, 0
      %p403 = por %p401, %p402
      %p404 = scmp.ne.s32.totalorder %s393, %s396
      %p405 = scmp.eq.s32.totalorder %s48, 1
      %p406 = por %p404, %p405
      %p407 = scmp.ne.s32.totalorder %s396, %s397
      %p408 = scmp.eq.s32.totalorder %s48, 0
      %p409 = por %p407, %p408
      %p410 = scmp.ne.s32.totalorder %s396, %s397
      %p411 = scmp.eq.s32.totalorder %s49, 1
      %p412 = por %p410, %p411
      %p414 = scmp.ne.s32.totalorder %s397, %s413
      %p415 = scmp.eq.s32.totalorder %s49, 0
      %p416 = por %p414, %p415
      %s417 = ssub.s32 %s43, %s50
      %p418 = scmp.eq.s32.totalorder %s417, 0
      %s420 = sadd.s32 %s419, 1
      %s421 = scalar_select %p418, %s419, %s420
      %p424 = pneg %p418
      %p425 = scmp.eq.s32.totalorder %s43, 1
      %p426 = por %p424, %p425
      %p427 = scmp.ne.s32.totalorder %s419, %s422
      %p428 = scmp.eq.s32.totalorder %s43, 0
      %p429 = por %p427, %p428
      %p430 = scmp.ne.s32.totalorder %s419, %s422
      %p431 = scmp.eq.s32.totalorder %s48, 1
      %p432 = por %p430, %p431
      %p433 = scmp.ne.s32.totalorder %s422, %s423
      %p434 = scmp.eq.s32.totalorder %s48, 0
      %p435 = por %p433, %p434
      %p436 = scmp.ne.s32.totalorder %s422, %s423
      %p437 = scmp.eq.s32.totalorder %s49, 1
      %p438 = por %p436, %p437
      %p440 = scmp.ne.s32.totalorder %s423, %s439
      %p441 = scmp.eq.s32.totalorder %s49, 0
      %p442 = por %p440, %p441
      %s443 = ssub.s32 %s43, %s50
      %p444 = scmp.eq.s32.totalorder %s443, 0
      %s446 = sadd.s32 %s445, 1
      %s447 = scalar_select %p444, %s445, %s446
      %p450 = pneg %p444
      %p451 = scmp.eq.s32.totalorder %s43, 1
      %p452 = por %p450, %p451
      %p453 = scmp.ne.s32.totalorder %s445, %s448
      %p454 = scmp.eq.s32.totalorder %s43, 0
      %p455 = por %p453, %p454
      %p456 = scmp.ne.s32.totalorder %s445, %s448
      %p457 = scmp.eq.s32.totalorder %s48, 1
      %p458 = por %p456, %p457
      %p459 = scmp.ne.s32.totalorder %s448, %s449
      %p460 = scmp.eq.s32.totalorder %s48, 0
      %p461 = por %p459, %p460
      %p462 = scmp.ne.s32.totalorder %s448, %s449
      %p463 = scmp.eq.s32.totalorder %s49, 1
      %p464 = por %p462, %p463
      %p466 = scmp.ne.s32.totalorder %s449, %s465
      %p467 = scmp.eq.s32.totalorder %s49, 0
      %p468 = por %p466, %p467
      %s469 = ssub.s32 %s43, %s50
      %p470 = scmp.eq.s32.totalorder %s469, 0
      %s472 = sadd.s32 %s471, 1
      %s473 = scalar_select %p470, %s471, %s472
      %p476 = pneg %p470
      %p477 = scmp.eq.s32.totalorder %s43, 1
      %p478 = por %p476, %p477
      %p479 = scmp.ne.s32.totalorder %s471, %s474
      %p480 = scmp.eq.s32.totalorder %s43, 0
      %p481 = por %p479, %p480
      %p482 = scmp.ne.s32.totalorder %s471, %s474
      %p483 = scmp.eq.s32.totalorder %s48, 1
      %p484 = por %p482, %p483
      %p485 = scmp.ne.s32.totalorder %s474, %s475
      %p486 = scmp.eq.s32.totalorder %s48, 0
      %p487 = por %p485, %p486
      %p488 = scmp.ne.s32.totalorder %s474, %s475
      %p489 = scmp.eq.s32.totalorder %s49, 1
      %p490 = por %p488, %p489
      %p492 = scmp.ne.s32.totalorder %s475, %s491
      %p493 = scmp.eq.s32.totalorder %s49, 0
      %p494 = por %p492, %p493
      %s495 = ssub.s32 %s43, %s50
      %p496 = scmp.eq.s32.totalorder %s495, 0
      %s498 = sadd.s32 %s497, 1
      %s499 = scalar_select %p496, %s497, %s498
      %p502 = pneg %p496
      %p503 = scmp.eq.s32.totalorder %s43, 1
      %p504 = por %p502, %p503
      %p505 = scmp.ne.s32.totalorder %s497, %s500
      %p506 = scmp.eq.s32.totalorder %s43, 0
      %p507 = por %p505, %p506
      %p508 = scmp.ne.s32.totalorder %s497, %s500
      %p509 = scmp.eq.s32.totalorder %s48, 1
      %p510 = por %p508, %p509
      %p511 = scmp.ne.s32.totalorder %s500, %s501
      %p512 = scmp.eq.s32.totalorder %s48, 0
      %p513 = por %p511, %p512
      %p514 = scmp.ne.s32.totalorder %s500, %s501
      %p515 = scmp.eq.s32.totalorder %s49, 1
      %p516 = por %p514, %p515
      %p518 = scmp.ne.s32.totalorder %s501, %s517
      %p519 = scmp.eq.s32.totalorder %s49, 0
      %p520 = por %p518, %p519
      %s521 = ssub.s32 %s43, %s50
      %p522 = scmp.eq.s32.totalorder %s521, 0
      %s524 = sadd.s32 %s523, 1
      %s525 = scalar_select %p522, %s523, %s524
      %p528 = pneg %p522
      %p529 = scmp.eq.s32.totalorder %s43, 1
      %p530 = por %p528, %p529
      %p531 = scmp.ne.s32.totalorder %s523, %s526
      %p532 = scmp.eq.s32.totalorder %s43, 0
      %p533 = por %p531, %p532
      %p534 = scmp.ne.s32.totalorder %s523, %s526
      %p535 = scmp.eq.s32.totalorder %s48, 1
      %p536 = por %p534, %p535
      %p537 = scmp.ne.s32.totalorder %s526, %s527
      %p538 = scmp.eq.s32.totalorder %s48, 0
      %p539 = por %p537, %p538
      %p540 = scmp.ne.s32.totalorder %s526, %s527
      %p541 = scmp.eq.s32.totalorder %s49, 1
      %p542 = por %p540, %p541
      %p544 = scmp.ne.s32.totalorder %s527, %s543
      %p545 = scmp.eq.s32.totalorder %s49, 0
      %p546 = por %p544, %p545
      %s547 = ssub.s32 %s43, %s50
      %p548 = scmp.eq.s32.totalorder %s547, 0
      %s550 = sadd.s32 %s549, 1
      %s551 = scalar_select %p548, %s549, %s550
      %p554 = pneg %p548
      %p555 = scmp.eq.s32.totalorder %s43, 1
      %p556 = por %p554, %p555
      %p557 = scmp.ne.s32.totalorder %s549, %s552
      %p558 = scmp.eq.s32.totalorder %s43, 0
      %p559 = por %p557, %p558
      %p560 = scmp.ne.s32.totalorder %s549, %s552
      %p561 = scmp.eq.s32.totalorder %s48, 1
      %p562 = por %p560, %p561
      %p563 = scmp.ne.s32.totalorder %s552, %s553
      %p564 = scmp.eq.s32.totalorder %s48, 0
      %p565 = por %p563, %p564
      %p566 = scmp.ne.s32.totalorder %s552, %s553
      %p567 = scmp.eq.s32.totalorder %s49, 1
      %p568 = por %p566, %p567
      %p570 = scmp.ne.s32.totalorder %s553, %s569
      %p571 = scmp.eq.s32.totalorder %s49, 0
      %p572 = por %p570, %p571
      %s573 = ssub.s32 %s43, %s50
      %p574 = scmp.eq.s32.totalorder %s573, 0
      %s576 = sadd.s32 %s575, 1
      %s577 = scalar_select %p574, %s575, %s576
      %p580 = pneg %p574
      %p581 = scmp.eq.s32.totalorder %s43, 1
      %p582 = por %p580, %p581
      %p583 = scmp.ne.s32.totalorder %s575, %s578
      %p584 = scmp.eq.s32.totalorder %s43, 0
      %p585 = por %p583, %p584
      %p586 = scmp.ne.s32.totalorder %s575, %s578
      %p587 = scmp.eq.s32.totalorder %s48, 1
      %p588 = por %p586, %p587
      %p589 = scmp.ne.s32.totalorder %s578, %s579
      %p590 = scmp.eq.s32.totalorder %s48, 0
      %p591 = por %p589, %p590
      %p592 = scmp.ne.s32.totalorder %s578, %s579
      %p593 = scmp.eq.s32.totalorder %s49, 1
      %p594 = por %p592, %p593
      %p596 = scmp.ne.s32.totalorder %s579, %s595
      %p597 = scmp.eq.s32.totalorder %s49, 0
      %p598 = por %p596, %p597
      %s600 = sadd.s32 %s599, 1
      %p603 = scmp.eq.s32.totalorder %s43, 1
      %p604 = scmp.ne.s32.totalorder %s599, %s601
      %p605 = scmp.eq.s32.totalorder %s43, 0
      %p606 = por %p604, %p605
      %p607 = scmp.ne.s32.totalorder %s599, %s601
      %p608 = scmp.eq.s32.totalorder %s48, 1
      %p609 = por %p607, %p608
      %p610 = scmp.ne.s32.totalorder %s601, %s602
      %p611 = scmp.eq.s32.totalorder %s48, 0
      %p612 = por %p610, %p611
      %p613 = scmp.ne.s32.totalorder %s601, %s602
      %p614 = scmp.eq.s32.totalorder %s49, 1
      %p615 = por %p613, %p614
      %p617 = scmp.ne.s32.totalorder %s602, %s616
      %p618 = scmp.eq.s32.totalorder %s49, 0
      %p619 = por %p617, %p618
      %p620 = scmp.le.s32.totalorder 1, %s43
      %p621 = scmp.lt.s32.totalorder %s43, 3
      %p622 = pnand %p620, %p621
      %p623 = pneg %p622
      // Predicated region
      $region9: #{tpu_custom_call.1} parent=5 // pred_check
        _
      $region10: #{tpu_custom_call.1} parent=5 // pred_check_branch
        %625 = sbr.rel (%p622) target = $region12
      $region11: #{tpu_custom_call.1} parent=5 // pred_region
        %s626 = ssub.s32 %s43, 1
        // Predicated region
        $region13: #{tpu_custom_call.1} parent=11 // pred_check
          %p627 = pneg %p64
        $region14: #{tpu_custom_call.1} parent=11 // pred_check_branch
          %629 = sbr.rel (%p627) target = $region16
        $region15: #{tpu_custom_call.1} parent=11 // pred_region
          _
        $region16: #{tpu_custom_call.1} parent=11 // pred_fallthru
          _
        // Predicated region
        $region17: #{tpu_custom_call.1} parent=11 // pred_check
          %p630 = pneg %p85
        $region18: #{tpu_custom_call.1} parent=11 // pred_check_branch
          %632 = sbr.rel (%p630) target = $region20
        $region19: #{tpu_custom_call.1} parent=11 // pred_region
          _
        $region20: #{tpu_custom_call.1} parent=11 // pred_fallthru
          _
        // Predicated region
        $region21: #{tpu_custom_call.1} parent=11 // pred_check
          %p633 = pneg %p106
        $region22: #{tpu_custom_call.1} parent=11 // pred_check_branch
          %635 = sbr.rel (%p633) target = $region24
        $region23: #{tpu_custom_call.1} parent=11 // pred_region
          _
        $region24: #{tpu_custom_call.1} parent=11 // pred_fallthru
          _
        // Predicated region
        $region25: #{tpu_custom_call.1} parent=11 // pred_check
          %p636 = pneg %p127
        $region26: #{tpu_custom_call.1} parent=11 // pred_check_branch
          %638 = sbr.rel (%p636) target = $region28
        $region27: #{tpu_custom_call.1} parent=11 // pred_region
          _
        $region28: #{tpu_custom_call.1} parent=11 // pred_fallthru
          _
        // Predicated region
        $region29: #{tpu_custom_call.1} parent=11 // pred_check
          %p639 = pneg %p148
        $region30: #{tpu_custom_call.1} parent=11 // pred_check_branch
          %641 = sbr.rel (%p639) target = $region32
        $region31: #{tpu_custom_call.1} parent=11 // pred_region
          _
        $region32: #{tpu_custom_call.1} parent=11 // pred_fallthru
          _
        // Predicated region
        $region33: #{tpu_custom_call.1} parent=11 // pred_check
          %p642 = pneg %p169
        $region34: #{tpu_custom_call.1} parent=11 // pred_check_branch
          %644 = sbr.rel (%p642) target = $region36
        $region35: #{tpu_custom_call.1} parent=11 // pred_region
          _
        $region36: #{tpu_custom_call.1} parent=11 // pred_fallthru
          _
        // Predicated region
        $region37: #{tpu_custom_call.1} parent=11 // pred_check
          %p645 = pneg %p190
        $region38: #{tpu_custom_call.1} parent=11 // pred_check_branch
          %647 = sbr.rel (%p645) target = $region40
        $region39: #{tpu_custom_call.1} parent=11 // pred_region
          _
        $region40: #{tpu_custom_call.1} parent=11 // pred_fallthru
          _
        // Predicated region
        $region41: #{tpu_custom_call.1} parent=11 // pred_check
          %p648 = pneg %p211
        $region42: #{tpu_custom_call.1} parent=11 // pred_check_branch
          %650 = sbr.rel (%p648) target = $region44
        $region43: #{tpu_custom_call.1} parent=11 // pred_region
          _
        $region44: #{tpu_custom_call.1} parent=11 // pred_fallthru
          _
        // Predicated region
        $region45: #{tpu_custom_call.1} parent=11 // pred_check
          %p651 = pneg %p232
        $region46: #{tpu_custom_call.1} parent=11 // pred_check_branch
          %653 = sbr.rel (%p651) target = $region48
        $region47: #{tpu_custom_call.1} parent=11 // pred_region
          _
        $region48: #{tpu_custom_call.1} parent=11 // pred_fallthru
          _
        // Predicated region
        $region49: #{tpu_custom_call.1} parent=11 // pred_check
          %p654 = pneg %p253
        $region50: #{tpu_custom_call.1} parent=11 // pred_check_branch
          %656 = sbr.rel (%p654) target = $region52
        $region51: #{tpu_custom_call.1} parent=11 // pred_region
          _
        $region52: #{tpu_custom_call.1} parent=11 // pred_fallthru
          _
      $region12: #{tpu_custom_call.1} parent=5 // pred_fallthru
        _
      %p657 = scmp.lt.s32.totalorder %s43, 2
      // Predicated region
      $region53: #{tpu_custom_call.1} parent=5 // pred_check
        %p658 = pneg %p657
      $region54: #{tpu_custom_call.1} parent=5 // pred_check_branch
        %660 = sbr.rel (%p658) target = $region56
      $region55: #{tpu_custom_call.1} parent=5 // pred_region
        // Predicated region
        $region57: #{tpu_custom_call.1} parent=55 // pred_check
          %p661 = pneg %p273
        $region58: #{tpu_custom_call.1} parent=55 // pred_check_branch
          %663 = sbr.rel (%p661) target = $region60
        $region59: #{tpu_custom_call.1} parent=55 // pred_region
          %s664 = sand.u32 %s263, 1
          %s665 = scalar_lea.sflag [#allocation4], %s664
          %s666 = sand.u32 %s263, 1
          %s667 = smul.addr %s666, 192
          %s668 = scalar_lea.vmem [#allocation3], %s667
          %s670 = ssub.s32 3072, 3072
          %671 = vsyncadd %s665, %s670
          %s672 = smul.addr %s43, 48
          %s673 = smul.addr %s672, 64
          %s674 = scalar_lea.hbm %s10, %s673
          %s675 = sshll.u32 %s668, 4
          %s676 = int_to_ptr.vmem [resolvable:$true] %s675
          %681 = dma.hbm_to_vmem [thread:$0]  %s674, 3072, %s676, %s665, 192, 192, 12
        $region60: #{tpu_custom_call.1} parent=55 // pred_fallthru
          _
        // Predicated region
        $region61: #{tpu_custom_call.1} parent=55 // pred_check
          %p682 = pneg %p299
        $region62: #{tpu_custom_call.1} parent=55 // pred_check_branch
          %684 = sbr.rel (%p682) target = $region64
        $region63: #{tpu_custom_call.1} parent=55 // pred_region
          %p685 = scmp.lt.s32.totalorder %s43, 1
          %s686 = scalar_select %p685, %s43, 1
          %s687 = smul.addr %s686, 3
          %s688 = scalar_lea.vmem %s11, %s687
        $region64: #{tpu_custom_call.1} parent=55 // pred_fallthru
          _
        // Predicated region
        $region65: #{tpu_custom_call.1} parent=55 // pred_check
          %p689 = pneg %p325
        $region66: #{tpu_custom_call.1} parent=55 // pred_check_branch
          %691 = sbr.rel (%p689) target = $region68
        $region67: #{tpu_custom_call.1} parent=55 // pred_region
          %s692 = sand.u32 %s43, 1
          %s693 = scalar_lea.sflag [#allocation7], %s692
          %s694 = sand.u32 %s315, 1
          %s695 = smul.addr %s694, 64
          %s696 = scalar_lea.vmem [#allocation6], %s695
          %s698 = ssub.s32 1024, 1024
          %699 = vsyncadd %s693, %s698
          %s700 = smul.addr %s43, 16
          %s701 = smul.addr %s700, 64
          %s702 = scalar_lea.hbm %s12, %s701
          %s703 = sshll.u32 %s696, 4
          %s704 = int_to_ptr.vmem [resolvable:$true] %s703
          %709 = dma.hbm_to_vmem [thread:$0]  %s702, 1024, %s704, %s693, 64, 64, 4
        $region68: #{tpu_custom_call.1} parent=55 // pred_fallthru
          _
        // Predicated region
        $region69: #{tpu_custom_call.1} parent=55 // pred_check
          %p710 = pneg %p351
        $region70: #{tpu_custom_call.1} parent=55 // pred_check_branch
          %712 = sbr.rel (%p710) target = $region72
        $region71: #{tpu_custom_call.1} parent=55 // pred_region
          %p713 = scmp.lt.s32.totalorder %s43, 1
          %s714 = scalar_select %p713, %s43, 1
          %s715 = scalar_lea.vmem %s13, %s714
        $region72: #{tpu_custom_call.1} parent=55 // pred_fallthru
          _
        // Predicated region
        $region73: #{tpu_custom_call.1} parent=55 // pred_check
          %p716 = pneg %p377
        $region74: #{tpu_custom_call.1} parent=55 // pred_check_branch
          %718 = sbr.rel (%p716) target = $region76
        $region75: #{tpu_custom_call.1} parent=55 // pred_region
          %p719 = scmp.lt.s32.totalorder %s43, 1
          %s720 = scalar_select %p719, %s43, 1
          %s721 = scalar_lea.vmem %s14, %s720
        $region76: #{tpu_custom_call.1} parent=55 // pred_fallthru
          _
        // Predicated region
        $region77: #{tpu_custom_call.1} parent=55 // pred_check
          %p722 = pneg %p403
        $region78: #{tpu_custom_call.1} parent=55 // pred_check_branch
          %724 = sbr.rel (%p722) target = $region80
        $region79: #{tpu_custom_call.1} parent=55 // pred_region
          %p725 = scmp.lt.s32.totalorder %s43, 1
          %s726 = scalar_select %p725, %s43, 1
          %s727 = scalar_lea.vmem %s15, %s726
        $region80: #{tpu_custom_call.1} parent=55 // pred_fallthru
          _
        // Predicated region
        $region81: #{tpu_custom_call.1} parent=55 // pred_check
          %p728 = pneg %p429
        $region82: #{tpu_custom_call.1} parent=55 // pred_check_branch
          %730 = sbr.rel (%p728) target = $region84
        $region83: #{tpu_custom_call.1} parent=55 // pred_region
          %s731 = sand.u32 %s43, 1
          %s732 = scalar_lea.sflag [#allocation7], %s731
          %s733 = sand.u32 %s419, 1
          %s734 = smul.addr %s733, 256
          %s735 = scalar_lea.vmem [#allocation8], %s734
          %s737 = ssub.s32 4096, 4096
          %738 = vsyncadd %s732, %s737
          %s739 = smul.addr %s43, 64
          %s740 = smul.addr %s739, 64
          %s741 = scalar_lea.hbm %s16, %s740
          %s742 = sshll.u32 %s735, 4
          %s743 = int_to_ptr.vmem [resolvable:$true] %s742
          %748 = dma.hbm_to_vmem [thread:$0]  %s741, 4096, %s743, %s732, 256, 256, 16
        $region84: #{tpu_custom_call.1} parent=55 // pred_fallthru
          _
        // Predicated region
        $region85: #{tpu_custom_call.1} parent=55 // pred_check
          %p749 = pneg %p455
        $region86: #{tpu_custom_call.1} parent=55 // pred_check_branch
          %751 = sbr.rel (%p749) target = $region88
        $region87: #{tpu_custom_call.1} parent=55 // pred_region
          %p752 = scmp.lt.s32.totalorder %s43, 1
          %s753 = scalar_select %p752, %s43, 1
          %s754 = smul.addr %s753, 4
          %s755 = scalar_lea.vmem %s17, %s754
        $region88: #{tpu_custom_call.1} parent=55 // pred_fallthru
          _
        // Predicated region
        $region89: #{tpu_custom_call.1} parent=55 // pred_check
          %p756 = pneg %p481
        $region90: #{tpu_custom_call.1} parent=55 // pred_check_branch
          %758 = sbr.rel (%p756) target = $region92
        $region91: #{tpu_custom_call.1} parent=55 // pred_region
          %s759 = sand.u32 %s471, 1
          %s760 = scalar_lea.sflag [#allocation10], %s759
          %s761 = sand.u32 %s471, 1
          %s762 = smul.addr %s761, 256
          %s763 = scalar_lea.vmem [#allocation9], %s762
          %s765 = ssub.s32 4096, 4096
          %766 = vsyncadd %s760, %s765
          %s767 = smul.addr %s43, 64
          %s768 = smul.addr %s767, 64
          %s769 = scalar_lea.hbm %s18, %s768
          %s770 = sshll.u32 %s763, 4
          %s771 = int_to_ptr.vmem [resolvable:$true] %s770
          %776 = dma.hbm_to_vmem [thread:$0]  %s769, 4096, %s771, %s760, 64, 64, 4
        $region92: #{tpu_custom_call.1} parent=55 // pred_fallthru
          _
        // Predicated region
        $region93: #{tpu_custom_call.1} parent=55 // pred_check
          %p777 = pneg %p507
        $region94: #{tpu_custom_call.1} parent=55 // pred_check_branch
          %779 = sbr.rel (%p777) target = $region96
        $region95: #{tpu_custom_call.1} parent=55 // pred_region
          %p780 = scmp.lt.s32.totalorder %s43, 1
          %s781 = scalar_select %p780, %s43, 1
          %s782 = scalar_lea.vmem %s19, %s781
        $region96: #{tpu_custom_call.1} parent=55 // pred_fallthru
          _
        // Predicated region
        $region97: #{tpu_custom_call.1} parent=55 // pred_check
          %p783 = pneg %p533
        $region98: #{tpu_custom_call.1} parent=55 // pred_check_branch
          %785 = sbr.rel (%p783) target = $region100
        $region99: #{tpu_custom_call.1} parent=55 // pred_region
          %p786 = scmp.lt.s32.totalorder %s43, 1
          %s787 = scalar_select %p786, %s43, 1
          %s788 = scalar_lea.vmem %s20, %s787
        $region100: #{tpu_custom_call.1} parent=55 // pred_fallthru
          _
        // Predicated region
        $region101: #{tpu_custom_call.1} parent=55 // pred_check
          %p789 = pneg %p559
        $region102: #{tpu_custom_call.1} parent=55 // pred_check_branch
          %791 = sbr.rel (%p789) target = $region104
        $region103: #{tpu_custom_call.1} parent=55 // pred_region
          %p792 = scmp.lt.s32.totalorder %s43, 1
          %s793 = scalar_select %p792, %s43, 1
          %s794 = scalar_lea.vmem %s21, %s793
        $region104: #{tpu_custom_call.1} parent=55 // pred_fallthru
          _
      $region56: #{tpu_custom_call.1} parent=5 // pred_fallthru
        _
      %p795 = scmp.le.s32.totalorder 1, %s43
      %p796 = scmp.lt.s32.totalorder %s43, 3
      %p797 = pnand %p795, %p796
      %p798 = pneg %p797
      // Predicated region
      $region105: #{tpu_custom_call.1} parent=5 // pred_check
        _
      $region106: #{tpu_custom_call.1} parent=5 // pred_check_branch
        %800 = sbr.rel (%p797) target = $region108
      $region107: #{tpu_custom_call.1} parent=5 // pred_region
        %s801 = ssub.s32 %s43, 1
        %s802 = sand.u32 %s266, 1
        %s803 = scalar_lea.sflag [#allocation4], %s802
        %s804 = sand.u32 %s266, 1
        %s805 = smul.addr %s804, 192
        %s806 = scalar_lea.vmem [#allocation3], %s805
        // Predicated region
        $region109: #{tpu_custom_call.1} parent=107 // pred_check
          %p807 = pneg %p279
        $region110: #{tpu_custom_call.1} parent=107 // pred_check_branch
          %809 = sbr.rel (%p807) target = $region112
        $region111: #{tpu_custom_call.1} parent=107 // pred_region
          %810 = dma.done %s803, 3072
        $region112: #{tpu_custom_call.1} parent=107 // pred_fallthru
          _
        %s811 = sand.u32 %s48, 1
        %s812 = scalar_lea.sflag [#allocation7], %s811
        %s813 = sand.u32 %s318, 1
        %s814 = smul.addr %s813, 64
        %s815 = scalar_lea.vmem [#allocation6], %s814
        // Predicated region
        $region113: #{tpu_custom_call.1} parent=107 // pred_check
          %p816 = pneg %p331
        $region114: #{tpu_custom_call.1} parent=107 // pred_check_branch
          %818 = sbr.rel (%p816) target = $region116
        $region115: #{tpu_custom_call.1} parent=107 // pred_region
          %819 = dma.done %s812, 1024
        $region116: #{tpu_custom_call.1} parent=107 // pred_fallthru
          _
        %s820 = sand.u32 %s48, 1
        %s821 = scalar_lea.sflag [#allocation7], %s820
        %s822 = sand.u32 %s422, 1
        %s823 = smul.addr %s822, 256
        %s824 = scalar_lea.vmem [#allocation8], %s823
        // Predicated region
        $region117: #{tpu_custom_call.1} parent=107 // pred_check
          %p825 = pneg %p435
        $region118: #{tpu_custom_call.1} parent=107 // pred_check_branch
          %827 = sbr.rel (%p825) target = $region120
        $region119: #{tpu_custom_call.1} parent=107 // pred_region
          %828 = dma.done %s821, 4096
        $region120: #{tpu_custom_call.1} parent=107 // pred_fallthru
          _
        %s829 = sand.u32 %s474, 1
        %s830 = scalar_lea.sflag [#allocation10], %s829
        %s831 = sand.u32 %s474, 1
        %s832 = smul.addr %s831, 256
        %s833 = scalar_lea.vmem [#allocation9], %s832
        // Predicated region
        $region121: #{tpu_custom_call.1} parent=107 // pred_check
          %p834 = pneg %p487
        $region122: #{tpu_custom_call.1} parent=107 // pred_check_branch
          %836 = sbr.rel (%p834) target = $region124
        $region123: #{tpu_custom_call.1} parent=107 // pred_region
          %837 = dma.done %s830, 4096
        $region124: #{tpu_custom_call.1} parent=107 // pred_fallthru
          _
        %p838 = pneg %p64
        %p839 = pneg %p61
        %p840 = pneg %p85
        %p841 = pneg %p82
        %p842 = pneg %p106
        %p843 = pneg %p103
        %p844 = pneg %p127
        %p845 = pneg %p124
        %p846 = pneg %p148
        %p847 = pneg %p145
        %p848 = pneg %p169
        %p849 = pneg %p166
        %p850 = pneg %p190
        %p851 = pneg %p187
        %p852 = pneg %p211
        %p853 = pneg %p208
        %p854 = pneg %p232
        %p855 = pneg %p229
        %p856 = pneg %p253
        %p857 = pneg %p250
        %s858 = sand.u32 %s266, 1
        %s859 = scalar_lea.sflag [#allocation4], %s858
        %s860 = sand.u32 %s266, 1
        %s861 = smul.addr %s860, 192
        %s862 = scalar_lea.vmem [#allocation3], %s861
        %p863 = pneg %p279
        %p864 = pneg %p276
        %p865 = scmp.lt.s32.totalorder %s48, 1
        %s866 = scalar_select %p865, %s48, 1
        %s867 = smul.addr %s866, 3
        %s868 = scalar_lea.vmem %s11, %s867
        %p869 = pneg %p305
        %p870 = pneg %p302
        %s871 = sand.u32 %s48, 1
        %s872 = scalar_lea.sflag [#allocation7], %s871
        %s873 = sand.u32 %s318, 1
        %s874 = smul.addr %s873, 64
        %s875 = scalar_lea.vmem [#allocation6], %s874
        %p876 = pneg %p331
        %p877 = pneg %p328
        %p878 = scmp.lt.s32.totalorder %s48, 1
        %s879 = scalar_select %p878, %s48, 1
        %s880 = scalar_lea.vmem %s13, %s879
        %p881 = pneg %p357
        %p882 = pneg %p354
        %p883 = scmp.lt.s32.totalorder %s48, 1
        %s884 = scalar_select %p883, %s48, 1
        %s885 = scalar_lea.vmem %s14, %s884
        %p886 = pneg %p383
        %p887 = pneg %p380
        %p888 = scmp.lt.s32.totalorder %s48, 1
        %s889 = scalar_select %p888, %s48, 1
        %s890 = scalar_lea.vmem %s15, %s889
        %p891 = pneg %p409
        %p892 = pneg %p406
        %s893 = sand.u32 %s48, 1
        %s894 = scalar_lea.sflag [#allocation7], %s893
        %s895 = sand.u32 %s422, 1
        %s896 = smul.addr %s895, 256
        %s897 = scalar_lea.vmem [#allocation8], %s896
        %p898 = pneg %p435
        %p899 = pneg %p432
        %p900 = scmp.lt.s32.totalorder %s48, 1
        %s901 = scalar_select %p900, %s48, 1
        %s902 = smul.addr %s901, 4
        %s903 = scalar_lea.vmem %s17, %s902
        %p904 = pneg %p461
        %p905 = pneg %p458
        %s906 = sand.u32 %s474, 1
        %s907 = scalar_lea.sflag [#allocation10], %s906
        %s908 = sand.u32 %s474, 1
        %s909 = smul.addr %s908, 256
        %s910 = scalar_lea.vmem [#allocation9], %s909
        %p911 = pneg %p487
        %p912 = pneg %p484
        %p913 = scmp.lt.s32.totalorder %s48, 1
        %s914 = scalar_select %p913, %s48, 1
        %s915 = scalar_lea.vmem %s19, %s914
        %p916 = pneg %p513
        %p917 = pneg %p510
        %p918 = scmp.lt.s32.totalorder %s48, 1
        %s919 = scalar_select %p918, %s48, 1
        %s920 = scalar_lea.vmem %s20, %s919
        %p921 = pneg %p539
        %p922 = pneg %p536
        %p923 = scmp.lt.s32.totalorder %s48, 1
        %s924 = scalar_select %p923, %s48, 1
        %s925 = scalar_lea.vmem %s21, %s924
        %p926 = pneg %p565
        %p927 = pneg %p562
        %p928 = pneg %p591
        %p929 = pneg %p588
        %s930 = sand.u32 %s578, 1
        %s931 = scalar_lea.sflag [#allocation5], %s930
        %s932 = sand.u32 %s578, 1
        %s933 = smul.addr %s932, 16
        %s934 = scalar_lea.vmem [#allocation11], %s933
        %p935 = pneg %p612
        %p936 = pneg %p609
        %p937 = scmp.lt.s32.totalorder %s48, 1
        %s938 = scalar_select %p937, %s48, 1
        %s939 = smul.addr %s938, 3
        %s940 = scalar_lea.vmem %s11, %s939
        %p941 = scmp.lt.s32.totalorder %s48, 1
        %s942 = scalar_select %p941, %s48, 1
        %s943 = scalar_lea.vmem %s13, %s942
        %p944 = scmp.lt.s32.totalorder %s48, 1
        %s945 = scalar_select %p944, %s48, 1
        %s946 = scalar_lea.vmem %s14, %s945
        %p947 = scmp.lt.s32.totalorder %s48, 1
        %s948 = scalar_select %p947, %s48, 1
        %s949 = scalar_lea.vmem %s15, %s948
        %p950 = scmp.lt.s32.totalorder %s48, 1
        %s951 = scalar_select %p950, %s48, 1
        %s952 = smul.addr %s951, 4
        %s953 = scalar_lea.vmem %s17, %s952
        %p954 = scmp.lt.s32.totalorder %s48, 1
        %s955 = scalar_select %p954, %s48, 1
        %s956 = scalar_lea.vmem %s19, %s955
        %p957 = scmp.lt.s32.totalorder %s48, 1
        %s958 = scalar_select %p957, %s48, 1
        %s959 = scalar_lea.vmem %s20, %s958
        %p960 = scmp.lt.s32.totalorder %s48, 1
        %s961 = scalar_select %p960, %s48, 1
        %s962 = scalar_lea.vmem %s21, %s961
        %v964 = vld [vmem:[%s8] sm:$0xff]
        %v965 = vld [vmem:[%s8 + $0x8] sm:$0xff]
        %p966 = scmp.eq.s32.totalorder %s48, 0
        // Predicated region
        $region125: #{tpu_custom_call.1} parent=107 // pred_check
          %p967 = pneg %p966
        $region126: #{tpu_custom_call.1} parent=107 // pred_check_branch
          %969 = sbr.rel (%p967) target = $region128
        $region127: #{tpu_custom_call.1} parent=107 // pred_region
          %v970 = vld [vmem:[%s0] sm:$0xff]
          %v971 = vld [vmem:[%s0 + $0x8] sm:$0xff]
          %v972 = vld [vmem:[%s6] sm:$0x1]
          %v973 = vld [vmem:[%s7] sm:$0x1]
          %974 = vadd.xlane.f32.xlu0 %v970
          %v975 = vpop.xlane.xlu0 %974
          %976 = vadd.xlane.f32.xlu0 %v971
          %v977 = vpop.xlane.xlu0 %976
          %v978 = vrcp.pop 128.0
          %v979 = vmul.f32 %v975, %v978
          %v980 = vmul.f32 %v977, %v978
          %v981 = vsub.f32 %v970, %v979
          %v982 = vsub.f32 %v971, %v980
          %v983 = vmul.f32 %v981, %v981
          %v984 = vmul.f32 %v982, %v982
          %985 = vadd.xlane.f32.xlu0 %v983
          %v986 = vpop.xlane.xlu0 %985
          %987 = vadd.xlane.f32.xlu0 %v984
          %v988 = vpop.xlane.xlu0 %987
          %v989 = vmul.f32 %v986, %v978
          %v990 = vmul.f32 %v988, %v978
          %v991 = vadd.f32 %v989, 1e-12
          %v992 = vadd.f32 %v990, 1e-12
          %v993 = vrsqrt.pop %v991
          %v994 = vrsqrt.pop %v992
          %v995 = vmul.f32 %v981, %v993
          %v996 = vmul.f32 %v982, %v994
          %v998 = vlaneseq
          %v999 = vshrl.u32 %v998, 7
          %v1000 = vsub.s32 0, %v999
          %v1001 = vrot.slane %v972, %v1000
          %v1003 = vmul.f32 %v995, %v1001
          %v1004 = vmul.f32 %v996, %v1001
          %v1006 = vlaneseq
          %v1007 = vshrl.u32 %v1006, 7
          %v1008 = vsub.s32 0, %v1007
          %v1009 = vrot.slane %v973, %v1008
          %v1011 = vadd.f32 %v1003, %v1009
          %v1012 = vadd.f32 %v1004, %v1009
          %v1013 = vld [vmem:[%s1] sm:$0xff]
          %v1014 = vld [vmem:[%s1 + $0x8] sm:$0xff]
          %vm1015 = vcmask 31744
          %v1016 = vsel %vm1015, %v1013, -inf
          %1017 = vmax.xlane.f32.xlu0 %v1016
          %v1018 = vpop.xlane.xlu0 %1017
          %v1019 = vsel %vm1015, %v1014, -inf
          %1020 = vmax.xlane.f32.xlu0 %v1019
          %v1021 = vpop.xlane.xlu0 %1020
          %v1022 = vsub.f32 %v1013, %v1018
          %v1023 = vsub.f32 %v1014, %v1021
          %v1024 = vmul.f32 %v1022, 1.442695
          %v1025 = vpow.pop %v1024
          %v1026 = vmul.f32 %v1023, 1.442695
          %v1027 = vpow.pop %v1026
          %v1028 = vsel %vm1015, %v1025, 0.0
          %1029 = vadd.xlane.f32.xlu0 %v1028
          %v1030 = vpop.xlane.xlu0 %1029
          %v1031 = vsel %vm1015, %v1027, 0.0
          %1032 = vadd.xlane.f32.xlu0 %v1031
          %v1033 = vpop.xlane.xlu0 %1032
          %v1034 = vrcp.pop %v1030
          %v1035 = vrcp.pop %v1033
          %v1036 = vmul.f32 %v1025, %v1034
          %v1037 = vmul.f32 %v1027, %v1035
          %v1038 = vld [vmem:[%s2] sm:$0xff]
          %v1039 = vld [vmem:[%s2 + $0x8] sm:$0xff]
          %vm1040 = vcmask 39936
          %v1041 = vsel %vm1040, %v1038, -inf
          %1042 = vmax.xlane.f32.xlu0 %v1041
          %v1043 = vpop.xlane.xlu0 %1042
          %v1044 = vsel %vm1040, %v1039, -inf
          %1045 = vmax.xlane.f32.xlu0 %v1044
          %v1046 = vpop.xlane.xlu0 %1045
          %v1047 = vsub.f32 %v1038, %v1043
          %v1048 = vsub.f32 %v1039, %v1046
          %v1049 = vmul.f32 %v1047, 1.442695
          %v1050 = vpow.pop %v1049
          %v1051 = vmul.f32 %v1048, 1.442695
          %v1052 = vpow.pop %v1051
          %v1053 = vsel %vm1040, %v1050, 0.0
          %1054 = vadd.xlane.f32.xlu0 %v1053
          %v1055 = vpop.xlane.xlu0 %1054
          %v1056 = vsel %vm1040, %v1052, 0.0
          %1057 = vadd.xlane.f32.xlu0 %v1056
          %v1058 = vpop.xlane.xlu0 %1057
          %v1059 = vrcp.pop %v1055
          %v1060 = vrcp.pop %v1058
          %v1061 = vmul.f32 %v1050, %v1059
          %v1062 = vmul.f32 %v1052, %v1060
          %v1063 = vld [vmem:[%s3] sm:$0xf]
          %v1065 = vsel %vm1015, %v1036, 0
          %v1068 = vsel %vm1015, %v1037, 0
          %vm1070 = vcmask 1043456
          %v1072 = vsel %vm1070, %v1063, 0
          %1074 = vmatprep.subr.mxu0 0.0
          %1075 = vmatpush1.msra.mxu0 %v1072
          %1076 = vmatprep.subr.mxu0 0.0
          %1077 = vmatpush1.msra.mxu0 0.0
          %1078 = vmatprep.subr.mxu0 0.0
          %1079 = vmatpush1.msra.mxu0 0.0
          %1080 = vmatprep.subr.mxu0 0.0
          %1081 = vmatpush1.msra.mxu0 0.0
          %1082 = vmatprep.subr.mxu0 0.0
          %1083 = vmatpush1.msra.mxu0 0.0
          %1084 = vmatprep.subr.mxu0 0.0
          %1085 = vmatpush1.msra.mxu0 0.0
          %1086 = vmatprep.subr.mxu0 0.0
          %1087 = vmatpush1.msra.mxu0 0.0
          %1088 = vmatprep.subr.mxu0 0.0
          %1089 = vmatpush1.msra.mxu0 0.0
          %1090 = vmatprep.subr.mxu0 0.0
          %1091 = vmatpush1.msra.mxu0 0.0
          %1092 = vmatprep.subr.mxu0 0.0
          %1093 = vmatpush1.msra.mxu0 0.0
          %1094 = vmatprep.subr.mxu0 0.0
          %1095 = vmatpush1.msra.mxu0 0.0
          %1096 = vmatprep.subr.mxu0 0.0
          %1097 = vmatpush1.msra.mxu0 0.0
          %1098 = vmatprep.subr.mxu0 0.0
          %1099 = vmatpush1.msra.mxu0 0.0
          %1100 = vmatprep.subr.mxu0 0.0
          %1101 = vmatpush1.msra.mxu0 0.0
          %1102 = vmatprep.subr.mxu0 0.0
          %1103 = vmatpush1.msra.mxu0 0.0
          %1104 = vmatprep.subr.mxu0 0.0
          %1105 = vmatpush1.msra.mxu0 0.0
          %1106 = vmatprep.subr.mxu0 0.0
          %1107 = vmatpush1.msra.mxu0 0.0
          %1108 = vmatprep.subr.mxu0 0.0
          %1109 = vmatpush1.msra.mxu0 0.0
          %1110 = vmatprep.subr.mxu0 0.0
          %1111 = vmatpush1.msra.mxu0 0.0
          %1112 = vmatprep.subr.mxu0 0.0
          %1113 = vmatpush1.msra.mxu0 0.0
          %1114 = vmatprep.subr.mxu0 0.0
          %1115 = vmatpush1.msra.mxu0 0.0
          %1116 = vmatprep.subr.mxu0 0.0
          %1117 = vmatpush1.msra.mxu0 0.0
          %1118 = vmatprep.subr.mxu0 0.0
          %1119 = vmatpush1.msra.mxu0 0.0
          %1120 = vmatprep.subr.mxu0 0.0
          %1121 = vmatpush1.msra.mxu0 0.0
          %1122 = vmatprep.subr.mxu0 0.0
          %1123 = vmatpush1.msra.mxu0 0.0
          %1124 = vmatprep.subr.mxu0 0.0
          %1125 = vmatpush1.msra.mxu0 0.0
          %1126 = vmatprep.subr.mxu0 0.0
          %1127 = vmatpush1.msra.mxu0 0.0
          %1128 = vmatprep.subr.mxu0 0.0
          %1129 = vmatpush1.msra.mxu0 0.0
          %1130 = vmatprep.subr.mxu0 0.0
          %1131 = vmatpush1.msra.mxu0 0.0
          %1132 = vmatprep.subr.mxu0 0.0
          %1133 = vmatpush1.msra.mxu0 0.0
          %1134 = vmatprep.subr.mxu0 0.0
          %1135 = vmatpush1.msra.mxu0 0.0
          %1136 = vmatprep.subr.mxu0 0.0
          %1137 = vmatpush1.msra.mxu0 0.0
          %1138 = vmatprep.mubr.f32.mxu0 0.0
          %1139 = vmatmul.mubr.f32.gmra.mrb[0].mxu0 %v1065
          %v1140 = vpop.f32.mrb[0].mxu0
          %v1141 = vadd.f32 0.0, %v1140
          %v1142 = vpop.f32.mrb[0].mxu0
          %1143 = vmatprep.mubr.f32.mxu0 0.0
          %1144 = vmatmul.mubr.f32.gmra.mrb[0].mxu0 %v1068
          %v1145 = vpop.f32.mrb[0].mxu0
          %v1146 = vadd.f32 0.0, %v1145
          %v1147 = vpop.f32.mrb[0].mxu0
          %1148 = vdwg.mxu0
          %v1149 = vld [vmem:[%s4] sm:$0x1f]
          %v1151 = vsel %vm1040, %v1061, 0
          %v1154 = vsel %vm1040, %v1062, 0
          %vm1156 = vcmask 1044480
          %v1158 = vsel %vm1156, %v1149, 0
          %1160 = vmatprep.subr.mxu0 0.0
          %1161 = vmatpush1.msra.mxu0 %v1158
          %1162 = vmatprep.subr.mxu0 0.0
          %1163 = vmatpush1.msra.mxu0 0.0
          %1164 = vmatprep.subr.mxu0 0.0
          %1165 = vmatpush1.msra.mxu0 0.0
          %1166 = vmatprep.subr.mxu0 0.0
          %1167 = vmatpush1.msra.mxu0 0.0
          %1168 = vmatprep.subr.mxu0 0.0
          %1169 = vmatpush1.msra.mxu0 0.0
          %1170 = vmatprep.subr.mxu0 0.0
          %1171 = vmatpush1.msra.mxu0 0.0
          %1172 = vmatprep.subr.mxu0 0.0
          %1173 = vmatpush1.msra.mxu0 0.0
          %1174 = vmatprep.subr.mxu0 0.0
          %1175 = vmatpush1.msra.mxu0 0.0
          %1176 = vmatprep.subr.mxu0 0.0
          %1177 = vmatpush1.msra.mxu0 0.0
          %1178 = vmatprep.subr.mxu0 0.0
          %1179 = vmatpush1.msra.mxu0 0.0
          %1180 = vmatprep.subr.mxu0 0.0
          %1181 = vmatpush1.msra.mxu0 0.0
          %1182 = vmatprep.subr.mxu0 0.0
          %1183 = vmatpush1.msra.mxu0 0.0
          %1184 = vmatprep.subr.mxu0 0.0
          %1185 = vmatpush1.msra.mxu0 0.0
          %1186 = vmatprep.subr.mxu0 0.0
          %1187 = vmatpush1.msra.mxu0 0.0
          %1188 = vmatprep.subr.mxu0 0.0
          %1189 = vmatpush1.msra.mxu0 0.0
          %1190 = vmatprep.subr.mxu0 0.0
          %1191 = vmatpush1.msra.mxu0 0.0
          %1192 = vmatprep.subr.mxu0 0.0
          %1193 = vmatpush1.msra.mxu0 0.0
          %1194 = vmatprep.subr.mxu0 0.0
          %1195 = vmatpush1.msra.mxu0 0.0
          %1196 = vmatprep.subr.mxu0 0.0
          %1197 = vmatpush1.msra.mxu0 0.0
          %1198 = vmatprep.subr.mxu0 0.0
          %1199 = vmatpush1.msra.mxu0 0.0
          %1200 = vmatprep.subr.mxu0 0.0
          %1201 = vmatpush1.msra.mxu0 0.0
          %1202 = vmatprep.subr.mxu0 0.0
          %1203 = vmatpush1.msra.mxu0 0.0
          %1204 = vmatprep.subr.mxu0 0.0
          %1205 = vmatpush1.msra.mxu0 0.0
          %1206 = vmatprep.subr.mxu0 0.0
          %1207 = vmatpush1.msra.mxu0 0.0
          %1208 = vmatprep.subr.mxu0 0.0
          %1209 = vmatpush1.msra.mxu0 0.0
          %1210 = vmatprep.subr.mxu0 0.0
          %1211 = vmatpush1.msra.mxu0 0.0
          %1212 = vmatprep.subr.mxu0 0.0
          %1213 = vmatpush1.msra.mxu0 0.0
          %1214 = vmatprep.subr.mxu0 0.0
          %1215 = vmatpush1.msra.mxu0 0.0
          %1216 = vmatprep.subr.mxu0 0.0
          %1217 = vmatpush1.msra.mxu0 0.0
          %1218 = vmatprep.subr.mxu0 0.0
          %1219 = vmatpush1.msra.mxu0 0.0
          %1220 = vmatprep.subr.mxu0 0.0
          %1221 = vmatpush1.msra.mxu0 0.0
          %1222 = vmatprep.subr.mxu0 0.0
          %1223 = vmatpush1.msra.mxu0 0.0
          %1224 = vmatprep.mubr.f32.mxu0 0.0
          %1225 = vmatmul.mubr.f32.gmra.mrb[0].mxu0 %v1151
          %v1226 = vpop.f32.mrb[0].mxu0
          %v1227 = vadd.f32 0.0, %v1226
          %v1228 = vpop.f32.mrb[0].mxu0
          %1229 = vmatprep.mubr.f32.mxu0 0.0
          %1230 = vmatmul.mubr.f32.gmra.mrb[0].mxu0 %v1154
          %v1231 = vpop.f32.mrb[0].mxu0
          %v1232 = vadd.f32 0.0, %v1231
          %v1233 = vpop.f32.mrb[0].mxu0
          %1234 = vdwg.mxu0
          %v1235 = vld [vmem:[%s5] sm:$0x1]
          %v1237 = vlaneseq
          %v1238 = vshrl.u32 %v1237, 7
          %v1239 = vsub.s32 0, %v1238
          %v1240 = vrot.slane %v1235, %v1239
          %v1242 = vadd.f32 %v1011, %v1240
          %v1243 = vadd.f32 %v1012, %v1240
          %v1244 = vadd.f32 %v1242, %v1141
          %v1245 = vadd.f32 %v1243, %v1146
          %v1246 = vadd.f32 %v1244, %v1227
          %v1247 = vadd.f32 %v1245, %v1232
          %1249 = vset.pattern.permute.xlu0 0
          %1250 = vperm.xlu0 %1249, %v964
          %v1251 = vpop.permute.xlu0 %1250
          %1254 = vset.pattern.permute.xlu0 0
          %1255 = vperm.xlu0 %1254, %v965
          %v1256 = vpop.permute.xlu0 %1255
          %v1258 = vmul.f32 %v1246, %v1251
          %v1259 = vmul.f32 %v1247, %v1256
          %1260 = vst [vmem:[#allocation2] sm:$0xff] %v1258
          %1261 = vst [vmem:[#allocation2 + $0x8] sm:$0xff] %v1259
        $region128: #{tpu_custom_call.1} parent=107 // pred_fallthru
          _
        %v1262 = vld [vmem:[#allocation2] sm:$0xff]
        %v1263 = vld [vmem:[#allocation2 + $0x8] sm:$0xff]
        %1264 = vst [vmem:[%s934] sm:$0xff] %v1262
        %1265 = vst [vmem:[%s934 + $0x8] sm:$0xff] %v1263
        %v1266 = vld [vmem:[#allocation2] sm:$0xff]
        %v1267 = vld [vmem:[#allocation2 + $0x8] sm:$0xff]
        %v1268 = vpack.c.bf16 %v1267, %v1266
        %v1269 = vld [vmem:[%s806] sm:$0xff]
        %v1270 = vld [vmem:[%s806 + $0x8] sm:$0xf]
        %v1271 = vld [vmem:[%s806 + $0xc] sm:$0xff]
        %v1272 = vld [vmem:[%s806 + $0x14] sm:$0xf]
        %v1273 = vld [vmem:[%s806 + $0x18] sm:$0xff]
        %v1274 = vld [vmem:[%s806 + $0x20] sm:$0xf]
        %v1275 = vld [vmem:[%s806 + $0x24] sm:$0xff]
        %v1276 = vld [vmem:[%s806 + $0x2c] sm:$0xf]
        %v1277 = vld [vmem:[%s806 + $0x30] sm:$0xff]
        %v1278 = vld [vmem:[%s806 + $0x38] sm:$0xf]
        %v1279 = vld [vmem:[%s806 + $0x3c] sm:$0xff]
        %v1280 = vld [vmem:[%s806 + $0x44] sm:$0xf]
        %v1281 = vld [vmem:[%s806 + $0x48] sm:$0xff]
        %v1282 = vld [vmem:[%s806 + $0x50] sm:$0xf]
        %v1283 = vld [vmem:[%s806 + $0x54] sm:$0xff]
        %v1284 = vld [vmem:[%s806 + $0x5c] sm:$0xf]
        %v1285 = vld [vmem:[%s806 + $0x60] sm:$0xff]
        %v1286 = vld [vmem:[%s806 + $0x68] sm:$0xf]
        %v1287 = vld [vmem:[%s806 + $0x6c] sm:$0xff]
        %v1288 = vld [vmem:[%s806 + $0x74] sm:$0xf]
        %v1289 = vld [vmem:[%s806 + $0x78] sm:$0xff]
        %v1290 = vld [vmem:[%s806 + $0x80] sm:$0xf]
        %v1291 = vld [vmem:[%s806 + $0x84] sm:$0xff]
        %v1292 = vld [vmem:[%s806 + $0x8c] sm:$0xf]
        %v1293 = vld [vmem:[%s806 + $0x90] sm:$0xff]
        %v1294 = vld [vmem:[%s806 + $0x98] sm:$0xf]
        %v1295 = vld [vmem:[%s806 + $0x9c] sm:$0xff]
        %v1296 = vld [vmem:[%s806 + $0xa4] sm:$0xf]
        %v1297 = vld [vmem:[%s806 + $0xa8] sm:$0xff]
        %v1298 = vld [vmem:[%s806 + $0xb0] sm:$0xf]
        %v1299 = vld [vmem:[%s806 + $0xb4] sm:$0xff]
        %v1300 = vld [vmem:[%s806 + $0xbc] sm:$0xf]
        %v1301 = vld [vmem:[%s940] sm:$0x7]
        %v1303 = vlaneseq
        %v1304 = vshrl.u32 %v1303, 7
        %v1305 = vsub.s32 0, %v1304
        %v1306 = vrot.slane %v1301, %v1305
        %v1307 = vlaneseq
        %v1308 = vshrl.u32 %v1307, 7
        %v1309 = vsub.s32 1, %v1308
        %v1310 = vrot.slane %v1301, %v1309
        %v1311 = vlaneseq
        %v1312 = vshrl.u32 %v1311, 7
        %v1313 = vsub.s32 2, %v1312
        %v1314 = vrot.slane %v1301, %v1313
        %v1350 = vunpack.c.l.b16 %v1269
        %v1351 = vunpack.c.h.b16 %v1269
        %v1352 = vunpack.c.l.b16 %v1270
        %v1353 = vunpack.c.l.b16 %v1271
        %v1354 = vunpack.c.h.b16 %v1271
        %v1355 = vunpack.c.l.b16 %v1272
        %v1356 = vunpack.c.l.b16 %v1273
        %v1357 = vunpack.c.h.b16 %v1273
        %v1358 = vunpack.c.l.b16 %v1274
        %v1359 = vunpack.c.l.b16 %v1275
        %v1360 = vunpack.c.h.b16 %v1275
        %v1361 = vunpack.c.l.b16 %v1276
        %v1362 = vunpack.c.l.b16 %v1277
        %v1363 = vunpack.c.h.b16 %v1277
        %v1364 = vunpack.c.l.b16 %v1278
        %v1365 = vunpack.c.l.b16 %v1279
        %v1366 = vunpack.c.h.b16 %v1279
        %v1367 = vunpack.c.l.b16 %v1280
        %v1368 = vunpack.c.l.b16 %v1281
        %v1369 = vunpack.c.h.b16 %v1281
        %v1370 = vunpack.c.l.b16 %v1282
        %v1371 = vunpack.c.l.b16 %v1283
        %v1372 = vunpack.c.h.b16 %v1283
        %v1373 = vunpack.c.l.b16 %v1284
        %v1374 = vunpack.c.l.b16 %v1285
        %v1375 = vunpack.c.h.b16 %v1285
        %v1376 = vunpack.c.l.b16 %v1286
        %v1377 = vunpack.c.l.b16 %v1287
        %v1378 = vunpack.c.h.b16 %v1287
        %v1379 = vunpack.c.l.b16 %v1288
        %v1380 = vunpack.c.l.b16 %v1289
        %v1381 = vunpack.c.h.b16 %v1289
        %v1382 = vunpack.c.l.b16 %v1290
        %v1383 = vunpack.c.l.b16 %v1291
        %v1384 = vunpack.c.h.b16 %v1291
        %v1385 = vunpack.c.l.b16 %v1292
        %v1386 = vunpack.c.l.b16 %v1293
        %v1387 = vunpack.c.h.b16 %v1293
        %v1388 = vunpack.c.l.b16 %v1294
        %v1389 = vunpack.c.l.b16 %v1295
        %v1390 = vunpack.c.h.b16 %v1295
        %v1391 = vunpack.c.l.b16 %v1296
        %v1392 = vunpack.c.l.b16 %v1297
        %v1393 = vunpack.c.h.b16 %v1297
        %v1394 = vunpack.c.l.b16 %v1298
        %v1395 = vunpack.c.l.b16 %v1299
        %v1396 = vunpack.c.h.b16 %v1299
        %v1397 = vunpack.c.l.b16 %v1300
        %v1398 = vpack.c.b16 %v1353, %v1350
        %v1399 = vpack.c.b16 %v1354, %v1351
        %v1400 = vpack.c.b16 %v1355, %v1352
        %v1401 = vpack.c.b16 %v1359, %v1356
        %v1402 = vpack.c.b16 %v1360, %v1357
        %v1403 = vpack.c.b16 %v1361, %v1358
        %v1404 = vpack.c.b16 %v1365, %v1362
        %v1405 = vpack.c.b16 %v1366, %v1363
        %v1406 = vpack.c.b16 %v1367, %v1364
        %v1407 = vpack.c.b16 %v1371, %v1368
        %v1408 = vpack.c.b16 %v1372, %v1369
        %v1409 = vpack.c.b16 %v1373, %v1370
        %v1410 = vpack.c.b16 %v1377, %v1374
        %v1411 = vpack.c.b16 %v1378, %v1375
        %v1412 = vpack.c.b16 %v1379, %v1376
        %v1413 = vpack.c.b16 %v1383, %v1380
        %v1414 = vpack.c.b16 %v1384, %v1381
        %v1415 = vpack.c.b16 %v1385, %v1382
        %v1416 = vpack.c.b16 %v1389, %v1386
        %v1417 = vpack.c.b16 %v1390, %v1387
        %v1418 = vpack.c.b16 %v1391, %v1388
        %v1419 = vpack.c.b16 %v1395, %v1392
        %v1420 = vpack.c.b16 %v1396, %v1393
        %v1421 = vpack.c.b16 %v1397, %v1394
        %1446 = vmatprep.subr.bf16.mxu0 %v1399
        %1447 = vmatpush1.bf16.msra.mxu0 %v1398
        %1448 = vmatprep.subr.bf16.mxu0 %v1402
        %1449 = vmatpush1.bf16.msra.mxu0 %v1401
        %1450 = vmatprep.subr.bf16.mxu0 %v1405
        %1451 = vmatpush1.bf16.msra.mxu0 %v1404
        %1452 = vmatprep.subr.bf16.mxu0 %v1408
        %1453 = vmatpush1.bf16.msra.mxu0 %v1407
        %1454 = vmatprep.subr.bf16.mxu0 %v1411
        %1455 = vmatpush1.bf16.msra.mxu0 %v1410
        %1456 = vmatprep.subr.bf16.mxu0 %v1414
        %1457 = vmatpush1.bf16.msra.mxu0 %v1413
        %1458 = vmatprep.subr.bf16.mxu0 %v1417
        %1459 = vmatpush1.bf16.msra.mxu0 %v1416
        %1460 = vmatprep.subr.bf16.mxu0 %v1420
        %1461 = vmatpush1.bf16.msra.mxu0 %v1419
        %1462 = vmatprep.subr.bf16.mxu0 0
        %1463 = vmatpush1.bf16.msra.mxu0 0
        %1464 = vmatprep.subr.bf16.mxu0 0
        %1465 = vmatpush1.bf16.msra.mxu0 0
        %1466 = vmatprep.subr.bf16.mxu0 0
        %1467 = vmatpush1.bf16.msra.mxu0 0
        %1468 = vmatprep.subr.bf16.mxu0 0
        %1469 = vmatpush1.bf16.msra.mxu0 0
        %1470 = vmatprep.subr.bf16.mxu0 0
        %1471 = vmatpush1.bf16.msra.mxu0 0
        %1472 = vmatprep.subr.bf16.mxu0 0
        %1473 = vmatpush1.bf16.msra.mxu0 0
        %1474 = vmatprep.subr.bf16.mxu0 0
        %1475 = vmatpush1.bf16.msra.mxu0 0
        %1476 = vmatprep.subr.bf16.mxu0 0
        %1477 = vmatpush1.bf16.msra.mxu0 0
        %1478 = vmatprep.mubr.bf16.mxu0 0
        %1479 = vmatmul.mubr.bf16.gmra.mrb[0].mxu0 %v1268
        %v1480 = vpop.f32.mrb[0].mxu0
        %v1481 = vadd.f32 %v1306, %v1480
        %v1482 = vpop.f32.mrb[0].mxu0
        %v1483 = vadd.f32 %v1310, %v1482
        %v1484 = vpop.f32.mrb[0].mxu0
        %v1485 = vadd.f32 %v1306, %v1484
        %v1486 = vpop.f32.mrb[0].mxu0
        %v1487 = vadd.f32 %v1310, %v1486
        %1488 = vdwg.mxu0
        %1489 = vmatprep.subr.bf16.mxu0 0
        %1490 = vmatpush1.bf16.msra.mxu0 %v1400
        %1491 = vmatprep.subr.bf16.mxu0 0
        %1492 = vmatpush1.bf16.msra.mxu0 %v1403
        %1493 = vmatprep.subr.bf16.mxu0 0
        %1494 = vmatpush1.bf16.msra.mxu0 %v1406
        %1495 = vmatprep.subr.bf16.mxu0 0
        %1496 = vmatpush1.bf16.msra.mxu0 %v1409
        %1497 = vmatprep.subr.bf16.mxu0 0
        %1498 = vmatpush1.bf16.msra.mxu0 %v1412
        %1499 = vmatprep.subr.bf16.mxu0 0
        %1500 = vmatpush1.bf16.msra.mxu0 %v1415
        %1501 = vmatprep.subr.bf16.mxu0 0
        %1502 = vmatpush1.bf16.msra.mxu0 %v1418
        %1503 = vmatprep.subr.bf16.mxu0 0
        %1504 = vmatpush1.bf16.msra.mxu0 %v1421
        %1505 = vmatprep.subr.bf16.mxu0 0
        %1506 = vmatpush1.bf16.msra.mxu0 0
        %1507 = vmatprep.subr.bf16.mxu0 0
        %1508 = vmatpush1.bf16.msra.mxu0 0
        %1509 = vmatprep.subr.bf16.mxu0 0
        %1510 = vmatpush1.bf16.msra.mxu0 0
        %1511 = vmatprep.subr.bf16.mxu0 0
        %1512 = vmatpush1.bf16.msra.mxu0 0
        %1513 = vmatprep.subr.bf16.mxu0 0
        %1514 = vmatpush1.bf16.msra.mxu0 0
        %1515 = vmatprep.subr.bf16.mxu0 0
        %1516 = vmatpush1.bf16.msra.mxu0 0
        %1517 = vmatprep.subr.bf16.mxu0 0
        %1518 = vmatpush1.bf16.msra.mxu0 0
        %1519 = vmatprep.subr.bf16.mxu0 0
        %1520 = vmatpush1.bf16.msra.mxu0 0
        %1521 = vmatprep.mubr.bf16.mxu0 0
        %1522 = vmatmul.mubr.bf16.gmra.mrb[0].mxu0 %v1268
        %v1523 = vpop.f32.mrb[0].mxu0
        %v1524 = vadd.f32 %v1314, %v1523
        %v1525 = vpop.f32.mrb[0].mxu0
        %v1526 = vpop.f32.mrb[0].mxu0
        %v1527 = vadd.f32 %v1314, %v1526
        %v1528 = vpop.f32.mrb[0].mxu0
        %1529 = vdwg.mxu0
        %v1530 = vmul.f32 %v1481, 0.125
        %v1531 = vmul.f32 %v1485, 0.125
        %v1532 = vpack.c.bf16 %v1530, %v1530
        %v1533 = vpack.c.bf16 %v1531, %v1531
        %v1534 = vpack.c.bf16 %v1483, %v1483
        %v1535 = vpack.c.bf16 %v1487, %v1487
        %v1536 = vpack.c.bf16 %v1524, %v1524
        %v1537 = vpack.c.bf16 %v1527, %v1527
        %v1538 = vld [vmem:[%s9] sm:$0x1]
        %v1539 = vld [vmem:[%s9 + $0x1] sm:$0x1]
        %v1542 = vlaneseq
        %v1543 = vshrl.u32 %v1542, 7
        %v1544 = vsub.s32 0, %v1543
        %v1545 = vrot.slane %v1538, %v1544
        %v1546 = vlaneseq
        %v1547 = vshrl.u32 %v1546, 7
        %v1548 = vsub.s32 0, %v1547
        %v1549 = vrot.slane %v1539, %v1548
        %vm1552 = vcmask 523264
        %v1554 = vsel %vm1552, %v1532, 0
        %v1557 = vsel %vm1552, %v1534, 0
        %1559 = vmatprep.subr.bf16.mxu0 0
        %1560 = vmatpush1.bf16.xpose.msra.mxu0 %v1557
        %1561 = vmatprep.subr.bf16.mxu0 0
        %1562 = vmatpush1.bf16.xpose.msra.mxu0 0
        %1563 = vmatprep.subr.bf16.mxu0 0
        %1564 = vmatpush1.bf16.xpose.msra.mxu0 0
        %1565 = vmatprep.subr.bf16.mxu0 0
        %1566 = vmatpush1.bf16.xpose.msra.mxu0 0
        %1567 = vmatprep.subr.bf16.mxu0 0
        %1568 = vmatpush1.bf16.xpose.msra.mxu0 0
        %1569 = vmatprep.subr.bf16.mxu0 0
        %1570 = vmatpush1.bf16.xpose.msra.mxu0 0
        %1571 = vmatprep.subr.bf16.mxu0 0
        %1572 = vmatpush1.bf16.xpose.msra.mxu0 0
        %1573 = vmatprep.subr.bf16.mxu0 0
        %1574 = vmatpush1.bf16.xpose.msra.mxu0 0
        %1575 = vmatprep.subr.bf16.mxu0 0
        %1576 = vmatpush1.bf16.xpose.msra.mxu0 0
        %1577 = vmatprep.subr.bf16.mxu0 0
        %1578 = vmatpush1.bf16.xpose.msra.mxu0 0
        %1579 = vmatprep.subr.bf16.mxu0 0
        %1580 = vmatpush1.bf16.xpose.msra.mxu0 0
        %1581 = vmatprep.subr.bf16.mxu0 0
        %1582 = vmatpush1.bf16.xpose.msra.mxu0 0
        %1583 = vmatprep.subr.bf16.mxu0 0
        %1584 = vmatpush1.bf16.xpose.msra.mxu0 0
        %1585 = vmatprep.subr.bf16.mxu0 0
        %1586 = vmatpush1.bf16.xpose.msra.mxu0 0
        %1587 = vmatprep.subr.bf16.mxu0 0
        %1588 = vmatpush1.bf16.xpose.msra.mxu0 0
        %1589 = vmatprep.subr.bf16.mxu0 0
        %1590 = vmatpush1.bf16.xpose.msra.mxu0 0
        %1591 = vmatprep.mubr.bf16.mxu0 0
        %1592 = vmatmul.mubr.bf16.gmra.mrb[0].mxu0 %v1554
        %v1593 = vpop.f32.mrb[0].mxu0
        %v1594 = vadd.f32 %v1545, %v1593
        %v1595 = vpop.f32.mrb[0].mxu0
        %v1596 = vpop.f32.mrb[0].mxu0
        %v1597 = vpop.f32.mrb[0].mxu0
        %1598 = vdwg.mxu0
        %v1600 = vsel %vm1552, %v1533, 0
        %v1603 = vsel %vm1552, %v1535, 0
        %1605 = vmatprep.subr.bf16.mxu0 0
        %1606 = vmatpush1.bf16.xpose.msra.mxu0 %v1603
        %1607 = vmatprep.subr.bf16.mxu0 0
        %1608 = vmatpush1.bf16.xpose.msra.mxu0 0
        %1609 = vmatprep.subr.bf16.mxu0 0
        %1610 = vmatpush1.bf16.xpose.msra.mxu0 0
        %1611 = vmatprep.subr.bf16.mxu0 0
        %1612 = vmatpush1.bf16.xpose.msra.mxu0 0
        %1613 = vmatprep.subr.bf16.mxu0 0
        %1614 = vmatpush1.bf16.xpose.msra.mxu0 0
        %1615 = vmatprep.subr.bf16.mxu0 0
        %1616 = vmatpush1.bf16.xpose.msra.mxu0 0
        %1617 = vmatprep.subr.bf16.mxu0 0
        %1618 = vmatpush1.bf16.xpose.msra.mxu0 0
        %1619 = vmatprep.subr.bf16.mxu0 0
        %1620 = vmatpush1.bf16.xpose.msra.mxu0 0
        %1621 = vmatprep.subr.bf16.mxu0 0
        %1622 = vmatpush1.bf16.xpose.msra.mxu0 0
        %1623 = vmatprep.subr.bf16.mxu0 0
        %1624 = vmatpush1.bf16.xpose.msra.mxu0 0
        %1625 = vmatprep.subr.bf16.mxu0 0
        %1626 = vmatpush1.bf16.xpose.msra.mxu0 0
        %1627 = vmatprep.subr.bf16.mxu0 0
        %1628 = vmatpush1.bf16.xpose.msra.mxu0 0
        %1629 = vmatprep.subr.bf16.mxu0 0
        %1630 = vmatpush1.bf16.xpose.msra.mxu0 0
        %1631 = vmatprep.subr.bf16.mxu0 0
        %1632 = vmatpush1.bf16.xpose.msra.mxu0 0
        %1633 = vmatprep.subr.bf16.mxu0 0
        %1634 = vmatpush1.bf16.xpose.msra.mxu0 0
        %1635 = vmatprep.subr.bf16.mxu0 0
        %1636 = vmatpush1.bf16.xpose.msra.mxu0 0
        %1637 = vmatprep.mubr.bf16.mxu0 0
        %1638 = vmatmul.mubr.bf16.gmra.mrb[0].mxu0 %v1600
        %v1639 = vpop.f32.mrb[0].mxu0
        %v1640 = vadd.f32 %v1549, %v1639
        %v1641 = vpop.f32.mrb[0].mxu0
        %v1642 = vpop.f32.mrb[0].mxu0
        %v1643 = vpop.f32.mrb[0].mxu0
        %1644 = vdwg.mxu0
        %vm1645 = vcmask 64512
        %v1646 = vsel %vm1645, %v1594, -inf
        %1647 = vmax.xlane.f32.xlu0 %v1646
        %v1648 = vpop.xlane.xlu0 %1647
        %v1649 = vsel %vm1645, %v1640, -inf
        %1650 = vmax.xlane.f32.xlu0 %v1649
        %v1651 = vpop.xlane.xlu0 %1650
        %v1652 = vsub.f32 %v1594, %v1648
        %v1653 = vsub.f32 %v1640, %v1651
        %v1654 = vmul.f32 %v1652, 1.442695
        %v1655 = vpow.pop %v1654
        %v1656 = vmul.f32 %v1653, 1.442695
        %v1657 = vpow.pop %v1656
        %v1658 = vsel %vm1645, %v1655, 0.0
        %1659 = vadd.xlane.f32.xlu0 %v1658
        %v1660 = vpop.xlane.xlu0 %1659
        %v1661 = vsel %vm1645, %v1657, 0.0
        %1662 = vadd.xlane.f32.xlu0 %v1661
        %v1663 = vpop.xlane.xlu0 %1662
        %v1664 = vrcp.pop %v1660
        %v1665 = vrcp.pop %v1663
        %v1666 = vmul.f32 %v1655, %v1664
        %v1667 = vmul.f32 %v1657, %v1665
        %v1668 = vpack.c.bf16 %v1666, %v1666
        %v1669 = vpack.c.bf16 %v1667, %v1667
        %v1671 = vsel %vm1645, %v1668, 0
        %vm1673 = vcmask 1043456
        %v1675 = vsel %vm1673, %v1536, 0
        %1677 = vmatprep.subr.bf16.mxu0 0
        %1678 = vmatpush1.bf16.msra.mxu0 %v1675
        %1679 = vmatprep.subr.bf16.mxu0 0
        %1680 = vmatpush1.bf16.msra.mxu0 0
        %1681 = vmatprep.subr.bf16.mxu0 0
        %1682 = vmatpush1.bf16.msra.mxu0 0
        %1683 = vmatprep.subr.bf16.mxu0 0
        %1684 = vmatpush1.bf16.msra.mxu0 0
        %1685 = vmatprep.subr.bf16.mxu0 0
        %1686 = vmatpush1.bf16.msra.mxu0 0
        %1687 = vmatprep.subr.bf16.mxu0 0
        %1688 = vmatpush1.bf16.msra.mxu0 0
        %1689 = vmatprep.subr.bf16.mxu0 0
        %1690 = vmatpush1.bf16.msra.mxu0 0
        %1691 = vmatprep.subr.bf16.mxu0 0
        %1692 = vmatpush1.bf16.msra.mxu0 0
        %1693 = vmatprep.subr.bf16.mxu0 0
        %1694 = vmatpush1.bf16.msra.mxu0 0
        %1695 = vmatprep.subr.bf16.mxu0 0
        %1696 = vmatpush1.bf16.msra.mxu0 0
        %1697 = vmatprep.subr.bf16.mxu0 0
        %1698 = vmatpush1.bf16.msra.mxu0 0
        %1699 = vmatprep.subr.bf16.mxu0 0
        %1700 = vmatpush1.bf16.msra.mxu0 0
        %1701 = vmatprep.subr.bf16.mxu0 0
        %1702 = vmatpush1.bf16.msra.mxu0 0
        %1703 = vmatprep.subr.bf16.mxu0 0
        %1704 = vmatpush1.bf16.msra.mxu0 0
        %1705 = vmatprep.subr.bf16.mxu0 0
        %1706 = vmatpush1.bf16.msra.mxu0 0
        %1707 = vmatprep.subr.bf16.mxu0 0
        %1708 = vmatpush1.bf16.msra.mxu0 0
        %1709 = vmatprep.mubr.bf16.mxu0 0
        %1710 = vmatmul.mubr.bf16.gmra.mrb[0].mxu0 %v1671
        %v1711 = vpop.f32.mrb[0].mxu0
        %v1712 = vadd.f32 0.0, %v1711
        %v1713 = vpop.f32.mrb[0].mxu0
        %v1714 = vpop.f32.mrb[0].mxu0
        %v1715 = vpop.f32.mrb[0].mxu0
        %1716 = vdwg.mxu0
        %v1718 = vsel %vm1645, %v1669, 0
        %v1721 = vsel %vm1673, %v1537, 0
        %1723 = vmatprep.subr.bf16.mxu0 0
        %1724 = vmatpush1.bf16.msra.mxu0 %v1721
        %1725 = vmatprep.subr.bf16.mxu0 0
        %1726 = vmatpush1.bf16.msra.mxu0 0
        %1727 = vmatprep.subr.bf16.mxu0 0
        %1728 = vmatpush1.bf16.msra.mxu0 0
        %1729 = vmatprep.subr.bf16.mxu0 0
        %1730 = vmatpush1.bf16.msra.mxu0 0
        %1731 = vmatprep.subr.bf16.mxu0 0
        %1732 = vmatpush1.bf16.msra.mxu0 0
        %1733 = vmatprep.subr.bf16.mxu0 0
        %1734 = vmatpush1.bf16.msra.mxu0 0
        %1735 = vmatprep.subr.bf16.mxu0 0
        %1736 = vmatpush1.bf16.msra.mxu0 0
        %1737 = vmatprep.subr.bf16.mxu0 0
        %1738 = vmatpush1.bf16.msra.mxu0 0
        %1739 = vmatprep.subr.bf16.mxu0 0
        %1740 = vmatpush1.bf16.msra.mxu0 0
        %1741 = vmatprep.subr.bf16.mxu0 0
        %1742 = vmatpush1.bf16.msra.mxu0 0
        %1743 = vmatprep.subr.bf16.mxu0 0
        %1744 = vmatpush1.bf16.msra.mxu0 0
        %1745 = vmatprep.subr.bf16.mxu0 0
        %1746 = vmatpush1.bf16.msra.mxu0 0
        %1747 = vmatprep.subr.bf16.mxu0 0
        %1748 = vmatpush1.bf16.msra.mxu0 0
        %1749 = vmatprep.subr.bf16.mxu0 0
        %1750 = vmatpush1.bf16.msra.mxu0 0
        %1751 = vmatprep.subr.bf16.mxu0 0
        %1752 = vmatpush1.bf16.msra.mxu0 0
        %1753 = vmatprep.subr.bf16.mxu0 0
        %1754 = vmatpush1.bf16.msra.mxu0 0
        %1755 = vmatprep.mubr.bf16.mxu0 0
        %1756 = vmatmul.mubr.bf16.gmra.mrb[0].mxu0 %v1718
        %v1757 = vpop.f32.mrb[0].mxu0
        %v1758 = vadd.f32 0.0, %v1757
        %v1759 = vpop.f32.mrb[0].mxu0
        %v1760 = vpop.f32.mrb[0].mxu0
        %v1761 = vpop.f32.mrb[0].mxu0
        %1762 = vdwg.mxu0
        %1764 = vrot.lane.b32.xlu0 %v1532, 64
        %v1765 = vpop.permute.xlu0 %1764
        %1767 = vrot.lane.b32.xlu0 %v1534, 64
        %v1768 = vpop.permute.xlu0 %1767
        %v1770 = vsel %vm1552, %v1765, 0
        %v1773 = vsel %vm1552, %v1768, 0
        %1775 = vmatprep.subr.bf16.mxu0 0
        %1776 = vmatpush1.bf16.xpose.msra.mxu0 %v1773
        %1777 = vmatprep.subr.bf16.mxu0 0
        %1778 = vmatpush1.bf16.xpose.msra.mxu0 0
        %1779 = vmatprep.subr.bf16.mxu0 0
        %1780 = vmatpush1.bf16.xpose.msra.mxu0 0
        %1781 = vmatprep.subr.bf16.mxu0 0
        %1782 = vmatpush1.bf16.xpose.msra.mxu0 0
        %1783 = vmatprep.subr.bf16.mxu0 0
        %1784 = vmatpush1.bf16.xpose.msra.mxu0 0
        %1785 = vmatprep.subr.bf16.mxu0 0
        %1786 = vmatpush1.bf16.xpose.msra.mxu0 0
        %1787 = vmatprep.subr.bf16.mxu0 0
        %1788 = vmatpush1.bf16.xpose.msra.mxu0 0
        %1789 = vmatprep.subr.bf16.mxu0 0
        %1790 = vmatpush1.bf16.xpose.msra.mxu0 0
        %1791 = vmatprep.subr.bf16.mxu0 0
        %1792 = vmatpush1.bf16.xpose.msra.mxu0 0
        %1793 = vmatprep.subr.bf16.mxu0 0
        %1794 = vmatpush1.bf16.xpose.msra.mxu0 0
        %1795 = vmatprep.subr.bf16.mxu0 0
        %1796 = vmatpush1.bf16.xpose.msra.mxu0 0
        %1797 = vmatprep.subr.bf16.mxu0 0
        %1798 = vmatpush1.bf16.xpose.msra.mxu0 0
        %1799 = vmatprep.subr.bf16.mxu0 0
        %1800 = vmatpush1.bf16.xpose.msra.mxu0 0
        %1801 = vmatprep.subr.bf16.mxu0 0
        %1802 = vmatpush1.bf16.xpose.msra.mxu0 0
        %1803 = vmatprep.subr.bf16.mxu0 0
        %1804 = vmatpush1.bf16.xpose.msra.mxu0 0
        %1805 = vmatprep.subr.bf16.mxu0 0
        %1806 = vmatpush1.bf16.xpose.msra.mxu0 0
        %1807 = vmatprep.mubr.bf16.mxu0 0
        %1808 = vmatmul.mubr.bf16.gmra.mrb[0].mxu0 %v1770
        %v1809 = vpop.f32.mrb[0].mxu0
        %v1810 = vadd.f32 %v1545, %v1809
        %v1811 = vpop.f32.mrb[0].mxu0
        %v1812 = vpop.f32.mrb[0].mxu0
        %v1813 = vpop.f32.mrb[0].mxu0
        %1814 = vdwg.mxu0
        %1816 = vrot.lane.b32.xlu0 %v1533, 64
        %v1817 = vpop.permute.xlu0 %1816
        %1819 = vrot.lane.b32.xlu0 %v1535, 64
        %v1820 = vpop.permute.xlu0 %1819
        %v1822 = vsel %vm1552, %v1817, 0
        %v1825 = vsel %vm1552, %v1820, 0
        %1827 = vmatprep.subr.bf16.mxu0 0
        %1828 = vmatpush1.bf16.xpose.msra.mxu0 %v1825
        %1829 = vmatprep.subr.bf16.mxu0 0
        %1830 = vmatpush1.bf16.xpose.msra.mxu0 0
        %1831 = vmatprep.subr.bf16.mxu0 0
        %1832 = vmatpush1.bf16.xpose.msra.mxu0 0
        %1833 = vmatprep.subr.bf16.mxu0 0
        %1834 = vmatpush1.bf16.xpose.msra.mxu0 0
        %1835 = vmatprep.subr.bf16.mxu0 0
        %1836 = vmatpush1.bf16.xpose.msra.mxu0 0
        %1837 = vmatprep.subr.bf16.mxu0 0
        %1838 = vmatpush1.bf16.xpose.msra.mxu0 0
        %1839 = vmatprep.subr.bf16.mxu0 0
        %1840 = vmatpush1.bf16.xpose.msra.mxu0 0
        %1841 = vmatprep.subr.bf16.mxu0 0
        %1842 = vmatpush1.bf16.xpose.msra.mxu0 0
        %1843 = vmatprep.subr.bf16.mxu0 0
        %1844 = vmatpush1.bf16.xpose.msra.mxu0 0
        %1845 = vmatprep.subr.bf16.mxu0 0
        %1846 = vmatpush1.bf16.xpose.msra.mxu0 0
        %1847 = vmatprep.subr.bf16.mxu0 0
        %1848 = vmatpush1.bf16.xpose.msra.mxu0 0
        %1849 = vmatprep.subr.bf16.mxu0 0
        %1850 = vmatpush1.bf16.xpose.msra.mxu0 0
        %1851 = vmatprep.subr.bf16.mxu0 0
        %1852 = vmatpush1.bf16.xpose.msra.mxu0 0
        %1853 = vmatprep.subr.bf16.mxu0 0
        %1854 = vmatpush1.bf16.xpose.msra.mxu0 0
        %1855 = vmatprep.subr.bf16.mxu0 0
        %1856 = vmatpush1.bf16.xpose.msra.mxu0 0
        %1857 = vmatprep.subr.bf16.mxu0 0
        %1858 = vmatpush1.bf16.xpose.msra.mxu0 0
        %1859 = vmatprep.mubr.bf16.mxu0 0
        %1860 = vmatmul.mubr.bf16.gmra.mrb[0].mxu0 %v1822
        %v1861 = vpop.f32.mrb[0].mxu0
        %v1862 = vadd.f32 %v1549, %v1861
        %v1863 = vpop.f32.mrb[0].mxu0
        %v1864 = vpop.f32.mrb[0].mxu0
        %v1865 = vpop.f32.mrb[0].mxu0
        %1866 = vdwg.mxu0
        %v1867 = vsel %vm1645, %v1810, -inf
        %1868 = vmax.xlane.f32.xlu0 %v1867
        %v1869 = vpop.xlane.xlu0 %1868
        %v1870 = vsel %vm1645, %v1862, -inf
        %1871 = vmax.xlane.f32.xlu0 %v1870
        %v1872 = vpop.xlane.xlu0 %1871
        %v1873 = vsub.f32 %v1810, %v1869
        %v1874 = vsub.f32 %v1862, %v1872
        %v1875 = vmul.f32 %v1873, 1.442695
        %v1876 = vpow.pop %v1875
        %v1877 = vmul.f32 %v1874, 1.442695
        %v1878 = vpow.pop %v1877
        %v1879 = vsel %vm1645, %v1876, 0.0
        %1880 = vadd.xlane.f32.xlu0 %v1879
        %v1881 = vpop.xlane.xlu0 %1880
        %v1882 = vsel %vm1645, %v1878, 0.0
        %1883 = vadd.xlane.f32.xlu0 %v1882
        %v1884 = vpop.xlane.xlu0 %1883
        %v1885 = vrcp.pop %v1881
        %v1886 = vrcp.pop %v1884
        %v1887 = vmul.f32 %v1876, %v1885
        %v1888 = vmul.f32 %v1878, %v1886
        %v1889 = vpack.c.bf16 %v1887, %v1887
        %v1890 = vpack.c.bf16 %v1888, %v1888
        %1892 = vrot.lane.b32.xlu0 %v1536, 64
        %v1893 = vpop.permute.xlu0 %1892
        %v1895 = vsel %vm1645, %v1889, 0
        %v1898 = vsel %vm1673, %v1893, 0
        %1900 = vmatprep.subr.bf16.mxu0 0
        %1901 = vmatpush1.bf16.msra.mxu0 %v1898
        %1902 = vmatprep.subr.bf16.mxu0 0
        %1903 = vmatpush1.bf16.msra.mxu0 0
        %1904 = vmatprep.subr.bf16.mxu0 0
        %1905 = vmatpush1.bf16.msra.mxu0 0
        %1906 = vmatprep.subr.bf16.mxu0 0
        %1907 = vmatpush1.bf16.msra.mxu0 0
        %1908 = vmatprep.subr.bf16.mxu0 0
        %1909 = vmatpush1.bf16.msra.mxu0 0
        %1910 = vmatprep.subr.bf16.mxu0 0
        %1911 = vmatpush1.bf16.msra.mxu0 0
        %1912 = vmatprep.subr.bf16.mxu0 0
        %1913 = vmatpush1.bf16.msra.mxu0 0
        %1914 = vmatprep.subr.bf16.mxu0 0
        %1915 = vmatpush1.bf16.msra.mxu0 0
        %1916 = vmatprep.subr.bf16.mxu0 0
        %1917 = vmatpush1.bf16.msra.mxu0 0
        %1918 = vmatprep.subr.bf16.mxu0 0
        %1919 = vmatpush1.bf16.msra.mxu0 0
        %1920 = vmatprep.subr.bf16.mxu0 0
        %1921 = vmatpush1.bf16.msra.mxu0 0
        %1922 = vmatprep.subr.bf16.mxu0 0
        %1923 = vmatpush1.bf16.msra.mxu0 0
        %1924 = vmatprep.subr.bf16.mxu0 0
        %1925 = vmatpush1.bf16.msra.mxu0 0
        %1926 = vmatprep.subr.bf16.mxu0 0
        %1927 = vmatpush1.bf16.msra.mxu0 0
        %1928 = vmatprep.subr.bf16.mxu0 0
        %1929 = vmatpush1.bf16.msra.mxu0 0
        %1930 = vmatprep.subr.bf16.mxu0 0
        %1931 = vmatpush1.bf16.msra.mxu0 0
        %1932 = vmatprep.mubr.bf16.mxu0 0
        %1933 = vmatmul.mubr.bf16.gmra.mrb[0].mxu0 %v1895
        %v1934 = vpop.f32.mrb[0].mxu0
        %v1935 = vadd.f32 0.0, %v1934
        %v1936 = vpop.f32.mrb[0].mxu0
        %v1937 = vpop.f32.mrb[0].mxu0
        %v1938 = vpop.f32.mrb[0].mxu0
        %1939 = vdwg.mxu0
        %1941 = vrot.lane.b32.xlu0 %v1537, 64
        %v1942 = vpop.permute.xlu0 %1941
        %v1944 = vsel %vm1645, %v1890, 0
        %v1947 = vsel %vm1673, %v1942, 0
        %1949 = vmatprep.subr.bf16.mxu0 0
        %1950 = vmatpush1.bf16.msra.mxu0 %v1947
        %1951 = vmatprep.subr.bf16.mxu0 0
        %1952 = vmatpush1.bf16.msra.mxu0 0
        %1953 = vmatprep.subr.bf16.mxu0 0
        %1954 = vmatpush1.bf16.msra.mxu0 0
        %1955 = vmatprep.subr.bf16.mxu0 0
        %1956 = vmatpush1.bf16.msra.mxu0 0
        %1957 = vmatprep.subr.bf16.mxu0 0
        %1958 = vmatpush1.bf16.msra.mxu0 0
        %1959 = vmatprep.subr.bf16.mxu0 0
        %1960 = vmatpush1.bf16.msra.mxu0 0
        %1961 = vmatprep.subr.bf16.mxu0 0
        %1962 = vmatpush1.bf16.msra.mxu0 0
        %1963 = vmatprep.subr.bf16.mxu0 0
        %1964 = vmatpush1.bf16.msra.mxu0 0
        %1965 = vmatprep.subr.bf16.mxu0 0
        %1966 = vmatpush1.bf16.msra.mxu0 0
        %1967 = vmatprep.subr.bf16.mxu0 0
        %1968 = vmatpush1.bf16.msra.mxu0 0
        %1969 = vmatprep.subr.bf16.mxu0 0
        %1970 = vmatpush1.bf16.msra.mxu0 0
        %1971 = vmatprep.subr.bf16.mxu0 0
        %1972 = vmatpush1.bf16.msra.mxu0 0
        %1973 = vmatprep.subr.bf16.mxu0 0
        %1974 = vmatpush1.bf16.msra.mxu0 0
        %1975 = vmatprep.subr.bf16.mxu0 0
        %1976 = vmatpush1.bf16.msra.mxu0 0
        %1977 = vmatprep.subr.bf16.mxu0 0
        %1978 = vmatpush1.bf16.msra.mxu0 0
        %1979 = vmatprep.subr.bf16.mxu0 0
        %1980 = vmatpush1.bf16.msra.mxu0 0
        %1981 = vmatprep.mubr.bf16.mxu0 0
        %1982 = vmatmul.mubr.bf16.gmra.mrb[0].mxu0 %v1944
        %v1983 = vpop.f32.mrb[0].mxu0
        %v1984 = vadd.f32 0.0, %v1983
        %v1985 = vpop.f32.mrb[0].mxu0
        %v1986 = vpop.f32.mrb[0].mxu0
        %v1987 = vpop.f32.mrb[0].mxu0
        %1988 = vdwg.mxu0
        %1991 = vrot.lane.b32.xlu0 %v1935, 64
        %v1992 = vpop.permute.xlu0 %1991
        %1993 = vrot.lane.b32.xlu0 %v1984, 64
        %v1994 = vpop.permute.xlu0 %1993
        %v1997 = vsel %vm1552, %v1712, %v1992
        %v1998 = vsel %vm1552, %v1758, %v1994
        %v1999 = vpack.c.bf16 %v1998, %v1997
        %v2000 = vld [vmem:[%s815] sm:$0xf]
        %v2001 = vld [vmem:[%s815 + $0x4] sm:$0xf]
        %v2002 = vld [vmem:[%s815 + $0x8] sm:$0xf]
        %v2003 = vld [vmem:[%s815 + $0xc] sm:$0xf]
        %v2004 = vld [vmem:[%s815 + $0x10] sm:$0xf]
        %v2005 = vld [vmem:[%s815 + $0x14] sm:$0xf]
        %v2006 = vld [vmem:[%s815 + $0x18] sm:$0xf]
        %v2007 = vld [vmem:[%s815 + $0x1c] sm:$0xf]
        %v2008 = vld [vmem:[%s815 + $0x20] sm:$0xf]
        %v2009 = vld [vmem:[%s815 + $0x24] sm:$0xf]
        %v2010 = vld [vmem:[%s815 + $0x28] sm:$0xf]
        %v2011 = vld [vmem:[%s815 + $0x2c] sm:$0xf]
        %v2012 = vld [vmem:[%s815 + $0x30] sm:$0xf]
        %v2013 = vld [vmem:[%s815 + $0x34] sm:$0xf]
        %v2014 = vld [vmem:[%s815 + $0x38] sm:$0xf]
        %v2015 = vld [vmem:[%s815 + $0x3c] sm:$0xf]
        %v2016 = vld [vmem:[%s943] sm:$0x1]
        %v2018 = vlaneseq
        %v2019 = vshrl.u32 %v2018, 7
        %v2020 = vsub.s32 0, %v2019
        %v2021 = vrot.slane %v2016, %v2020
        %v2039 = vunpack.c.l.b16 %v2000
        %v2040 = vunpack.c.l.b16 %v2001
        %v2041 = vunpack.c.l.b16 %v2002
        %v2042 = vunpack.c.l.b16 %v2003
        %v2043 = vunpack.c.l.b16 %v2004
        %v2044 = vunpack.c.l.b16 %v2005
        %v2045 = vunpack.c.l.b16 %v2006
        %v2046 = vunpack.c.l.b16 %v2007
        %v2047 = vunpack.c.l.b16 %v2008
        %v2048 = vunpack.c.l.b16 %v2009
        %v2049 = vunpack.c.l.b16 %v2010
        %v2050 = vunpack.c.l.b16 %v2011
        %v2051 = vunpack.c.l.b16 %v2012
        %v2052 = vunpack.c.l.b16 %v2013
        %v2053 = vunpack.c.l.b16 %v2014
        %v2054 = vunpack.c.l.b16 %v2015
        %v2055 = vpack.c.b16 %v2040, %v2039
        %v2056 = vpack.c.b16 %v2042, %v2041
        %v2057 = vpack.c.b16 %v2044, %v2043
        %v2058 = vpack.c.b16 %v2046, %v2045
        %v2059 = vpack.c.b16 %v2048, %v2047
        %v2060 = vpack.c.b16 %v2050, %v2049
        %v2061 = vpack.c.b16 %v2052, %v2051
        %v2062 = vpack.c.b16 %v2054, %v2053
        %2071 = vmatprep.subr.bf16.mxu0 0
        %2072 = vmatpush1.bf16.msra.mxu0 %v2055
        %2073 = vmatprep.subr.bf16.mxu0 0
        %2074 = vmatpush1.bf16.msra.mxu0 %v2056
        %2075 = vmatprep.subr.bf16.mxu0 0
        %2076 = vmatpush1.bf16.msra.mxu0 %v2057
        %2077 = vmatprep.subr.bf16.mxu0 0
        %2078 = vmatpush1.bf16.msra.mxu0 %v2058
        %2079 = vmatprep.subr.bf16.mxu0 0
        %2080 = vmatpush1.bf16.msra.mxu0 %v2059
        %2081 = vmatprep.subr.bf16.mxu0 0
        %2082 = vmatpush1.bf16.msra.mxu0 %v2060
        %2083 = vmatprep.subr.bf16.mxu0 0
        %2084 = vmatpush1.bf16.msra.mxu0 %v2061
        %2085 = vmatprep.subr.bf16.mxu0 0
        %2086 = vmatpush1.bf16.msra.mxu0 %v2062
        %2087 = vmatprep.subr.bf16.mxu0 0
        %2088 = vmatpush1.bf16.msra.mxu0 0
        %2089 = vmatprep.subr.bf16.mxu0 0
        %2090 = vmatpush1.bf16.msra.mxu0 0
        %2091 = vmatprep.subr.bf16.mxu0 0
        %2092 = vmatpush1.bf16.msra.mxu0 0
        %2093 = vmatprep.subr.bf16.mxu0 0
        %2094 = vmatpush1.bf16.msra.mxu0 0
        %2095 = vmatprep.subr.bf16.mxu0 0
        %2096 = vmatpush1.bf16.msra.mxu0 0
        %2097 = vmatprep.subr.bf16.mxu0 0
        %2098 = vmatpush1.bf16.msra.mxu0 0
        %2099 = vmatprep.subr.bf16.mxu0 0
        %2100 = vmatpush1.bf16.msra.mxu0 0
        %2101 = vmatprep.subr.bf16.mxu0 0
        %2102 = vmatpush1.bf16.msra.mxu0 0
        %2103 = vmatprep.mubr.bf16.mxu0 0
        %2104 = vmatmul.mubr.bf16.gmra.mrb[0].mxu0 %v1999
        %v2105 = vpop.f32.mrb[0].mxu0
        %v2106 = vadd.f32 %v2021, %v2105
        %v2107 = vpop.f32.mrb[0].mxu0
        %v2108 = vpop.f32.mrb[0].mxu0
        %v2109 = vadd.f32 %v2021, %v2108
        %v2110 = vpop.f32.mrb[0].mxu0
        %2111 = vdwg.mxu0
        %v2112 = vadd.f32 %v2106, %v1266
        %v2113 = vadd.f32 %v2109, %v1267
        %v2114 = vld [vmem:[%s946] sm:$0x1]
        %v2115 = vld [vmem:[%s949] sm:$0x1]
        %2116 = vadd.xlane.f32.xlu0 %v2112
        %v2117 = vpop.xlane.xlu0 %2116
        %2118 = vadd.xlane.f32.xlu0 %v2113
        %v2119 = vpop.xlane.xlu0 %2118
        %v2120 = vrcp.pop 128.0
        %v2121 = vmul.f32 %v2117, %v2120
        %v2122 = vmul.f32 %v2119, %v2120
        %v2123 = vsub.f32 %v2112, %v2121
        %v2124 = vsub.f32 %v2113, %v2122
        %v2125 = vmul.f32 %v2123, %v2123
        %v2126 = vmul.f32 %v2124, %v2124
        %2127 = vadd.xlane.f32.xlu0 %v2125
        %v2128 = vpop.xlane.xlu0 %2127
        %2129 = vadd.xlane.f32.xlu0 %v2126
        %v2130 = vpop.xlane.xlu0 %2129
        %v2131 = vmul.f32 %v2128, %v2120
        %v2132 = vmul.f32 %v2130, %v2120
        %v2133 = vadd.f32 %v2131, 1e-12
        %v2134 = vadd.f32 %v2132, 1e-12
        %v2135 = vrsqrt.pop %v2133
        %v2136 = vrsqrt.pop %v2134
        %v2137 = vmul.f32 %v2123, %v2135
        %v2138 = vmul.f32 %v2124, %v2136
        %v2140 = vlaneseq
        %v2141 = vshrl.u32 %v2140, 7
        %v2142 = vsub.s32 0, %v2141
        %v2143 = vrot.slane %v2114, %v2142
        %v2145 = vmul.f32 %v2137, %v2143
        %v2146 = vmul.f32 %v2138, %v2143
        %v2148 = vlaneseq
        %v2149 = vshrl.u32 %v2148, 7
        %v2150 = vsub.s32 0, %v2149
        %v2151 = vrot.slane %v2115, %v2150
        %v2153 = vadd.f32 %v2145, %v2151
        %v2154 = vadd.f32 %v2146, %v2151
        %v2155 = vpack.c.bf16 %v2154, %v2153
        %v2156 = vld [vmem:[%s824] sm:$0xff]
        %v2157 = vld [vmem:[%s824 + $0x8] sm:$0xff]
        %v2158 = vld [vmem:[%s824 + $0x10] sm:$0xff]
        %v2159 = vld [vmem:[%s824 + $0x18] sm:$0xff]
        %v2160 = vld [vmem:[%s824 + $0x20] sm:$0xff]
        %v2161 = vld [vmem:[%s824 + $0x28] sm:$0xff]
        %v2162 = vld [vmem:[%s824 + $0x30] sm:$0xff]
        %v2163 = vld [vmem:[%s824 + $0x38] sm:$0xff]
        %v2164 = vld [vmem:[%s824 + $0x40] sm:$0xff]
        %v2165 = vld [vmem:[%s824 + $0x48] sm:$0xff]
        %v2166 = vld [vmem:[%s824 + $0x50] sm:$0xff]
        %v2167 = vld [vmem:[%s824 + $0x58] sm:$0xff]
        %v2168 = vld [vmem:[%s824 + $0x60] sm:$0xff]
        %v2169 = vld [vmem:[%s824 + $0x68] sm:$0xff]
        %v2170 = vld [vmem:[%s824 + $0x70] sm:$0xff]
        %v2171 = vld [vmem:[%s824 + $0x78] sm:$0xff]
        %v2172 = vld [vmem:[%s824 + $0x80] sm:$0xff]
        %v2173 = vld [vmem:[%s824 + $0x88] sm:$0xff]
        %v2174 = vld [vmem:[%s824 + $0x90] sm:$0xff]
        %v2175 = vld [vmem:[%s824 + $0x98] sm:$0xff]
        %v2176 = vld [vmem:[%s824 + $0xa0] sm:$0xff]
        %v2177 = vld [vmem:[%s824 + $0xa8] sm:$0xff]
        %v2178 = vld [vmem:[%s824 + $0xb0] sm:$0xff]
        %v2179 = vld [vmem:[%s824 + $0xb8] sm:$0xff]
        %v2180 = vld [vmem:[%s824 + $0xc0] sm:$0xff]
        %v2181 = vld [vmem:[%s824 + $0xc8] sm:$0xff]
        %v2182 = vld [vmem:[%s824 + $0xd0] sm:$0xff]
        %v2183 = vld [vmem:[%s824 + $0xd8] sm:$0xff]
        %v2184 = vld [vmem:[%s824 + $0xe0] sm:$0xff]
        %v2185 = vld [vmem:[%s824 + $0xe8] sm:$0xff]
        %v2186 = vld [vmem:[%s824 + $0xf0] sm:$0xff]
        %v2187 = vld [vmem:[%s824 + $0xf8] sm:$0xff]
        %v2188 = vld [vmem:[%s953] sm:$0xf]
        %v2190 = vlaneseq
        %v2191 = vshrl.u32 %v2190, 7
        %v2192 = vsub.s32 0, %v2191
        %v2193 = vrot.slane %v2188, %v2192
        %v2194 = vlaneseq
        %v2195 = vshrl.u32 %v2194, 7
        %v2196 = vsub.s32 1, %v2195
        %v2197 = vrot.slane %v2188, %v2196
        %v2198 = vlaneseq
        %v2199 = vshrl.u32 %v2198, 7
        %v2200 = vsub.s32 2, %v2199
        %v2201 = vrot.slane %v2188, %v2200
        %v2202 = vlaneseq
        %v2203 = vshrl.u32 %v2202, 7
        %v2204 = vsub.s32 3, %v2203
        %v2205 = vrot.slane %v2188, %v2204
        %v2242 = vunpack.c.l.b16 %v2156
        %v2243 = vunpack.c.h.b16 %v2156
        %v2244 = vunpack.c.l.b16 %v2157
        %v2245 = vunpack.c.h.b16 %v2157
        %v2246 = vunpack.c.l.b16 %v2158
        %v2247 = vunpack.c.h.b16 %v2158
        %v2248 = vunpack.c.l.b16 %v2159
        %v2249 = vunpack.c.h.b16 %v2159
        %v2250 = vunpack.c.l.b16 %v2160
        %v2251 = vunpack.c.h.b16 %v2160
        %v2252 = vunpack.c.l.b16 %v2161
        %v2253 = vunpack.c.h.b16 %v2161
        %v2254 = vunpack.c.l.b16 %v2162
        %v2255 = vunpack.c.h.b16 %v2162
        %v2256 = vunpack.c.l.b16 %v2163
        %v2257 = vunpack.c.h.b16 %v2163
        %v2258 = vunpack.c.l.b16 %v2164
        %v2259 = vunpack.c.h.b16 %v2164
        %v2260 = vunpack.c.l.b16 %v2165
        %v2261 = vunpack.c.h.b16 %v2165
        %v2262 = vunpack.c.l.b16 %v2166
        %v2263 = vunpack.c.h.b16 %v2166
        %v2264 = vunpack.c.l.b16 %v2167
        %v2265 = vunpack.c.h.b16 %v2167
        %v2266 = vunpack.c.l.b16 %v2168
        %v2267 = vunpack.c.h.b16 %v2168
        %v2268 = vunpack.c.l.b16 %v2169
        %v2269 = vunpack.c.h.b16 %v2169
        %v2270 = vunpack.c.l.b16 %v2170
        %v2271 = vunpack.c.h.b16 %v2170
        %v2272 = vunpack.c.l.b16 %v2171
        %v2273 = vunpack.c.h.b16 %v2171
        %v2274 = vunpack.c.l.b16 %v2172
        %v2275 = vunpack.c.h.b16 %v2172
        %v2276 = vunpack.c.l.b16 %v2173
        %v2277 = vunpack.c.h.b16 %v2173
        %v2278 = vunpack.c.l.b16 %v2174
        %v2279 = vunpack.c.h.b16 %v2174
        %v2280 = vunpack.c.l.b16 %v2175
        %v2281 = vunpack.c.h.b16 %v2175
        %v2282 = vunpack.c.l.b16 %v2176
        %v2283 = vunpack.c.h.b16 %v2176
        %v2284 = vunpack.c.l.b16 %v2177
        %v2285 = vunpack.c.h.b16 %v2177
        %v2286 = vunpack.c.l.b16 %v2178
        %v2287 = vunpack.c.h.b16 %v2178
        %v2288 = vunpack.c.l.b16 %v2179
        %v2289 = vunpack.c.h.b16 %v2179
        %v2290 = vunpack.c.l.b16 %v2180
        %v2291 = vunpack.c.h.b16 %v2180
        %v2292 = vunpack.c.l.b16 %v2181
        %v2293 = vunpack.c.h.b16 %v2181
        %v2294 = vunpack.c.l.b16 %v2182
        %v2295 = vunpack.c.h.b16 %v2182
        %v2296 = vunpack.c.l.b16 %v2183
        %v2297 = vunpack.c.h.b16 %v2183
        %v2298 = vunpack.c.l.b16 %v2184
        %v2299 = vunpack.c.h.b16 %v2184
        %v2300 = vunpack.c.l.b16 %v2185
        %v2301 = vunpack.c.h.b16 %v2185
        %v2302 = vunpack.c.l.b16 %v2186
        %v2303 = vunpack.c.h.b16 %v2186
        %v2304 = vunpack.c.l.b16 %v2187
        %v2305 = vunpack.c.h.b16 %v2187
        %v2306 = vpack.c.b16 %v2246, %v2242
        %v2307 = vpack.c.b16 %v2247, %v2243
        %v2308 = vpack.c.b16 %v2248, %v2244
        %v2309 = vpack.c.b16 %v2249, %v2245
        %v2310 = vpack.c.b16 %v2254, %v2250
        %v2311 = vpack.c.b16 %v2255, %v2251
        %v2312 = vpack.c.b16 %v2256, %v2252
        %v2313 = vpack.c.b16 %v2257, %v2253
        %v2314 = vpack.c.b16 %v2262, %v2258
        %v2315 = vpack.c.b16 %v2263, %v2259
        %v2316 = vpack.c.b16 %v2264, %v2260
        %v2317 = vpack.c.b16 %v2265, %v2261
        %v2318 = vpack.c.b16 %v2270, %v2266
        %v2319 = vpack.c.b16 %v2271, %v2267
        %v2320 = vpack.c.b16 %v2272, %v2268
        %v2321 = vpack.c.b16 %v2273, %v2269
        %v2322 = vpack.c.b16 %v2278, %v2274
        %v2323 = vpack.c.b16 %v2279, %v2275
        %v2324 = vpack.c.b16 %v2280, %v2276
        %v2325 = vpack.c.b16 %v2281, %v2277
        %v2326 = vpack.c.b16 %v2286, %v2282
        %v2327 = vpack.c.b16 %v2287, %v2283
        %v2328 = vpack.c.b16 %v2288, %v2284
        %v2329 = vpack.c.b16 %v2289, %v2285
        %v2330 = vpack.c.b16 %v2294, %v2290
        %v2331 = vpack.c.b16 %v2295, %v2291
        %v2332 = vpack.c.b16 %v2296, %v2292
        %v2333 = vpack.c.b16 %v2297, %v2293
        %v2334 = vpack.c.b16 %v2302, %v2298
        %v2335 = vpack.c.b16 %v2303, %v2299
        %v2336 = vpack.c.b16 %v2304, %v2300
        %v2337 = vpack.c.b16 %v2305, %v2301
        %2370 = vmatprep.subr.bf16.mxu0 %v2307
        %2371 = vmatpush1.bf16.msra.mxu0 %v2306
        %2372 = vmatprep.subr.bf16.mxu0 %v2311
        %2373 = vmatpush1.bf16.msra.mxu0 %v2310
        %2374 = vmatprep.subr.bf16.mxu0 %v2315
        %2375 = vmatpush1.bf16.msra.mxu0 %v2314
        %2376 = vmatprep.subr.bf16.mxu0 %v2319
        %2377 = vmatpush1.bf16.msra.mxu0 %v2318
        %2378 = vmatprep.subr.bf16.mxu0 %v2323
        %2379 = vmatpush1.bf16.msra.mxu0 %v2322
        %2380 = vmatprep.subr.bf16.mxu0 %v2327
        %2381 = vmatpush1.bf16.msra.mxu0 %v2326
        %2382 = vmatprep.subr.bf16.mxu0 %v2331
        %2383 = vmatpush1.bf16.msra.mxu0 %v2330
        %2384 = vmatprep.subr.bf16.mxu0 %v2335
        %2385 = vmatpush1.bf16.msra.mxu0 %v2334
        %2386 = vmatprep.subr.bf16.mxu0 0
        %2387 = vmatpush1.bf16.msra.mxu0 0
        %2388 = vmatprep.subr.bf16.mxu0 0
        %2389 = vmatpush1.bf16.msra.mxu0 0
        %2390 = vmatprep.subr.bf16.mxu0 0
        %2391 = vmatpush1.bf16.msra.mxu0 0
        %2392 = vmatprep.subr.bf16.mxu0 0
        %2393 = vmatpush1.bf16.msra.mxu0 0
        %2394 = vmatprep.subr.bf16.mxu0 0
        %2395 = vmatpush1.bf16.msra.mxu0 0
        %2396 = vmatprep.subr.bf16.mxu0 0
        %2397 = vmatpush1.bf16.msra.mxu0 0
        %2398 = vmatprep.subr.bf16.mxu0 0
        %2399 = vmatpush1.bf16.msra.mxu0 0
        %2400 = vmatprep.subr.bf16.mxu0 0
        %2401 = vmatpush1.bf16.msra.mxu0 0
        %2402 = vmatprep.mubr.bf16.mxu0 0
        %2403 = vmatmul.mubr.bf16.gmra.mrb[0].mxu0 %v2155
        %v2404 = vpop.f32.mrb[0].mxu0
        %v2405 = vadd.f32 %v2193, %v2404
        %v2406 = vpop.f32.mrb[0].mxu0
        %v2407 = vadd.f32 %v2197, %v2406
        %v2408 = vpop.f32.mrb[0].mxu0
        %v2409 = vadd.f32 %v2193, %v2408
        %v2410 = vpop.f32.mrb[0].mxu0
        %v2411 = vadd.f32 %v2197, %v2410
        %2412 = vdwg.mxu0
        %2413 = vmatprep.subr.bf16.mxu0 %v2309
        %2414 = vmatpush1.bf16.msra.mxu0 %v2308
        %2415 = vmatprep.subr.bf16.mxu0 %v2313
        %2416 = vmatpush1.bf16.msra.mxu0 %v2312
        %2417 = vmatprep.subr.bf16.mxu0 %v2317
        %2418 = vmatpush1.bf16.msra.mxu0 %v2316
        %2419 = vmatprep.subr.bf16.mxu0 %v2321
        %2420 = vmatpush1.bf16.msra.mxu0 %v2320
        %2421 = vmatprep.subr.bf16.mxu0 %v2325
        %2422 = vmatpush1.bf16.msra.mxu0 %v2324
        %2423 = vmatprep.subr.bf16.mxu0 %v2329
        %2424 = vmatpush1.bf16.msra.mxu0 %v2328
        %2425 = vmatprep.subr.bf16.mxu0 %v2333
        %2426 = vmatpush1.bf16.msra.mxu0 %v2332
        %2427 = vmatprep.subr.bf16.mxu0 %v2337
        %2428 = vmatpush1.bf16.msra.mxu0 %v2336
        %2429 = vmatprep.subr.bf16.mxu0 0
        %2430 = vmatpush1.bf16.msra.mxu0 0
        %2431 = vmatprep.subr.bf16.mxu0 0
        %2432 = vmatpush1.bf16.msra.mxu0 0
        %2433 = vmatprep.subr.bf16.mxu0 0
        %2434 = vmatpush1.bf16.msra.mxu0 0
        %2435 = vmatprep.subr.bf16.mxu0 0
        %2436 = vmatpush1.bf16.msra.mxu0 0
        %2437 = vmatprep.subr.bf16.mxu0 0
        %2438 = vmatpush1.bf16.msra.mxu0 0
        %2439 = vmatprep.subr.bf16.mxu0 0
        %2440 = vmatpush1.bf16.msra.mxu0 0
        %2441 = vmatprep.subr.bf16.mxu0 0
        %2442 = vmatpush1.bf16.msra.mxu0 0
        %2443 = vmatprep.subr.bf16.mxu0 0
        %2444 = vmatpush1.bf16.msra.mxu0 0
        %2445 = vmatprep.mubr.bf16.mxu0 0
        %2446 = vmatmul.mubr.bf16.gmra.mrb[0].mxu0 %v2155
        %v2447 = vpop.f32.mrb[0].mxu0
        %v2448 = vadd.f32 %v2201, %v2447
        %v2449 = vpop.f32.mrb[0].mxu0
        %v2450 = vadd.f32 %v2205, %v2449
        %v2451 = vpop.f32.mrb[0].mxu0
        %v2452 = vadd.f32 %v2201, %v2451
        %v2453 = vpop.f32.mrb[0].mxu0
        %v2454 = vadd.f32 %v2205, %v2453
        %2455 = vdwg.mxu0
        %v2456 = vmul.f32 %v2405, 0.5
        %v2457 = vmul.f32 %v2407, 0.5
        %v2458 = vmul.f32 %v2448, 0.5
        %v2459 = vmul.f32 %v2450, 0.5
        %v2460 = vmul.f32 %v2409, 0.5
        %v2461 = vmul.f32 %v2411, 0.5
        %v2462 = vmul.f32 %v2452, 0.5
        %v2463 = vmul.f32 %v2454, 0.5
        %v2464 = vmul.f32 %v2405, 0.044715
        %v2465 = vmul.f32 %v2407, 0.044715
        %v2466 = vmul.f32 %v2448, 0.044715
        %v2467 = vmul.f32 %v2450, 0.044715
        %v2468 = vmul.f32 %v2409, 0.044715
        %v2469 = vmul.f32 %v2411, 0.044715
        %v2470 = vmul.f32 %v2452, 0.044715
        %v2471 = vmul.f32 %v2454, 0.044715
        %v2472 = vmul.f32 %v2464, %v2405
        %v2473 = vmul.f32 %v2465, %v2407
        %v2474 = vmul.f32 %v2466, %v2448
        %v2475 = vmul.f32 %v2467, %v2450
        %v2476 = vmul.f32 %v2468, %v2409
        %v2477 = vmul.f32 %v2469, %v2411
        %v2478 = vmul.f32 %v2470, %v2452
        %v2479 = vmul.f32 %v2471, %v2454
        %v2480 = vmul.f32 %v2472, %v2405
        %v2481 = vmul.f32 %v2473, %v2407
        %v2482 = vmul.f32 %v2474, %v2448
        %v2483 = vmul.f32 %v2475, %v2450
        %v2484 = vmul.f32 %v2476, %v2409
        %v2485 = vmul.f32 %v2477, %v2411
        %v2486 = vmul.f32 %v2478, %v2452
        %v2487 = vmul.f32 %v2479, %v2454
        %v2488 = vadd.f32 %v2405, %v2480
        %v2489 = vadd.f32 %v2407, %v2481
        %v2490 = vadd.f32 %v2448, %v2482
        %v2491 = vadd.f32 %v2450, %v2483
        %v2492 = vadd.f32 %v2409, %v2484
        %v2493 = vadd.f32 %v2411, %v2485
        %v2494 = vadd.f32 %v2452, %v2486
        %v2495 = vadd.f32 %v2454, %v2487
        %v2496 = vmul.f32 %v2488, 0.7978846
        %v2497 = vmul.f32 %v2489, 0.7978846
        %v2498 = vmul.f32 %v2490, 0.7978846
        %v2499 = vmul.f32 %v2491, 0.7978846
        %v2500 = vmul.f32 %v2492, 0.7978846
        %v2501 = vmul.f32 %v2493, 0.7978846
        %v2502 = vmul.f32 %v2494, 0.7978846
        %v2503 = vmul.f32 %v2495, 0.7978846
        %v2504 = vtanh.pop %v2496
        %v2505 = vtanh.pop %v2497
        %v2506 = vtanh.pop %v2498
        %v2507 = vtanh.pop %v2499
        %v2508 = vtanh.pop %v2500
        %v2509 = vtanh.pop %v2501
        %v2510 = vtanh.pop %v2502
        %v2511 = vtanh.pop %v2503
        %v2512 = vadd.f32 %v2504, 1.0
        %v2513 = vadd.f32 %v2505, 1.0
        %v2514 = vadd.f32 %v2506, 1.0
        %v2515 = vadd.f32 %v2507, 1.0
        %v2516 = vadd.f32 %v2508, 1.0
        %v2517 = vadd.f32 %v2509, 1.0
        %v2518 = vadd.f32 %v2510, 1.0
        %v2519 = vadd.f32 %v2511, 1.0
        %v2520 = vmul.f32 %v2456, %v2512
        %v2521 = vmul.f32 %v2457, %v2513
        %v2522 = vmul.f32 %v2458, %v2514
        %v2523 = vmul.f32 %v2459, %v2515
        %v2524 = vmul.f32 %v2460, %v2516
        %v2525 = vmul.f32 %v2461, %v2517
        %v2526 = vmul.f32 %v2462, %v2518
        %v2527 = vmul.f32 %v2463, %v2519
        %v2528 = vpack.c.bf16 %v2524, %v2520
        %v2529 = vpack.c.bf16 %v2525, %v2521
        %v2530 = vpack.c.bf16 %v2526, %v2522
        %v2531 = vpack.c.bf16 %v2527, %v2523
        %v2532 = vld [vmem:[%s833] sm:$0xf]
        %v2533 = vld [vmem:[%s833 + $0x4] sm:$0xf]
        %v2534 = vld [vmem:[%s833 + $0x8] sm:$0xf]
        %v2535 = vld [vmem:[%s833 + $0xc] sm:$0xf]
        %v2536 = vld [vmem:[%s833 + $0x10] sm:$0xf]
        %v2537 = vld [vmem:[%s833 + $0x14] sm:$0xf]
        %v2538 = vld [vmem:[%s833 + $0x18] sm:$0xf]
        %v2539 = vld [vmem:[%s833 + $0x1c] sm:$0xf]
        %v2540 = vld [vmem:[%s833 + $0x20] sm:$0xf]
        %v2541 = vld [vmem:[%s833 + $0x24] sm:$0xf]
        %v2542 = vld [vmem:[%s833 + $0x28] sm:$0xf]
        %v2543 = vld [vmem:[%s833 + $0x2c] sm:$0xf]
        %v2544 = vld [vmem:[%s833 + $0x30] sm:$0xf]
        %v2545 = vld [vmem:[%s833 + $0x34] sm:$0xf]
        %v2546 = vld [vmem:[%s833 + $0x38] sm:$0xf]
        %v2547 = vld [vmem:[%s833 + $0x3c] sm:$0xf]
        %v2548 = vld [vmem:[%s833 + $0x40] sm:$0xf]
        %v2549 = vld [vmem:[%s833 + $0x44] sm:$0xf]
        %v2550 = vld [vmem:[%s833 + $0x48] sm:$0xf]
        %v2551 = vld [vmem:[%s833 + $0x4c] sm:$0xf]
        %v2552 = vld [vmem:[%s833 + $0x50] sm:$0xf]
        %v2553 = vld [vmem:[%s833 + $0x54] sm:$0xf]
        %v2554 = vld [vmem:[%s833 + $0x58] sm:$0xf]
        %v2555 = vld [vmem:[%s833 + $0x5c] sm:$0xf]
        %v2556 = vld [vmem:[%s833 + $0x60] sm:$0xf]
        %v2557 = vld [vmem:[%s833 + $0x64] sm:$0xf]
        %v2558 = vld [vmem:[%s833 + $0x68] sm:$0xf]
        %v2559 = vld [vmem:[%s833 + $0x6c] sm:$0xf]
        %v2560 = vld [vmem:[%s833 + $0x70] sm:$0xf]
        %v2561 = vld [vmem:[%s833 + $0x74] sm:$0xf]
        %v2562 = vld [vmem:[%s833 + $0x78] sm:$0xf]
        %v2563 = vld [vmem:[%s833 + $0x7c] sm:$0xf]
        %v2564 = vld [vmem:[%s833 + $0x80] sm:$0xf]
        %v2565 = vld [vmem:[%s833 + $0x84] sm:$0xf]
        %v2566 = vld [vmem:[%s833 + $0x88] sm:$0xf]
        %v2567 = vld [vmem:[%s833 + $0x8c] sm:$0xf]
        %v2568 = vld [vmem:[%s833 + $0x90] sm:$0xf]
        %v2569 = vld [vmem:[%s833 + $0x94] sm:$0xf]
        %v2570 = vld [vmem:[%s833 + $0x98] sm:$0xf]
        %v2571 = vld [vmem:[%s833 + $0x9c] sm:$0xf]
        %v2572 = vld [vmem:[%s833 + $0xa0] sm:$0xf]
        %v2573 = vld [vmem:[%s833 + $0xa4] sm:$0xf]
        %v2574 = vld [vmem:[%s833 + $0xa8] sm:$0xf]
        %v2575 = vld [vmem:[%s833 + $0xac] sm:$0xf]
        %v2576 = vld [vmem:[%s833 + $0xb0] sm:$0xf]
        %v2577 = vld [vmem:[%s833 + $0xb4] sm:$0xf]
        %v2578 = vld [vmem:[%s833 + $0xb8] sm:$0xf]
        %v2579 = vld [vmem:[%s833 + $0xbc] sm:$0xf]
        %v2580 = vld [vmem:[%s833 + $0xc0] sm:$0xf]
        %v2581 = vld [vmem:[%s833 + $0xc4] sm:$0xf]
        %v2582 = vld [vmem:[%s833 + $0xc8] sm:$0xf]
        %v2583 = vld [vmem:[%s833 + $0xcc] sm:$0xf]
        %v2584 = vld [vmem:[%s833 + $0xd0] sm:$0xf]
        %v2585 = vld [vmem:[%s833 + $0xd4] sm:$0xf]
        %v2586 = vld [vmem:[%s833 + $0xd8] sm:$0xf]
        %v2587 = vld [vmem:[%s833 + $0xdc] sm:$0xf]
        %v2588 = vld [vmem:[%s833 + $0xe0] sm:$0xf]
        %v2589 = vld [vmem:[%s833 + $0xe4] sm:$0xf]
        %v2590 = vld [vmem:[%s833 + $0xe8] sm:$0xf]
        %v2591 = vld [vmem:[%s833 + $0xec] sm:$0xf]
        %v2592 = vld [vmem:[%s833 + $0xf0] sm:$0xf]
        %v2593 = vld [vmem:[%s833 + $0xf4] sm:$0xf]
        %v2594 = vld [vmem:[%s833 + $0xf8] sm:$0xf]
        %v2595 = vld [vmem:[%s833 + $0xfc] sm:$0xf]
        %v2596 = vld [vmem:[%s956] sm:$0x1]
        %v2598 = vlaneseq
        %v2599 = vshrl.u32 %v2598, 7
        %v2600 = vsub.s32 0, %v2599
        %v2601 = vrot.slane %v2596, %v2600
        %v2667 = vunpack.c.l.b16 %v2532
        %v2668 = vunpack.c.l.b16 %v2533
        %v2669 = vunpack.c.l.b16 %v2534
        %v2670 = vunpack.c.l.b16 %v2535
        %v2671 = vunpack.c.l.b16 %v2536
        %v2672 = vunpack.c.l.b16 %v2537
        %v2673 = vunpack.c.l.b16 %v2538
        %v2674 = vunpack.c.l.b16 %v2539
        %v2675 = vunpack.c.l.b16 %v2540
        %v2676 = vunpack.c.l.b16 %v2541
        %v2677 = vunpack.c.l.b16 %v2542
        %v2678 = vunpack.c.l.b16 %v2543
        %v2679 = vunpack.c.l.b16 %v2544
        %v2680 = vunpack.c.l.b16 %v2545
        %v2681 = vunpack.c.l.b16 %v2546
        %v2682 = vunpack.c.l.b16 %v2547
        %v2683 = vunpack.c.l.b16 %v2548
        %v2684 = vunpack.c.l.b16 %v2549
        %v2685 = vunpack.c.l.b16 %v2550
        %v2686 = vunpack.c.l.b16 %v2551
        %v2687 = vunpack.c.l.b16 %v2552
        %v2688 = vunpack.c.l.b16 %v2553
        %v2689 = vunpack.c.l.b16 %v2554
        %v2690 = vunpack.c.l.b16 %v2555
        %v2691 = vunpack.c.l.b16 %v2556
        %v2692 = vunpack.c.l.b16 %v2557
        %v2693 = vunpack.c.l.b16 %v2558
        %v2694 = vunpack.c.l.b16 %v2559
        %v2695 = vunpack.c.l.b16 %v2560
        %v2696 = vunpack.c.l.b16 %v2561
        %v2697 = vunpack.c.l.b16 %v2562
        %v2698 = vunpack.c.l.b16 %v2563
        %v2699 = vunpack.c.l.b16 %v2564
        %v2700 = vunpack.c.l.b16 %v2565
        %v2701 = vunpack.c.l.b16 %v2566
        %v2702 = vunpack.c.l.b16 %v2567
        %v2703 = vunpack.c.l.b16 %v2568
        %v2704 = vunpack.c.l.b16 %v2569
        %v2705 = vunpack.c.l.b16 %v2570
        %v2706 = vunpack.c.l.b16 %v2571
        %v2707 = vunpack.c.l.b16 %v2572
        %v2708 = vunpack.c.l.b16 %v2573
        %v2709 = vunpack.c.l.b16 %v2574
        %v2710 = vunpack.c.l.b16 %v2575
        %v2711 = vunpack.c.l.b16 %v2576
        %v2712 = vunpack.c.l.b16 %v2577
        %v2713 = vunpack.c.l.b16 %v2578
        %v2714 = vunpack.c.l.b16 %v2579
        %v2715 = vunpack.c.l.b16 %v2580
        %v2716 = vunpack.c.l.b16 %v2581
        %v2717 = vunpack.c.l.b16 %v2582
        %v2718 = vunpack.c.l.b16 %v2583
        %v2719 = vunpack.c.l.b16 %v2584
        %v2720 = vunpack.c.l.b16 %v2585
        %v2721 = vunpack.c.l.b16 %v2586
        %v2722 = vunpack.c.l.b16 %v2587
        %v2723 = vunpack.c.l.b16 %v2588
        %v2724 = vunpack.c.l.b16 %v2589
        %v2725 = vunpack.c.l.b16 %v2590
        %v2726 = vunpack.c.l.b16 %v2591
        %v2727 = vunpack.c.l.b16 %v2592
        %v2728 = vunpack.c.l.b16 %v2593
        %v2729 = vunpack.c.l.b16 %v2594
        %v2730 = vunpack.c.l.b16 %v2595
        %v2731 = vpack.c.b16 %v2668, %v2667
        %v2732 = vpack.c.b16 %v2670, %v2669
        %v2733 = vpack.c.b16 %v2672, %v2671
        %v2734 = vpack.c.b16 %v2674, %v2673
        %v2735 = vpack.c.b16 %v2676, %v2675
        %v2736 = vpack.c.b16 %v2678, %v2677
        %v2737 = vpack.c.b16 %v2680, %v2679
        %v2738 = vpack.c.b16 %v2682, %v2681
        %v2739 = vpack.c.b16 %v2684, %v2683
        %v2740 = vpack.c.b16 %v2686, %v2685
        %v2741 = vpack.c.b16 %v2688, %v2687
        %v2742 = vpack.c.b16 %v2690, %v2689
        %v2743 = vpack.c.b16 %v2692, %v2691
        %v2744 = vpack.c.b16 %v2694, %v2693
        %v2745 = vpack.c.b16 %v2696, %v2695
        %v2746 = vpack.c.b16 %v2698, %v2697
        %v2747 = vpack.c.b16 %v2700, %v2699
        %v2748 = vpack.c.b16 %v2702, %v2701
        %v2749 = vpack.c.b16 %v2704, %v2703
        %v2750 = vpack.c.b16 %v2706, %v2705
        %v2751 = vpack.c.b16 %v2708, %v2707
        %v2752 = vpack.c.b16 %v2710, %v2709
        %v2753 = vpack.c.b16 %v2712, %v2711
        %v2754 = vpack.c.b16 %v2714, %v2713
        %v2755 = vpack.c.b16 %v2716, %v2715
        %v2756 = vpack.c.b16 %v2718, %v2717
        %v2757 = vpack.c.b16 %v2720, %v2719
        %v2758 = vpack.c.b16 %v2722, %v2721
        %v2759 = vpack.c.b16 %v2724, %v2723
        %v2760 = vpack.c.b16 %v2726, %v2725
        %v2761 = vpack.c.b16 %v2728, %v2727
        %v2762 = vpack.c.b16 %v2730, %v2729
        %2795 = vmatprep.subr.bf16.mxu0 0
        %2796 = vmatpush1.bf16.msra.mxu0 %v2731
        %2797 = vmatprep.subr.bf16.mxu0 0
        %2798 = vmatpush1.bf16.msra.mxu0 %v2732
        %2799 = vmatprep.subr.bf16.mxu0 0
        %2800 = vmatpush1.bf16.msra.mxu0 %v2733
        %2801 = vmatprep.subr.bf16.mxu0 0
        %2802 = vmatpush1.bf16.msra.mxu0 %v2734
        %2803 = vmatprep.subr.bf16.mxu0 0
        %2804 = vmatpush1.bf16.msra.mxu0 %v2735
        %2805 = vmatprep.subr.bf16.mxu0 0
        %2806 = vmatpush1.bf16.msra.mxu0 %v2736
        %2807 = vmatprep.subr.bf16.mxu0 0
        %2808 = vmatpush1.bf16.msra.mxu0 %v2737
        %2809 = vmatprep.subr.bf16.mxu0 0
        %2810 = vmatpush1.bf16.msra.mxu0 %v2738
        %2811 = vmatprep.subr.bf16.mxu0 0
        %2812 = vmatpush1.bf16.msra.mxu0 %v2739
        %2813 = vmatprep.subr.bf16.mxu0 0
        %2814 = vmatpush1.bf16.msra.mxu0 %v2740
        %2815 = vmatprep.subr.bf16.mxu0 0
        %2816 = vmatpush1.bf16.msra.mxu0 %v2741
        %2817 = vmatprep.subr.bf16.mxu0 0
        %2818 = vmatpush1.bf16.msra.mxu0 %v2742
        %2819 = vmatprep.subr.bf16.mxu0 0
        %2820 = vmatpush1.bf16.msra.mxu0 %v2743
        %2821 = vmatprep.subr.bf16.mxu0 0
        %2822 = vmatpush1.bf16.msra.mxu0 %v2744
        %2823 = vmatprep.subr.bf16.mxu0 0
        %2824 = vmatpush1.bf16.msra.mxu0 %v2745
        %2825 = vmatprep.subr.bf16.mxu0 0
        %2826 = vmatpush1.bf16.msra.mxu0 %v2746
        %2827 = vmatprep.mubr.bf16.mxu0 %v2529
        %2828 = vmatmul.mubr.bf16.gmra.mrb[0].mxu0 %v2528
        %v2829 = vpop.f32.mrb[0].mxu0
        %v2830 = vadd.f32 %v2601, %v2829
        %v2831 = vpop.f32.mrb[0].mxu0
        %v2832 = vpop.f32.mrb[0].mxu0
        %v2833 = vadd.f32 %v2601, %v2832
        %v2834 = vpop.f32.mrb[0].mxu0
        %2835 = vdwg.mxu0
        %2836 = vmatprep.subr.bf16.mxu0 0
        %2837 = vmatpush1.bf16.msra.mxu0 %v2747
        %2838 = vmatprep.subr.bf16.mxu0 0
        %2839 = vmatpush1.bf16.msra.mxu0 %v2748
        %2840 = vmatprep.subr.bf16.mxu0 0
        %2841 = vmatpush1.bf16.msra.mxu0 %v2749
        %2842 = vmatprep.subr.bf16.mxu0 0
        %2843 = vmatpush1.bf16.msra.mxu0 %v2750
        %2844 = vmatprep.subr.bf16.mxu0 0
        %2845 = vmatpush1.bf16.msra.mxu0 %v2751
        %2846 = vmatprep.subr.bf16.mxu0 0
        %2847 = vmatpush1.bf16.msra.mxu0 %v2752
        %2848 = vmatprep.subr.bf16.mxu0 0
        %2849 = vmatpush1.bf16.msra.mxu0 %v2753
        %2850 = vmatprep.subr.bf16.mxu0 0
        %2851 = vmatpush1.bf16.msra.mxu0 %v2754
        %2852 = vmatprep.subr.bf16.mxu0 0
        %2853 = vmatpush1.bf16.msra.mxu0 %v2755
        %2854 = vmatprep.subr.bf16.mxu0 0
        %2855 = vmatpush1.bf16.msra.mxu0 %v2756
        %2856 = vmatprep.subr.bf16.mxu0 0
        %2857 = vmatpush1.bf16.msra.mxu0 %v2757
        %2858 = vmatprep.subr.bf16.mxu0 0
        %2859 = vmatpush1.bf16.msra.mxu0 %v2758
        %2860 = vmatprep.subr.bf16.mxu0 0
        %2861 = vmatpush1.bf16.msra.mxu0 %v2759
        %2862 = vmatprep.subr.bf16.mxu0 0
        %2863 = vmatpush1.bf16.msra.mxu0 %v2760
        %2864 = vmatprep.subr.bf16.mxu0 0
        %2865 = vmatpush1.bf16.msra.mxu0 %v2761
        %2866 = vmatprep.subr.bf16.mxu0 0
        %2867 = vmatpush1.bf16.msra.mxu0 %v2762
        %2868 = vmatprep.mubr.bf16.mxu0 %v2531
        %2869 = vmatmul.mubr.bf16.gmra.mrb[0].mxu0 %v2530
        %v2870 = vpop.f32.mrb[0].mxu0
        %v2871 = vadd.f32 %v2830, %v2870
        %v2872 = vpop.f32.mrb[0].mxu0
        %v2873 = vpop.f32.mrb[0].mxu0
        %v2874 = vadd.f32 %v2833, %v2873
        %v2875 = vpop.f32.mrb[0].mxu0
        %2876 = vdwg.mxu0
        %v2877 = vadd.f32 %v2871, %v2153
        %v2878 = vadd.f32 %v2874, %v2154
        %v2879 = vld [vmem:[%s959] sm:$0x1]
        %v2880 = vld [vmem:[%s962] sm:$0x1]
        %2881 = vadd.xlane.f32.xlu0 %v2877
        %v2882 = vpop.xlane.xlu0 %2881
        %2883 = vadd.xlane.f32.xlu0 %v2878
        %v2884 = vpop.xlane.xlu0 %2883
        %v2885 = vmul.f32 %v2882, %v2120
        %v2886 = vmul.f32 %v2884, %v2120
        %v2887 = vsub.f32 %v2877, %v2885
        %v2888 = vsub.f32 %v2878, %v2886
        %v2889 = vmul.f32 %v2887, %v2887
        %v2890 = vmul.f32 %v2888, %v2888
        %2891 = vadd.xlane.f32.xlu0 %v2889
        %v2892 = vpop.xlane.xlu0 %2891
        %2893 = vadd.xlane.f32.xlu0 %v2890
        %v2894 = vpop.xlane.xlu0 %2893
        %v2895 = vmul.f32 %v2892, %v2120
        %v2896 = vmul.f32 %v2894, %v2120
        %v2897 = vadd.f32 %v2895, 1e-12
        %v2898 = vadd.f32 %v2896, 1e-12
        %v2899 = vrsqrt.pop %v2897
        %v2900 = vrsqrt.pop %v2898
        %v2901 = vmul.f32 %v2887, %v2899
        %v2902 = vmul.f32 %v2888, %v2900
        %v2904 = vlaneseq
        %v2905 = vshrl.u32 %v2904, 7
        %v2906 = vsub.s32 0, %v2905
        %v2907 = vrot.slane %v2879, %v2906
        %v2909 = vmul.f32 %v2901, %v2907
        %v2910 = vmul.f32 %v2902, %v2907
        %v2912 = vlaneseq
        %v2913 = vshrl.u32 %v2912, 7
        %v2914 = vsub.s32 0, %v2913
        %v2915 = vrot.slane %v2880, %v2914
        %v2917 = vadd.f32 %v2909, %v2915
        %v2918 = vadd.f32 %v2910, %v2915
        %2920 = vset.pattern.permute.xlu0 0
        %2921 = vperm.xlu0 %2920, %v964
        %v2922 = vpop.permute.xlu0 %2921
        %2925 = vset.pattern.permute.xlu0 0
        %2926 = vperm.xlu0 %2925, %v965
        %v2927 = vpop.permute.xlu0 %2926
        %v2929 = vmul.f32 %v2917, %v2922
        %v2930 = vmul.f32 %v2918, %v2927
        %2931 = vst [vmem:[#allocation2] sm:$0xff] %v2929
        %2932 = vst [vmem:[#allocation2 + $0x8] sm:$0xff] %v2930
        %p2933 = scmp.eq.s32.totalorder %s48, 1
        // Predicated region
        $region129: #{tpu_custom_call.1} parent=107 // pred_check
          %p2934 = pneg %p2933
        $region130: #{tpu_custom_call.1} parent=107 // pred_check_branch
          %2936 = sbr.rel (%p2934) target = $region132
        $region131: #{tpu_custom_call.1} parent=107 // pred_region
          %2937 = vst [vmem:[#allocation12] sm:$0xff] %v2929
          %2938 = vst [vmem:[#allocation12 + $0x8] sm:$0xff] %v2930
        $region132: #{tpu_custom_call.1} parent=107 // pred_fallthru
          _
        %s2939 = sand.u32 %s578, 1
        %s2940 = scalar_lea.sflag [#allocation5], %s2939
        %s2941 = sand.u32 %s578, 1
        %s2942 = smul.addr %s2941, 16
        %s2943 = scalar_lea.vmem [#allocation11], %s2942
        // Predicated region
        $region133: #{tpu_custom_call.1} parent=107 // pred_check
          %p2944 = pneg %p588
        $region134: #{tpu_custom_call.1} parent=107 // pred_check_branch
          %2946 = sbr.rel (%p2944) target = $region136
        $region135: #{tpu_custom_call.1} parent=107 // pred_region
          %s2948 = ssub.s32 256, 256
          %2949 = vsyncadd %s2940, %s2948
          %s2950 = smul.addr %s48, 2
          %s2951 = smul.addr %s2950, 128
          %s2952 = scalar_lea.hbm %s22, %s2951
          %s2953 = sshll.u32 %s2943, 4
          %s2954 = int_to_ptr.vmem [resolvable:$true] %s2953
          %2959 = dma.vmem_to_hbm [thread:$0]  %s2954, 256, %s2952, %s2940, 128, 128, 8
        $region136: #{tpu_custom_call.1} parent=107 // pred_fallthru
          _
        // Predicated region
        $region137: #{tpu_custom_call.1} parent=107 // pred_check
          %p2960 = pneg %p609
        $region138: #{tpu_custom_call.1} parent=107 // pred_check_branch
          %2962 = sbr.rel (%p2960) target = $region140
        $region139: #{tpu_custom_call.1} parent=107 // pred_region
          %s2964 = ssub.s32 256, 256
          %2965 = vsyncadd [#allocation13], %s2964
          %s2966 = sshll.u32 [#allocation12], 4
          %s2967 = int_to_ptr.vmem [resolvable:$true] %s2966
          %2972 = dma.vmem_to_hbm [thread:$0]  %s2967, 256, %s23, [#allocation13], 128, 128, 8
        $region140: #{tpu_custom_call.1} parent=107 // pred_fallthru
          _
        // Predicated region
        $region141: #{tpu_custom_call.1} parent=107 // pred_check
          %p2973 = pneg %p609
        $region142: #{tpu_custom_call.1} parent=107 // pred_check_branch
          %2975 = sbr.rel (%p2973) target = $region144
        $region143: #{tpu_custom_call.1} parent=107 // pred_region
          %2976 = dma.done [#allocation13], 256
        $region144: #{tpu_custom_call.1} parent=107 // pred_fallthru
          _
      $region108: #{tpu_custom_call.1} parent=5 // pred_fallthru
        _
      %p2977 = scmp.le.s32.totalorder 2, %s43
      // Predicated region
      $region145: #{tpu_custom_call.1} parent=5 // pred_check
        %p2978 = pneg %p2977
      $region146: #{tpu_custom_call.1} parent=5 // pred_check_branch
        %2980 = sbr.rel (%p2978) target = $region148
      $region147: #{tpu_custom_call.1} parent=5 // pred_region
        %s2981 = ssub.s32 %s43, 2
        // Predicated region
        $region149: #{tpu_custom_call.1} parent=147 // pred_check
          %p2982 = pneg %p594
        $region150: #{tpu_custom_call.1} parent=147 // pred_check_branch
          %2984 = sbr.rel (%p2982) target = $region152
        $region151: #{tpu_custom_call.1} parent=147 // pred_region
          %s2985 = sand.u32 %s579, 1
          %s2986 = scalar_lea.sflag [#allocation5], %s2985
          %s2987 = sand.u32 %s579, 1
          %s2988 = smul.addr %s2987, 16
          %s2989 = scalar_lea.vmem [#allocation11], %s2988
          %2990 = dma.done %s2986, 256
        $region152: #{tpu_custom_call.1} parent=147 // pred_fallthru
          _
      $region148: #{tpu_custom_call.1} parent=5 // pred_fallthru
        _
    $region6: #{tpu_custom_call.1} parent=1 // loop_footer
      %s47 = sadd.s32 1, %s43
    $region7: #{tpu_custom_call.1} parent=1 // loop_footer_branch
      %42 = sbr.rel target = $region3
    $region8: #{tpu_custom_call.1} parent=1 // loop_exit
      _
    %2991 = vsyncpa [#allocation4], 1
    %s2992 = scalar_lea.sflag [#allocation4], 1
    %2993 = vsyncpa %s2992, 1
    %2994 = vsyncpa [#allocation7], 1
    %s2995 = scalar_lea.sflag [#allocation7], 1
    %2996 = vsyncpa %s2995, 1
    %2997 = vsyncpa [#allocation10], 1
    %s2998 = scalar_lea.sflag [#allocation10], 1
    %2999 = vsyncpa %s2998, 1
    %3000 = vsyncpa [#allocation5], 1
    %s3001 = scalar_lea.sflag [#allocation5], 1
    %3002 = vsyncpa %s3001, 1
    %3003 = vsyncpa [#allocation13], 1

</llo_original>
